<compile_context>
chip_gen: v7x
topology: tpu7x:2x2x1
jax: 0.10.0
libtpu: 0.0.40
codegen_flags: <defaults>
</compile_context>

<pallas_src>
import jax
import jax.numpy as jnp
from jax.experimental import pallas as pl
from jax.experimental.pallas import tpu as pltpu

NOISE_DIM = 96
EPS = 1e-5                         # PyTorch BatchNorm default eps


def _round_up(x, m):
    return ((x + m - 1) // m) * m


def _cdiv(a, b):
    return (a + b - 1) // b


_VMEM_LIMIT_CACHE = None


def _vmem_limit_bytes():
    # Per-generation scoped-VMEM budget: ~75% of physical, capped at 100 MiB
    # (v5e/v6e: 128 MiB phys -> 96 MiB; v7x: 64 MiB phys -> 48 MiB).
    global _VMEM_LIMIT_CACHE
    if _VMEM_LIMIT_CACHE is None:
        cap = 64 * 1024 * 1024
        try:
            cap = int(pltpu.get_tpu_info().vmem_capacity_bytes)
        except Exception:
            pass
        _VMEM_LIMIT_CACHE = min((cap * 3) // 4, 100 * 1024 * 1024)
    return _VMEM_LIMIT_CACHE


# -----------------------------------------------------------------------------
# Pallas kernels
# -----------------------------------------------------------------------------
def _fc_relu_bn_kernel(x_ref, w_ref, b_ref, g_ref, beta_ref, o_ref):
    # h = relu(x @ w + b); BatchNorm1d over the row (batch) axis, which is
    # fully resident in the tile.  One-pass stats (sum / sum-of-squares),
    # biased variance like PyTorch training mode, clamped >= 0.
    # (One-pass E[x^2]-E[x]^2 in f32 can drift slightly vs PyTorch's
    #  algorithm for large mean/std ratios; the clamp prevents NaN.)
    h = jnp.dot(x_ref[...].astype(jnp.bfloat16),   # no-op cast if already bf16
                w_ref[...],
                preferred_element_type=jnp.float32)
    h = jnp.maximum(h + b_ref[...], 0.0)
    m = h.shape[0]
    s1 = jnp.sum(h, axis=0, keepdims=True)
    s2 = jnp.sum(h * h, axis=0, keepdims=True)
    mean = s1 / m
    var = jnp.maximum(s2 / m - mean * mean, 0.0)
    o_ref[...] = (g_ref[...] * (h - mean) * jax.lax.rsqrt(var + EPS)
                  + beta_ref[...]).astype(o_ref.dtype)


def _matmul_kernel(x_ref, w_ref, o_ref):
    # Plain bf16 matmul tile with f32 accumulation (ConvT1 scatter-form GEMM).
    o_ref[...] = jnp.dot(x_ref[...].astype(jnp.bfloat16), w_ref[...],
                         preferred_element_type=jnp.float32).astype(o_ref.dtype)


def _relu_bn_matmul_kernel(x_ref, scale_ref, shift_ref, w_ref, o_ref):
    # ConvT2 scatter-form GEMM with the ReLU + BatchNorm2d of the previous
    # stage fused into the prologue as a per-channel affine (scale/shift).
    # NOTE: rows of the (masked) last M block that lie out of bounds contain
    # garbage after the affine; they are never stored, so this is only a tiny
    # amount of wasted compute — do not "fix" by zeroing.
    a = jnp.maximum(x_ref[...].astype(jnp.float32), 0.0)
    xn = a * scale_ref[...] + shift_ref[...]
    o_ref[...] = jnp.dot(xn.astype(jnp.bfloat16), w_ref[...],
                         preferred_element_type=jnp.float32).astype(o_ref.dtype)


# -----------------------------------------------------------------------------
# Pallas wrappers
# -----------------------------------------------------------------------------
def fc_relu_bn(x, w, b, g, beta, tn_pref):
    """BN(ReLU(x @ w + b)); BN over rows, tiled ("parallel") over columns.

    Correctness of the BN stats relies on the M (batch) axis never being
    tiled: the full batch is resident in every tile.  For large batches the
    column tile shrinks so the f32 pre-BN tile stays ~8 MiB.
    TODO(synk): for very large batches a cross-tile (grid-over-M) reduction
    of the BN statistics would be needed to also tile M.
    """
    M, K = x.shape
    F = w.shape[1]
    tn_fit = max(128, ((8 * 1024 * 1024) // (max(M, 1) * 4)) // 128 * 128)
    tn = min(tn_pref, tn_fit, _round_up(F, 128))
    grid = _cdiv(F, tn)
    return pl.pallas_call(
        _fc_relu_bn_kernel,
        out_shape=jax.ShapeDtypeStruct((M, F), jnp.bfloat16),
        grid=(grid,),
        in_specs=[
            pl.BlockSpec((M, K), lambda j: (0, 0)),
            pl.BlockSpec((K, tn), lambda j: (0, j)),
            pl.BlockSpec((1, tn), lambda j: (0, j)),
            pl.BlockSpec((1, tn), lambda j: (0, j)),
            pl.BlockSpec((1, tn), lambda j: (0, j)),
        ],
        out_specs=pl.BlockSpec((M, tn), lambda j: (0, j)),
        compiler_params=pltpu.CompilerParams(
            dimension_semantics=("parallel",),
            vmem_limit_bytes=_vmem_limit_bytes()),
    )(x, w, b.reshape(1, -1), g.reshape(1, -1), beta.reshape(1, -1))


def _choose_tm(M, tm_max=512, min_tiles=2):
    # >= 2 grid steps so both v7x TensorCores get work; tm a multiple of 16 so
    # bf16 blocks stay (16,128)-tiling aligned; capped at tm_max (~85% of the
    # measured HBM-roofline tile-size curve).
    tm = min(tm_max, _round_up(_cdiv(M, min_tiles), 16))
    return max(16, tm)


def tiled_matmul(x, w, tm_max=512):
    """x @ w, tiled over rows (parallel M axis), lane-dense bf16 output.

    The last M tile may be partial; Pallas masks its loads/stores."""
    M, K = x.shape
    F = w.shape[1]
    tm = _choose_tm(M, tm_max)
    return pl.pallas_call(
        _matmul_kernel,
        out_shape=jax.ShapeDtypeStruct((M, F), jnp.bfloat16),
        grid=(_cdiv(M, tm),),
        in_specs=[
            pl.BlockSpec((tm, K), lambda i: (i, 0)),
            pl.BlockSpec((K, F), lambda i: (0, 0)),
        ],
        out_specs=pl.BlockSpec((tm, F), lambda i: (i, 0)),
        compiler_params=pltpu.CompilerParams(
            dimension_semantics=("parallel",),
            vmem_limit_bytes=_vmem_limit_bytes()),
    )(x, w)


def relu_bn_matmul(x, scale, shift, w, tm_max=512):
    """(relu(x)*scale + shift) @ w, tiled over rows (parallel M axis)."""
    M, K = x.shape
    F = w.shape[1]
    tm = _choose_tm(M, tm_max)
    return pl.pallas_call(
        _relu_bn_matmul_kernel,
        out_shape=jax.ShapeDtypeStruct((M, F), jnp.bfloat16),
        grid=(_cdiv(M, tm),),
        in_specs=[
            pl.BlockSpec((tm, K), lambda i: (i, 0)),
            pl.BlockSpec((1, K), lambda i: (0, 0)),
            pl.BlockSpec((1, K), lambda i: (0, 0)),
            pl.BlockSpec((K, F), lambda i: (0, 0)),
        ],
        out_specs=pl.BlockSpec((tm, F), lambda i: (i, 0)),
        compiler_params=pltpu.CompilerParams(
            dimension_semantics=("parallel",),
            vmem_limit_bytes=_vmem_limit_bytes()),
    )(x, scale, shift, w)


# -----------------------------------------------------------------------------
# ConvTranspose2d(k=4, s=2, p=1) scatter-form glue: parity-grouped col2im.
# Four output phases, each the sum of 4 shifted tap slices (plain adds XLA can
# fuse), then a pixel-shuffle interleave — no strided read-modify-write scans.
# TODO(synk): this overlap-add and the final bias+tanh epilogue remain XLA
# glue over small tensors; only matmuls / BN-heavy paths are Pallas kernels.
# -----------------------------------------------------------------------------
def _col2im_phase(y, bias):
    # y: (N, H, W, 4, 4, C) with tap order (ky, kx); returns (N, 2H, 2W, C) f32.
    n, h, w, kh, kw, c = y.shape
    yf = y.astype(jnp.float32)

    def phase(py, px):
        # phase[py,px][a,b] = sum_{dy,dx in {0,1}} y[a-dy, b-dx, py+2dy, px+2dx]
        acc = None
        for dy in (0, 1):
            for dx in (0, 1):
                t = yf[:, :, :, py + 2 * dy, px + 2 * dx, :]
                t = jnp.pad(t, ((0, 0), (dy, 1 - dy), (dx, 1 - dx), (0, 0)))
                acc = t if acc is None else acc + t
        return acc  # (N, H+1, W+1, C)

    p00, p01 = phase(0, 0), phase(0, 1)
    p10, p11 = phase(1, 0), phase(1, 1)
    # crop pad=1: out row 2m <- full row 2m+1 (py=1,a=m); 2m+1 <- 2m+2 (py=0,a=m+1)
    q00 = p11[:, 0:h, 0:w]           # even row, even col
    q01 = p10[:, 0:h, 1:w + 1]       # even row, odd  col
    q10 = p01[:, 1:h + 1, 0:w]       # odd  row, even col
    q11 = p00[:, 1:h + 1, 1:w + 1]   # odd  row, odd  col
    row0 = jnp.stack([q00, q01], axis=3)      # (N, H, W, 2, C)
    row1 = jnp.stack([q10, q11], axis=3)
    out = jnp.stack([row0, row1], axis=2)     # (N, H, 2, W, 2, C)
    return out.reshape(n, 2 * h, 2 * w, c) + bias


# -----------------------------------------------------------------------------
# Generator forward (PyTorch training-mode BN semantics).  bf16 activations /
# weights deviate slightly from an f32 reference (validate with rtol ~1e-2).
# -----------------------------------------------------------------------------
def generator_forward(x, p):
    n = x.shape[0]

    # fc: Linear(96,1024)+ReLU+BN1d, Linear(1024,6272)+ReLU+BN1d
    h = fc_relu_bn(x, p["w1"], p["b1"], p["g1"], p["bt1"], tn_pref=512)
    h = fc_relu_bn(h, p["w2"], p["b2"], p["g2"], p["bt2"], tn_pref=640)

    # fc2 columns were pre-permuted to (y, x, c): rows are already NHWC-flat.
    h = h.reshape(n * 49, 128)

    # ConvTranspose2d(128,64,4,2,1): scatter GEMM -> parity col2im -> +bias
    y1 = tiled_matmul(h, p["wm1"])                          # (N*49, 16*64) bf16
    h1f = _col2im_phase(y1.reshape(n, 7, 7, 4, 4, 64), p["ct1_b"])  # f32 NHWC
    h1f = h1f.reshape(n * 196, 64)

    # BatchNorm2d stats of relu(h1) per channel (one-pass, biased, clamped),
    # folded into a per-channel scale/shift consumed by the ConvT2 kernel.
    a = jnp.maximum(h1f, 0.0)
    m1 = jnp.mean(a, axis=0)
    m2 = jnp.mean(a * a, axis=0)
    var = jnp.maximum(m2 - m1 * m1, 0.0)
    scale = p["g3"] * jax.lax.rsqrt(var + EPS)
    shift = p["bt3"] - m1 * scale
    h1 = h1f.astype(jnp.bfloat16)

    # ConvTranspose2d(64,1,4,2,1): fused ReLU+BN prologue; weight zero-padded
    # to 128 lanes (lane-dense bf16 store); real 16 columns sliced afterwards.
    y2 = relu_bn_matmul(h1, scale.reshape(1, -1), shift.reshape(1, -1), p["wm2"])
    y2 = y2[:, :16].reshape(n, 14, 14, 4, 4, 1)
    img = jnp.tanh(_col2im_phase(y2, p["ct2_b"]))           # (N, 28, 28, 1) f32
    return img.transpose(0, 3, 1, 2)                        # NCHW (N, 1, 28, 28)


# -----------------------------------------------------------------------------
# Parameters: f32 init matching the PyTorch module, then a one-time "prepare"
# step that builds bf16, matmul-ready (and column-permuted) weight matrices.
# -----------------------------------------------------------------------------
def init_params(key):
    ks = jax.random.split(key, 8)

    def u(k, shape, fan_in):
        bound = 1.0 / jnp.sqrt(float(fan_in))
        return jax.random.uniform(k, shape, jnp.float32, -bound, bound)

    p = {}
    p["w1"] = u(ks[0], (NOISE_DIM, 1024), NOISE_DIM)
    p["b1"] = u(ks[1], (1024,), NOISE_DIM)
    p["g1"] = jnp.ones((1024,), jnp.float32)
    p["bt1"] = jnp.zeros((1024,), jnp.float32)

    p["w2"] = u(ks[2], (1024, 7 * 7 * 128), 1024)
    p["b2"] = u(ks[3], (7 * 7 * 128,), 1024)
    p["g2"] = jnp.ones((7 * 7 * 128,), jnp.float32)
    p["bt2"] = jnp.zeros((7 * 7 * 128,), jnp.float32)

    p["ct1_w"] = u(ks[4], (128, 64, 4, 4), 128 * 16)      # (C_in, C_out, kH, kW)
    p["ct1_b"] = u(ks[5], (64,), 128 * 16)
    p["g3"] = jnp.ones((64,), jnp.float32)
    p["bt3"] = jnp.zeros((64,), jnp.float32)

    p["ct2_w"] = u(ks[6], (64, 1, 4, 4), 64 * 16)
    p["ct2_b"] = u(ks[7], (1,), 64 * 16)
    return p


def prepare_params(p):
    q = {}
    q["w1"] = p["w1"].astype(jnp.bfloat16)
    # Permute fc2 columns (c,y,x) -> (y,x,c) so the fc2 output is NHWC-flat;
    # BN1d is per-column so permuting b2/g2/bt2 identically keeps semantics.
    idx = jnp.arange(7 * 7 * 128).reshape(128, 7, 7).transpose(1, 2, 0).reshape(-1)
    q["w2"] = p["w2"][:, idx].astype(jnp.bfloat16)
    q["b2"] = p["b2"][idx]
    q["g2"] = p["g2"][idx]
    q["bt2"] = p["bt2"][idx]
    # scatter-form convT weights: (C_in, C_out, kH, kW) -> (C_in, kH*kW*C_out)
    q["wm1"] = (p["ct1_w"].transpose(0, 2, 3, 1)
                .reshape(128, 16 * 64).astype(jnp.bfloat16))
    wm2 = p["ct2_w"].transpose(0, 2, 3, 1).reshape(64, 16)
    q["wm2"] = jnp.pad(wm2, ((0, 0), (0, 128 - 16))).astype(jnp.bfloat16)
    for k in ("b1", "g1", "bt1", "ct1_b", "g3", "bt3", "ct2_b"):
        q[k] = p[k]
    return q


if __name__ == "__main__":
    key = jax.random.PRNGKey(0)
    k_param, k_x = jax.random.split(key)
    params = prepare_params(init_params(k_param))

    batch = 2
    x = jax.random.normal(k_x, (batch, NOISE_DIM), jnp.float32)

    fwd = jax.jit(generator_forward)
    out = jax.block_until_ready(fwd(x, params))

    assert out.shape == (batch, 1, 28, 28), out.shape
    assert out.dtype == jnp.float32
    assert bool(jnp.all(jnp.isfinite(out)))
    assert bool(jnp.all(jnp.abs(out) <= 1.0 + 1e-6))  # tanh range
    print("KERNEL_OK")
</pallas_src>

<mosaic_0001>
module attributes {stable_mosaic.version = 11 : i64} {
  func.func @_fc_relu_bn_kernel(%arg0: i32, %arg1: memref<2x1024xbf16, #tpu.memory_space<vmem>>, %arg2: memref<1024x640xbf16, #tpu.memory_space<vmem>>, %arg3: memref<1x640xf32, #tpu.memory_space<vmem>>, %arg4: memref<1x640xf32, #tpu.memory_space<vmem>>, %arg5: memref<1x640xf32, #tpu.memory_space<vmem>>, %arg6: memref<2x640xbf16, #tpu.memory_space<vmem>>) attributes {dimension_semantics = [#tpu.dimension_semantics<parallel>], iteration_bounds = array<i64: 10>, scalar_prefetch = 0 : i64, scratch_operands = 0 : i64, tpu.core_type = #tpu.core_type<tc>, window_params = [{pipeline_mode = #tpu.pipeline_mode<synchronous>, transform_indices = @transform_0, window_bounds = array<i64: 2, 1024>}, {transform_indices = @transform_1, window_bounds = array<i64: 1024, 640>}, {transform_indices = @transform_2, window_bounds = array<i64: 1, 640>}, {transform_indices = @transform_3, window_bounds = array<i64: 1, 640>}, {transform_indices = @transform_4, window_bounds = array<i64: 1, 640>}, {transform_indices = @transform_5, window_bounds = array<i64: 2, 640>}]} {
    %c0 = arith.constant 0 : index
    %c0_0 = arith.constant 0 : index
    %0 = vector.load %arg1[%c0, %c0_0] : memref<2x1024xbf16, #tpu.memory_space<vmem>>, vector<2x1024xbf16>
    %c0_1 = arith.constant 0 : index
    %c0_2 = arith.constant 0 : index
    %1 = vector.load %arg2[%c0_1, %c0_2] : memref<1024x640xbf16, #tpu.memory_space<vmem>>, vector<1024x640xbf16>
    %cst = arith.constant dense<0.000000e+00> : vector<2x640xf32>
    %2 = tpu.matmul %0, %1, %cst {dimension_numbers = #tpu.dot_dimension_numbers<[1], [0], [0], [1], [0, 0, 1, 1], [], []>} : vector<2x1024xbf16>, vector<1024x640xbf16>, vector<2x640xf32> -> vector<2x640xf32>
    %c0_3 = arith.constant 0 : index
    %c0_4 = arith.constant 0 : index
    %3 = vector.load %arg3[%c0_3, %c0_4] : memref<1x640xf32, #tpu.memory_space<vmem>>, vector<1x640xf32>
    %4 = vector.broadcast %3 : vector<1x640xf32> to vector<2x640xf32>
    %5 = arith.addf %2, %4 : vector<2x640xf32>
    %cst_5 = arith.constant 0.000000e+00 : f32
    %6 = vector.broadcast %cst_5 : f32 to vector<2x640xf32>
    %7 = arith.maximumf %5, %6 : vector<2x640xf32>
    %cst_6 = arith.constant dense<0.000000e+00> : vector<640xf32>
    %8 = vector.multi_reduction <add>, %7, %cst_6 [0] : vector<2x640xf32> to vector<640xf32>
    %9 = vector.shape_cast %8 : vector<640xf32> to vector<1x640xf32>
    %10 = arith.mulf %7, %7 : vector<2x640xf32>
    %cst_7 = arith.constant dense<0.000000e+00> : vector<640xf32>
    %11 = vector.multi_reduction <add>, %10, %cst_7 [0] : vector<2x640xf32> to vector<640xf32>
    %12 = vector.shape_cast %11 : vector<640xf32> to vector<1x640xf32>
    %cst_8 = arith.constant 2.000000e+00 : f32
    %13 = vector.broadcast %cst_8 : f32 to vector<1x640xf32>
    %14 = arith.divf %9, %13 : vector<1x640xf32>
    %cst_9 = arith.constant 2.000000e+00 : f32
    %15 = vector.broadcast %cst_9 : f32 to vector<1x640xf32>
    %16 = arith.divf %12, %15 : vector<1x640xf32>
    %17 = arith.mulf %14, %14 : vector<1x640xf32>
    %18 = arith.subf %16, %17 : vector<1x640xf32>
    %cst_10 = arith.constant 0.000000e+00 : f32
    %19 = vector.broadcast %cst_10 : f32 to vector<1x640xf32>
    %20 = arith.maximumf %18, %19 : vector<1x640xf32>
    %c0_11 = arith.constant 0 : index
    %c0_12 = arith.constant 0 : index
    %21 = vector.load %arg4[%c0_11, %c0_12] : memref<1x640xf32, #tpu.memory_space<vmem>>, vector<1x640xf32>
    %22 = vector.broadcast %14 : vector<1x640xf32> to vector<2x640xf32>
    %23 = arith.subf %7, %22 : vector<2x640xf32>
    %24 = vector.broadcast %21 : vector<1x640xf32> to vector<2x640xf32>
    %25 = arith.mulf %24, %23 : vector<2x640xf32>
    %cst_13 = arith.constant 9.99999974E-6 : f32
    %26 = vector.broadcast %cst_13 : f32 to vector<1x640xf32>
    %27 = arith.addf %20, %26 : vector<1x640xf32>
    %28 = math.rsqrt %27 : vector<1x640xf32>
    %29 = vector.broadcast %28 : vector<1x640xf32> to vector<2x640xf32>
    %30 = arith.mulf %25, %29 : vector<2x640xf32>
    %c0_14 = arith.constant 0 : index
    %c0_15 = arith.constant 0 : index
    %31 = vector.load %arg5[%c0_14, %c0_15] : memref<1x640xf32, #tpu.memory_space<vmem>>, vector<1x640xf32>
    %32 = vector.broadcast %31 : vector<1x640xf32> to vector<2x640xf32>
    %33 = arith.addf %30, %32 : vector<2x640xf32>
    %34 = arith.truncf %33 : vector<2x640xf32> to vector<2x640xbf16>
    %c0_16 = arith.constant 0 : index
    %c0_17 = arith.constant 0 : index
    %35 = vector.load %arg6[%c0_16, %c0_17] : memref<2x640xbf16, #tpu.memory_space<vmem>>, vector<2x640xbf16>
    tpu.vector_store %arg6[%c0_16, %c0_17], %34 {strides = array<i32>} : memref<2x640xbf16, #tpu.memory_space<vmem>>, vector<2x640xbf16>,
    return
  }
  func.func @transform_0(%arg0: i32) -> (i32, i32) {
    %c0_i32 = arith.constant 0 : i32
    %c0_i32_0 = arith.constant 0 : i32
    %c0_i32_1 = arith.constant 0 : i32
    return %c0_i32, %c0_i32_0 : i32, i32
  }
  func.func @transform_1(%arg0: i32) -> (i32, i32) {
    %c0_i32 = arith.constant 0 : i32
    %c0_i32_0 = arith.constant 0 : i32
    return %c0_i32, %arg0 : i32, i32
  }
  func.func @transform_2(%arg0: i32) -> (i32, i32) {
    %c0_i32 = arith.constant 0 : i32
    %c0_i32_0 = arith.constant 0 : i32
    return %c0_i32, %arg0 : i32, i32
  }
  func.func @transform_3(%arg0: i32) -> (i32, i32) {
    %c0_i32 = arith.constant 0 : i32
    %c0_i32_0 = arith.constant 0 : i32
    return %c0_i32, %arg0 : i32, i32
  }
  func.func @transform_4(%arg0: i32) -> (i32, i32) {
    %c0_i32 = arith.constant 0 : i32
    %c0_i32_0 = arith.constant 0 : i32
    return %c0_i32, %arg0 : i32, i32
  }
  func.func @transform_5(%arg0: i32) -> (i32, i32) {
    %c0_i32 = arith.constant 0 : i32
    %c0_i32_0 = arith.constant 0 : i32
    return %c0_i32, %arg0 : i32, i32
  }
}

module attributes {stable_mosaic.version = 11 : i64} {
  func.func @_fc_relu_bn_kernel(%arg0: i32, %arg1: memref<2x96xf32, #tpu.memory_space<vmem>>, %arg2: memref<96x512xbf16, #tpu.memory_space<vmem>>, %arg3: memref<1x512xf32, #tpu.memory_space<vmem>>, %arg4: memref<1x512xf32, #tpu.memory_space<vmem>>, %arg5: memref<1x512xf32, #tpu.memory_space<vmem>>, %arg6: memref<2x512xbf16, #tpu.memory_space<vmem>>) attributes {dimension_semantics = [#tpu.dimension_semantics<parallel>], iteration_bounds = array<i64: 2>, scalar_prefetch = 0 : i64, scratch_operands = 0 : i64, tpu.core_type = #tpu.core_type<tc>, window_params = [{pipeline_mode = #tpu.pipeline_mode<synchronous>, transform_indices = @transform_0, window_bounds = array<i64: 2, 96>}, {transform_indices = @transform_1, window_bounds = array<i64: 96, 512>}, {transform_indices = @transform_2, window_bounds = array<i64: 1, 512>}, {transform_indices = @transform_3, window_bounds = array<i64: 1, 512>}, {transform_indices = @transform_4, window_bounds = array<i64: 1, 512>}, {transform_indices = @transform_5, window_bounds = array<i64: 2, 512>}]} {
    %c0 = arith.constant 0 : index
    %c0_0 = arith.constant 0 : index
    %0 = vector.load %arg1[%c0, %c0_0] : memref<2x96xf32, #tpu.memory_space<vmem>>, vector<2x96xf32>
    %1 = arith.truncf %0 : vector<2x96xf32> to vector<2x96xbf16>
    %c0_1 = arith.constant 0 : index
    %c0_2 = arith.constant 0 : index
    %2 = vector.load %arg2[%c0_1, %c0_2] : memref<96x512xbf16, #tpu.memory_space<vmem>>, vector<96x512xbf16>
    %cst = arith.constant dense<0.000000e+00> : vector<2x512xf32>
    %3 = tpu.matmul %1, %2, %cst {dimension_numbers = #tpu.dot_dimension_numbers<[1], [0], [0], [1], [0, 0, 1, 1], [], []>} : vector<2x96xbf16>, vector<96x512xbf16>, vector<2x512xf32> -> vector<2x512xf32>
    %c0_3 = arith.constant 0 : index
    %c0_4 = arith.constant 0 : index
    %4 = vector.load %arg3[%c0_3, %c0_4] : memref<1x512xf32, #tpu.memory_space<vmem>>, vector<1x512xf32>
    %5 = vector.broadcast %4 : vector<1x512xf32> to vector<2x512xf32>
    %6 = arith.addf %3, %5 : vector<2x512xf32>
    %cst_5 = arith.constant 0.000000e+00 : f32
    %7 = vector.broadcast %cst_5 : f32 to vector<2x512xf32>
    %8 = arith.maximumf %6, %7 : vector<2x512xf32>
    %cst_6 = arith.constant dense<0.000000e+00> : vector<512xf32>
    %9 = vector.multi_reduction <add>, %8, %cst_6 [0] : vector<2x512xf32> to vector<512xf32>
    %10 = vector.shape_cast %9 : vector<512xf32> to vector<1x512xf32>
    %11 = arith.mulf %8, %8 : vector<2x512xf32>
    %cst_7 = arith.constant dense<0.000000e+00> : vector<512xf32>
    %12 = vector.multi_reduction <add>, %11, %cst_7 [0] : vector<2x512xf32> to vector<512xf32>
    %13 = vector.shape_cast %12 : vector<512xf32> to vector<1x512xf32>
    %cst_8 = arith.constant 2.000000e+00 : f32
    %14 = vector.broadcast %cst_8 : f32 to vector<1x512xf32>
    %15 = arith.divf %10, %14 : vector<1x512xf32>
    %cst_9 = arith.constant 2.000000e+00 : f32
    %16 = vector.broadcast %cst_9 : f32 to vector<1x512xf32>
    %17 = arith.divf %13, %16 : vector<1x512xf32>
    %18 = arith.mulf %15, %15 : vector<1x512xf32>
    %19 = arith.subf %17, %18 : vector<1x512xf32>
    %cst_10 = arith.constant 0.000000e+00 : f32
    %20 = vector.broadcast %cst_10 : f32 to vector<1x512xf32>
    %21 = arith.maximumf %19, %20 : vector<1x512xf32>
    %c0_11 = arith.constant 0 : index
    %c0_12 = arith.constant 0 : index
    %22 = vector.load %arg4[%c0_11, %c0_12] : memref<1x512xf32, #tpu.memory_space<vmem>>, vector<1x512xf32>
    %23 = vector.broadcast %15 : vector<1x512xf32> to vector<2x512xf32>
    %24 = arith.subf %8, %23 : vector<2x512xf32>
    %25 = vector.broadcast %22 : vector<1x512xf32> to vector<2x512xf32>
    %26 = arith.mulf %25, %24 : vector<2x512xf32>
    %cst_13 = arith.constant 9.99999974E-6 : f32
    %27 = vector.broadcast %cst_13 : f32 to vector<1x512xf32>
    %28 = arith.addf %21, %27 : vector<1x512xf32>
    %29 = math.rsqrt %28 : vector<1x512xf32>
    %30 = vector.broadcast %29 : vector<1x512xf32> to vector<2x512xf32>
    %31 = arith.mulf %26, %30 : vector<2x512xf32>
    %c0_14 = arith.constant 0 : index
    %c0_15 = arith.constant 0 : index
    %32 = vector.load %arg5[%c0_14, %c0_15] : memref<1x512xf32, #tpu.memory_space<vmem>>, vector<1x512xf32>
    %33 = vector.broadcast %32 : vector<1x512xf32> to vector<2x512xf32>
    %34 = arith.addf %31, %33 : vector<2x512xf32>
    %35 = arith.truncf %34 : vector<2x512xf32> to vector<2x512xbf16>
    %c0_16 = arith.constant 0 : index
    %c0_17 = arith.constant 0 : index
    %36 = vector.load %arg6[%c0_16, %c0_17] : memref<2x512xbf16, #tpu.memory_space<vmem>>, vector<2x512xbf16>
    tpu.vector_store %arg6[%c0_16, %c0_17], %35 {strides = array<i32>} : memref<2x512xbf16, #tpu.memory_space<vmem>>, vector<2x512xbf16>,
    return
  }
  func.func @transform_0(%arg0: i32) -> (i32, i32) {
    %c0_i32 = arith.constant 0 : i32
    %c0_i32_0 = arith.constant 0 : i32
    %c0_i32_1 = arith.constant 0 : i32
    return %c0_i32, %c0_i32_0 : i32, i32
  }
  func.func @transform_1(%arg0: i32) -> (i32, i32) {
    %c0_i32 = arith.constant 0 : i32
    %c0_i32_0 = arith.constant 0 : i32
    return %c0_i32, %arg0 : i32, i32
  }
  func.func @transform_2(%arg0: i32) -> (i32, i32) {
    %c0_i32 = arith.constant 0 : i32
    %c0_i32_0 = arith.constant 0 : i32
    return %c0_i32, %arg0 : i32, i32
  }
  func.func @transform_3(%arg0: i32) -> (i32, i32) {
    %c0_i32 = arith.constant 0 : i32
    %c0_i32_0 = arith.constant 0 : i32
    return %c0_i32, %arg0 : i32, i32
  }
  func.func @transform_4(%arg0: i32) -> (i32, i32) {
    %c0_i32 = arith.constant 0 : i32
    %c0_i32_0 = arith.constant 0 : i32
    return %c0_i32, %arg0 : i32, i32
  }
  func.func @transform_5(%arg0: i32) -> (i32, i32) {
    %c0_i32 = arith.constant 0 : i32
    %c0_i32_0 = arith.constant 0 : i32
    return %c0_i32, %arg0 : i32, i32
  }
}

module attributes {stable_mosaic.version = 11 : i64} {
  func.func @_matmul_kernel(%arg0: i32, %arg1: memref<64x128xbf16, #tpu.memory_space<vmem>>, %arg2: memref<128x1024xbf16, #tpu.memory_space<vmem>>, %arg3: memref<64x1024xbf16, #tpu.memory_space<vmem>>) attributes {dimension_semantics = [#tpu.dimension_semantics<parallel>], iteration_bounds = array<i64: 2>, scalar_prefetch = 0 : i64, scratch_operands = 0 : i64, tpu.core_type = #tpu.core_type<tc>, window_params = [{transform_indices = @transform_0, window_bounds = array<i64: 64, 128>}, {pipeline_mode = #tpu.pipeline_mode<synchronous>, transform_indices = @transform_1, window_bounds = array<i64: 128, 1024>}, {transform_indices = @transform_2, window_bounds = array<i64: 64, 1024>}]} {
    %c0 = arith.constant 0 : index
    %c0_0 = arith.constant 0 : index
    %0 = vector.load %arg1[%c0, %c0_0] : memref<64x128xbf16, #tpu.memory_space<vmem>>, vector<64x128xbf16>
    %c0_1 = arith.constant 0 : index
    %c0_2 = arith.constant 0 : index
    %1 = vector.load %arg2[%c0_1, %c0_2] : memref<128x1024xbf16, #tpu.memory_space<vmem>>, vector<128x1024xbf16>
    %cst = arith.constant dense<0.000000e+00> : vector<64x1024xf32>
    %2 = tpu.matmul %0, %1, %cst {dimension_numbers = #tpu.dot_dimension_numbers<[1], [0], [0], [1], [0, 0, 1, 1], [], []>} : vector<64x128xbf16>, vector<128x1024xbf16>, vector<64x1024xf32> -> vector<64x1024xf32>
    %3 = arith.truncf %2 : vector<64x1024xf32> to vector<64x1024xbf16>
    %c0_3 = arith.constant 0 : index
    %c0_4 = arith.constant 0 : index
    %4 = vector.load %arg3[%c0_3, %c0_4] : memref<64x1024xbf16, #tpu.memory_space<vmem>>, vector<64x1024xbf16>
    tpu.vector_store %arg3[%c0_3, %c0_4], %3 {strides = array<i32>} : memref<64x1024xbf16, #tpu.memory_space<vmem>>, vector<64x1024xbf16>,
    return
  }
  func.func @transform_0(%arg0: i32) -> (i32, i32) {
    %c0_i32 = arith.constant 0 : i32
    %c0_i32_0 = arith.constant 0 : i32
    return %arg0, %c0_i32 : i32, i32
  }
  func.func @transform_1(%arg0: i32) -> (i32, i32) {
    %c0_i32 = arith.constant 0 : i32
    %c0_i32_0 = arith.constant 0 : i32
    %c0_i32_1 = arith.constant 0 : i32
    return %c0_i32, %c0_i32_0 : i32, i32
  }
  func.func @transform_2(%arg0: i32) -> (i32, i32) {
    %c0_i32 = arith.constant 0 : i32
    %c0_i32_0 = arith.constant 0 : i32
    return %arg0, %c0_i32 : i32, i32
  }
}

module attributes {stable_mosaic.version = 11 : i64} {
  func.func @_relu_bn_matmul_kernel(%arg0: i32, %arg1: memref<208x64xbf16, #tpu.memory_space<vmem>>, %arg2: memref<1x64xf32, #tpu.memory_space<vmem>>, %arg3: memref<1x64xf32, #tpu.memory_space<vmem>>, %arg4: memref<64x128xbf16, #tpu.memory_space<vmem>>, %arg5: memref<208x128xbf16, #tpu.memory_space<vmem>>) attributes {dimension_semantics = [#tpu.dimension_semantics<parallel>], iteration_bounds = array<i64: 2>, scalar_prefetch = 0 : i64, scratch_operands = 0 : i64, tpu.core_type = #tpu.core_type<tc>, window_params = [{transform_indices = @transform_0, window_bounds = array<i64: 208, 64>}, {pipeline_mode = #tpu.pipeline_mode<synchronous>, transform_indices = @transform_1, window_bounds = array<i64: 1, 64>}, {pipeline_mode = #tpu.pipeline_mode<synchronous>, transform_indices = @transform_2, window_bounds = array<i64: 1, 64>}, {pipeline_mode = #tpu.pipeline_mode<synchronous>, transform_indices = @transform_3, window_bounds = array<i64: 64, 128>}, {transform_indices = @transform_4, window_bounds = array<i64: 208, 128>}]} {
    %c0 = arith.constant 0 : index
    %c0_0 = arith.constant 0 : index
    %0 = vector.load %arg1[%c0, %c0_0] : memref<208x64xbf16, #tpu.memory_space<vmem>>, vector<208x64xbf16>
    %1 = arith.extf %0 : vector<208x64xbf16> to vector<208x64xf32>
    %cst = arith.constant 0.000000e+00 : f32
    %2 = vector.broadcast %cst : f32 to vector<208x64xf32>
    %3 = arith.maximumf %1, %2 : vector<208x64xf32>
    %c0_1 = arith.constant 0 : index
    %c0_2 = arith.constant 0 : index
    %4 = vector.load %arg2[%c0_1, %c0_2] : memref<1x64xf32, #tpu.memory_space<vmem>>, vector<1x64xf32>
    %5 = vector.broadcast %4 : vector<1x64xf32> to vector<208x64xf32>
    %6 = arith.mulf %3, %5 : vector<208x64xf32>
    %c0_3 = arith.constant 0 : index
    %c0_4 = arith.constant 0 : index
    %7 = vector.load %arg3[%c0_3, %c0_4] : memref<1x64xf32, #tpu.memory_space<vmem>>, vector<1x64xf32>
    %8 = vector.broadcast %7 : vector<1x64xf32> to vector<208x64xf32>
    %9 = arith.addf %6, %8 : vector<208x64xf32>
    %10 = arith.truncf %9 : vector<208x64xf32> to vector<208x64xbf16>
    %c0_5 = arith.constant 0 : index
    %c0_6 = arith.constant 0 : index
    %11 = vector.load %arg4[%c0_5, %c0_6] : memref<64x128xbf16, #tpu.memory_space<vmem>>, vector<64x128xbf16>
    %cst_7 = arith.constant dense<0.000000e+00> : vector<208x128xf32>
    %12 = tpu.matmul %10, %11, %cst_7 {dimension_numbers = #tpu.dot_dimension_numbers<[1], [0], [0], [1], [0, 0, 1, 1], [], []>} : vector<208x64xbf16>, vector<64x128xbf16>, vector<208x128xf32> -> vector<208x128xf32>
    %13 = arith.truncf %12 : vector<208x128xf32> to vector<208x128xbf16>
    %c0_8 = arith.constant 0 : index
    %c0_9 = arith.constant 0 : index
    %14 = vector.load %arg5[%c0_8, %c0_9] : memref<208x128xbf16, #tpu.memory_space<vmem>>, vector<208x128xbf16>
    tpu.vector_store %arg5[%c0_8, %c0_9], %13 {strides = array<i32>} : memref<208x128xbf16, #tpu.memory_space<vmem>>, vector<208x128xbf16>,
    return
  }
  func.func @transform_0(%arg0: i32) -> (i32, i32) {
    %c0_i32 = arith.constant 0 : i32
    %c0_i32_0 = arith.constant 0 : i32
    return %arg0, %c0_i32 : i32, i32
  }
  func.func @transform_1(%arg0: i32) -> (i32, i32) {
    %c0_i32 = arith.constant 0 : i32
    %c0_i32_0 = arith.constant 0 : i32
    %c0_i32_1 = arith.constant 0 : i32
    return %c0_i32, %c0_i32_0 : i32, i32
  }
  func.func @transform_2(%arg0: i32) -> (i32, i32) {
    %c0_i32 = arith.constant 0 : i32
    %c0_i32_0 = arith.constant 0 : i32
    %c0_i32_1 = arith.constant 0 : i32
    return %c0_i32, %c0_i32_0 : i32, i32
  }
  func.func @transform_3(%arg0: i32) -> (i32, i32) {
    %c0_i32 = arith.constant 0 : i32
    %c0_i32_0 = arith.constant 0 : i32
    %c0_i32_1 = arith.constant 0 : i32
    return %c0_i32, %c0_i32_0 : i32, i32
  }
  func.func @transform_4(%arg0: i32) -> (i32, i32) {
    %c0_i32 = arith.constant 0 : i32
    %c0_i32_0 = arith.constant 0 : i32
    return %arg0, %c0_i32 : i32, i32
  }
}

</mosaic_0001>

<llo_original>
// kernel: generator_forward.4
$region0: #{generator_forward.4}
  #allocation0 [shape = 'u32[]', space=smem, size = 0x4, offset = 0x4, fixed_abs, tag = 'smem constant byte address 0x4 - core index']
  #allocation1 [shape = 'u32[144,128]{1,0:T(1,128)}', space=vmem, size = 0x12000, scoped, tag = 'internal scratch']
  %s0 = inlined_call_operand.hbm [shape: f32[2,96], index: 0, kind: input, shape index: {}]
  %s1 = inlined_call_operand.hbm [shape: bf16[96,1024], index: 1, kind: input, shape index: {}]
  %s2 = inlined_call_operand.hbm [shape: f32[1,1024], index: 2, kind: input, shape index: {}]
  %s3 = inlined_call_operand.hbm [shape: f32[1,1024], index: 3, kind: input, shape index: {}]
  %s4 = inlined_call_operand.hbm [shape: f32[1,1024], index: 4, kind: input, shape index: {}]
  %s5 = inlined_call_operand.vmem [shape: bf16[2,1024], index: 5, kind: output, shape index: {}]
  %s6 = sld [smem:[#allocation0]]
  $region73: #{generator_forward.4} parent=0
    _
  %s8 = ssub.s32 1, %s6
  %s9 = scalar_select 0, %s8, %s6
  $region1: #{generator_forward.4} parent=0
    #allocation2 [shape = 'u8[1024]{0}', space=vmem, size = 0x400, scoped, tag = 'input window, operand 0, single buffered']
    #allocation3 [shape = 's32[2]{0}', space=sflag, size = 0x8, scoped, tag = 'scoped memory for generator_forward.4']
    #allocation4 [shape = 'u8[196608]{0}', space=vmem, size = 0x30000, scoped, tag = 'input window, operand 1']
    #allocation5 [shape = 's32[2]{0}', space=sflag, size = 0x8, scoped, tag = 'scoped memory for generator_forward.4']
    #allocation6 [shape = 'u8[4096]{0}', space=vmem, size = 0x1000, scoped, tag = 'input window, operand 2']
    #allocation7 [shape = 'u8[4096]{0}', space=vmem, size = 0x1000, scoped, tag = 'input window, operand 3']
    #allocation8 [shape = 's32[2]{0}', space=sflag, size = 0x8, scoped, tag = 'scoped memory for generator_forward.4']
    #allocation9 [shape = 'u8[4096]{0}', space=vmem, size = 0x1000, scoped, tag = 'input window, operand 4']
    %10 = vsyncpa [#allocation3], 0
    %11 = vsyncpa [#allocation5], 0
    %s12 = scalar_lea.sflag [#allocation5], 1
    %13 = vsyncpa %s12, 0
    %14 = vsyncpa [#allocation8], 0
    %s15 = scalar_lea.sflag [#allocation8], 1
    %16 = vsyncpa %s15, 0
    loop: start=0, step=1, limit=4
    $region2: #{generator_forward.4} parent=1 // loop_pre_header
      _
    $region3: #{generator_forward.4} parent=1 // loop_header
      %s18 = sphi 0, %s22
      %p19 = scmp.ge.s32.totalorder %s18, 4
      %s26 = sphi 0, %s26
      %s28 = sphi 0, %s26
      %s29 = sphi 0, %s28
      %s43 = sphi 0, %s29
      %s49 = sphi 0, %s51
      %s52 = sphi 0, %s49
      %s53 = sphi 0, %s52
      %s69 = sphi 0, %s53
      %s75 = sphi 0, %s77
      %s78 = sphi 0, %s75
      %s79 = sphi 0, %s78
      %s95 = sphi 0, %s79
      %s101 = sphi 0, %s103
      %s104 = sphi 0, %s101
      %s105 = sphi 0, %s104
      %s121 = sphi 0, %s105
      %s127 = sphi 0, %s129
      %s130 = sphi 0, %s127
      %s131 = sphi 0, %s130
      %s147 = sphi 0, %s131
      %s153 = sphi 0, %s155
      %s156 = sphi 0, %s153
      %s157 = sphi 0, %s156
      %s173 = sphi 0, %s157
    $region4: #{generator_forward.4} parent=1 // loop_header_branch
      %21 = sbr.rel (%p19) target = $region8
    $region5: #{generator_forward.4} parent=1 // loop_body
      %s23 = ssub.s32 %s18, 1
      %s24 = ssub.s32 %s18, 2
      %s25 = sadd.s32 %s18, 1
      %s27 = sadd.s32 %s26, 1
      %p30 = scmp.eq.s32.totalorder %s18, 1
      %p31 = scmp.ne.s32.totalorder %s26, %s28
      %p32 = scmp.eq.s32.totalorder %s18, 0
      %p33 = por %p31, %p32
      %p34 = scmp.ne.s32.totalorder %s26, %s28
      %p35 = scmp.eq.s32.totalorder %s23, 1
      %p36 = por %p34, %p35
      %p37 = scmp.ne.s32.totalorder %s28, %s29
      %p38 = scmp.eq.s32.totalorder %s23, 0
      %p39 = por %p37, %p38
      %p40 = scmp.ne.s32.totalorder %s28, %s29
      %p41 = scmp.eq.s32.totalorder %s24, 1
      %p42 = por %p40, %p41
      %p44 = scmp.ne.s32.totalorder %s29, %s43
      %p45 = scmp.eq.s32.totalorder %s24, 0
      %p46 = por %p44, %p45
      %s47 = ssub.s32 %s18, %s25
      %p48 = scmp.eq.s32.totalorder %s47, 0
      %s50 = sadd.s32 %s49, 1
      %s51 = scalar_select %p48, %s49, %s50
      %p54 = pneg %p48
      %p55 = scmp.eq.s32.totalorder %s18, 1
      %p56 = por %p54, %p55
      %p57 = scmp.ne.s32.totalorder %s49, %s52
      %p58 = scmp.eq.s32.totalorder %s18, 0
      %p59 = por %p57, %p58
      %p60 = scmp.ne.s32.totalorder %s49, %s52
      %p61 = scmp.eq.s32.totalorder %s23, 1
      %p62 = por %p60, %p61
      %p63 = scmp.ne.s32.totalorder %s52, %s53
      %p64 = scmp.eq.s32.totalorder %s23, 0
      %p65 = por %p63, %p64
      %p66 = scmp.ne.s32.totalorder %s52, %s53
      %p67 = scmp.eq.s32.totalorder %s24, 1
      %p68 = por %p66, %p67
      %p70 = scmp.ne.s32.totalorder %s53, %s69
      %p71 = scmp.eq.s32.totalorder %s24, 0
      %p72 = por %p70, %p71
      %s73 = ssub.s32 %s18, %s25
      %p74 = scmp.eq.s32.totalorder %s73, 0
      %s76 = sadd.s32 %s75, 1
      %s77 = scalar_select %p74, %s75, %s76
      %p80 = pneg %p74
      %p81 = scmp.eq.s32.totalorder %s18, 1
      %p82 = por %p80, %p81
      %p83 = scmp.ne.s32.totalorder %s75, %s78
      %p84 = scmp.eq.s32.totalorder %s18, 0
      %p85 = por %p83, %p84
      %p86 = scmp.ne.s32.totalorder %s75, %s78
      %p87 = scmp.eq.s32.totalorder %s23, 1
      %p88 = por %p86, %p87
      %p89 = scmp.ne.s32.totalorder %s78, %s79
      %p90 = scmp.eq.s32.totalorder %s23, 0
      %p91 = por %p89, %p90
      %p92 = scmp.ne.s32.totalorder %s78, %s79
      %p93 = scmp.eq.s32.totalorder %s24, 1
      %p94 = por %p92, %p93
      %p96 = scmp.ne.s32.totalorder %s79, %s95
      %p97 = scmp.eq.s32.totalorder %s24, 0
      %p98 = por %p96, %p97
      %s99 = ssub.s32 %s18, %s25
      %p100 = scmp.eq.s32.totalorder %s99, 0
      %s102 = sadd.s32 %s101, 1
      %s103 = scalar_select %p100, %s101, %s102
      %p106 = pneg %p100
      %p107 = scmp.eq.s32.totalorder %s18, 1
      %p108 = por %p106, %p107
      %p109 = scmp.ne.s32.totalorder %s101, %s104
      %p110 = scmp.eq.s32.totalorder %s18, 0
      %p111 = por %p109, %p110
      %p112 = scmp.ne.s32.totalorder %s101, %s104
      %p113 = scmp.eq.s32.totalorder %s23, 1
      %p114 = por %p112, %p113
      %p115 = scmp.ne.s32.totalorder %s104, %s105
      %p116 = scmp.eq.s32.totalorder %s23, 0
      %p117 = por %p115, %p116
      %p118 = scmp.ne.s32.totalorder %s104, %s105
      %p119 = scmp.eq.s32.totalorder %s24, 1
      %p120 = por %p118, %p119
      %p122 = scmp.ne.s32.totalorder %s105, %s121
      %p123 = scmp.eq.s32.totalorder %s24, 0
      %p124 = por %p122, %p123
      %s125 = ssub.s32 %s18, %s25
      %p126 = scmp.eq.s32.totalorder %s125, 0
      %s128 = sadd.s32 %s127, 1
      %s129 = scalar_select %p126, %s127, %s128
      %p132 = pneg %p126
      %p133 = scmp.eq.s32.totalorder %s18, 1
      %p134 = por %p132, %p133
      %p135 = scmp.ne.s32.totalorder %s127, %s130
      %p136 = scmp.eq.s32.totalorder %s18, 0
      %p137 = por %p135, %p136
      %p138 = scmp.ne.s32.totalorder %s127, %s130
      %p139 = scmp.eq.s32.totalorder %s23, 1
      %p140 = por %p138, %p139
      %p141 = scmp.ne.s32.totalorder %s130, %s131
      %p142 = scmp.eq.s32.totalorder %s23, 0
      %p143 = por %p141, %p142
      %p144 = scmp.ne.s32.totalorder %s130, %s131
      %p145 = scmp.eq.s32.totalorder %s24, 1
      %p146 = por %p144, %p145
      %p148 = scmp.ne.s32.totalorder %s131, %s147
      %p149 = scmp.eq.s32.totalorder %s24, 0
      %p150 = por %p148, %p149
      %s151 = ssub.s32 %s18, %s25
      %p152 = scmp.eq.s32.totalorder %s151, 0
      %s154 = sadd.s32 %s153, 1
      %s155 = scalar_select %p152, %s153, %s154
      %p158 = pneg %p152
      %p159 = scmp.eq.s32.totalorder %s18, 1
      %p160 = por %p158, %p159
      %p161 = scmp.ne.s32.totalorder %s153, %s156
      %p162 = scmp.eq.s32.totalorder %s18, 0
      %p163 = por %p161, %p162
      %p164 = scmp.ne.s32.totalorder %s153, %s156
      %p165 = scmp.eq.s32.totalorder %s23, 1
      %p166 = por %p164, %p165
      %p167 = scmp.ne.s32.totalorder %s156, %s157
      %p168 = scmp.eq.s32.totalorder %s23, 0
      %p169 = por %p167, %p168
      %p170 = scmp.ne.s32.totalorder %s156, %s157
      %p171 = scmp.eq.s32.totalorder %s24, 1
      %p172 = por %p170, %p171
      %p174 = scmp.ne.s32.totalorder %s157, %s173
      %p175 = scmp.eq.s32.totalorder %s24, 0
      %p176 = por %p174, %p175
      %p177 = scmp.le.s32.totalorder 1, %s18
      %p178 = scmp.lt.s32.totalorder %s18, 3
      %p179 = pnand %p177, %p178
      %p180 = pneg %p179
      // Predicated region
      $region9: #{generator_forward.4} parent=5 // pred_check
        _
      $region10: #{generator_forward.4} parent=5 // pred_check_branch
        %182 = sbr.rel (%p179) target = $region12
      $region11: #{generator_forward.4} parent=5 // pred_region
        %s183 = ssub.s32 %s18, 1
        // Predicated region
        $region13: #{generator_forward.4} parent=11 // pred_check
          %p184 = pneg %p39
        $region14: #{generator_forward.4} parent=11 // pred_check_branch
          %186 = sbr.rel (%p184) target = $region16
        $region15: #{generator_forward.4} parent=11 // pred_region
          %s188 = ssub.s32 32, 32
          %189 = vsyncadd [#allocation3], %s188
          %s191 = sshll.u32 [#allocation2], 4
          %s192 = int_to_ptr.vmem [resolvable:$true] %s191
          %194 = dma.hbm_to_vmem [thread:$0]  %s0, 32, %s192, [#allocation3]
        $region16: #{generator_forward.4} parent=11 // pred_fallthru
          _
      $region12: #{generator_forward.4} parent=5 // pred_fallthru
        _
      %p195 = scmp.lt.s32.totalorder %s18, 2
      // Predicated region
      $region17: #{generator_forward.4} parent=5 // pred_check
        %p196 = pneg %p195
      $region18: #{generator_forward.4} parent=5 // pred_check_branch
        %198 = sbr.rel (%p196) target = $region20
      $region19: #{generator_forward.4} parent=5 // pred_region
        // Predicated region
        $region21: #{generator_forward.4} parent=19 // pred_check
          %p199 = pneg %p59
        $region22: #{generator_forward.4} parent=19 // pred_check_branch
          %201 = sbr.rel (%p199) target = $region24
        $region23: #{generator_forward.4} parent=19 // pred_region
          %s202 = sand.u32 %s18, 1
          %s203 = scalar_lea.sflag [#allocation5], %s202
          %s204 = sand.u32 %s49, 1
          %s205 = smul.addr %s204, 192
          %s206 = scalar_lea.vmem [#allocation4], %s205
          %s207 = smul.u32 4, %s18
          %s209 = ssub.s32 3072, 3072
          %210 = vsyncadd %s203, %s209
          %s211 = smul.addr %s207, 64
          %s212 = scalar_lea.hbm %s1, %s211
          %s213 = sshll.u32 %s206, 4
          %s214 = int_to_ptr.vmem [resolvable:$true] %s213
          %219 = dma.hbm_to_vmem [thread:$0]  %s212, 3072, %s214, %s203, 512, 256, 16
        $region24: #{generator_forward.4} parent=19 // pred_fallthru
          _
        // Predicated region
        $region25: #{generator_forward.4} parent=19 // pred_check
          %p220 = pneg %p85
        $region26: #{generator_forward.4} parent=19 // pred_check_branch
          %222 = sbr.rel (%p220) target = $region28
        $region27: #{generator_forward.4} parent=19 // pred_region
          %s223 = sand.u32 %s18, 1
          %s224 = scalar_lea.sflag [#allocation5], %s223
          %s225 = sand.u32 %s75, 1
          %s226 = smul.addr %s225, 4
          %s227 = scalar_lea.vmem [#allocation6], %s226
          %s228 = smul.u32 4, %s18
          %s230 = ssub.s32 64, 64
          %231 = vsyncadd %s224, %s230
          %s232 = smul.addr %s228, 16
          %s233 = scalar_lea.hbm %s2, %s232
          %s235 = sshll.u32 %s227, 4
          %s236 = int_to_ptr.vmem [resolvable:$true] %s235
          %238 = dma.hbm_to_vmem [thread:$0]  %s233, 64, %s236, %s224
        $region28: #{generator_forward.4} parent=19 // pred_fallthru
          _
        // Predicated region
        $region29: #{generator_forward.4} parent=19 // pred_check
          %p239 = pneg %p111
        $region30: #{generator_forward.4} parent=19 // pred_check_branch
          %241 = sbr.rel (%p239) target = $region32
        $region31: #{generator_forward.4} parent=19 // pred_region
          %s242 = sand.u32 %s18, 1
          %s243 = scalar_lea.sflag [#allocation8], %s242
          %s244 = sand.u32 %s101, 1
          %s245 = smul.addr %s244, 4
          %s246 = scalar_lea.vmem [#allocation7], %s245
          %s247 = smul.u32 4, %s18
          %s249 = ssub.s32 64, 64
          %250 = vsyncadd %s243, %s249
          %s251 = smul.addr %s247, 16
          %s252 = scalar_lea.hbm %s3, %s251
          %s254 = sshll.u32 %s246, 4
          %s255 = int_to_ptr.vmem [resolvable:$true] %s254
          %257 = dma.hbm_to_vmem [thread:$0]  %s252, 64, %s255, %s243
        $region32: #{generator_forward.4} parent=19 // pred_fallthru
          _
        // Predicated region
        $region33: #{generator_forward.4} parent=19 // pred_check
          %p258 = pneg %p137
        $region34: #{generator_forward.4} parent=19 // pred_check_branch
          %260 = sbr.rel (%p258) target = $region36
        $region35: #{generator_forward.4} parent=19 // pred_region
          %s261 = sand.u32 %s18, 1
          %s262 = scalar_lea.sflag [#allocation8], %s261
          %s263 = sand.u32 %s127, 1
          %s264 = smul.addr %s263, 4
          %s265 = scalar_lea.vmem [#allocation9], %s264
          %s266 = smul.u32 4, %s18
          %s268 = ssub.s32 64, 64
          %269 = vsyncadd %s262, %s268
          %s270 = smul.addr %s266, 16
          %s271 = scalar_lea.hbm %s4, %s270
          %s273 = sshll.u32 %s265, 4
          %s274 = int_to_ptr.vmem [resolvable:$true] %s273
          %276 = dma.hbm_to_vmem [thread:$0]  %s271, 64, %s274, %s262
        $region36: #{generator_forward.4} parent=19 // pred_fallthru
          _
      $region20: #{generator_forward.4} parent=5 // pred_fallthru
        _
      %p277 = scmp.le.s32.totalorder 1, %s18
      %p278 = scmp.lt.s32.totalorder %s18, 3
      %p279 = pnand %p277, %p278
      %p280 = pneg %p279
      // Predicated region
      $region37: #{generator_forward.4} parent=5 // pred_check
        _
      $region38: #{generator_forward.4} parent=5 // pred_check_branch
        %282 = sbr.rel (%p279) target = $region40
      $region39: #{generator_forward.4} parent=5 // pred_region
        %s283 = ssub.s32 %s18, 1
        // Predicated region
        $region41: #{generator_forward.4} parent=39 // pred_check
          %p284 = pneg %p39
        $region42: #{generator_forward.4} parent=39 // pred_check_branch
          %286 = sbr.rel (%p284) target = $region44
        $region43: #{generator_forward.4} parent=39 // pred_region
          %287 = dma.done [#allocation3], 32
        $region44: #{generator_forward.4} parent=39 // pred_fallthru
          _
        %s288 = sand.u32 %s23, 1
        %s289 = scalar_lea.sflag [#allocation5], %s288
        %s290 = sand.u32 %s52, 1
        %s291 = smul.addr %s290, 192
        %s292 = scalar_lea.vmem [#allocation4], %s291
        // Predicated region
        $region45: #{generator_forward.4} parent=39 // pred_check
          %p293 = pneg %p65
        $region46: #{generator_forward.4} parent=39 // pred_check_branch
          %295 = sbr.rel (%p293) target = $region48
        $region47: #{generator_forward.4} parent=39 // pred_region
          %296 = dma.done %s289, 3072
        $region48: #{generator_forward.4} parent=39 // pred_fallthru
          _
        %s297 = sand.u32 %s23, 1
        %s298 = scalar_lea.sflag [#allocation5], %s297
        %s299 = sand.u32 %s78, 1
        %s300 = smul.addr %s299, 4
        %s301 = scalar_lea.vmem [#allocation6], %s300
        // Predicated region
        $region49: #{generator_forward.4} parent=39 // pred_check
          %p302 = pneg %p91
        $region50: #{generator_forward.4} parent=39 // pred_check_branch
          %304 = sbr.rel (%p302) target = $region52
        $region51: #{generator_forward.4} parent=39 // pred_region
          %305 = dma.done %s298, 64
        $region52: #{generator_forward.4} parent=39 // pred_fallthru
          _
        %s306 = sand.u32 %s23, 1
        %s307 = scalar_lea.sflag [#allocation8], %s306
        %s308 = sand.u32 %s104, 1
        %s309 = smul.addr %s308, 4
        %s310 = scalar_lea.vmem [#allocation7], %s309
        // Predicated region
        $region53: #{generator_forward.4} parent=39 // pred_check
          %p311 = pneg %p117
        $region54: #{generator_forward.4} parent=39 // pred_check_branch
          %313 = sbr.rel (%p311) target = $region56
        $region55: #{generator_forward.4} parent=39 // pred_region
          %314 = dma.done %s307, 64
        $region56: #{generator_forward.4} parent=39 // pred_fallthru
          _
        %s315 = sand.u32 %s23, 1
        %s316 = scalar_lea.sflag [#allocation8], %s315
        %s317 = sand.u32 %s130, 1
        %s318 = smul.addr %s317, 4
        %s319 = scalar_lea.vmem [#allocation9], %s318
        // Predicated region
        $region57: #{generator_forward.4} parent=39 // pred_check
          %p320 = pneg %p143
        $region58: #{generator_forward.4} parent=39 // pred_check_branch
          %322 = sbr.rel (%p320) target = $region60
        $region59: #{generator_forward.4} parent=39 // pred_region
          %323 = dma.done %s316, 64
        $region60: #{generator_forward.4} parent=39 // pred_fallthru
          _
        %p324 = pneg %p39
        %p325 = pneg %p36
        %s326 = sand.u32 %s23, 1
        %s327 = scalar_lea.sflag [#allocation5], %s326
        %s328 = sand.u32 %s52, 1
        %s329 = smul.addr %s328, 192
        %s330 = scalar_lea.vmem [#allocation4], %s329
        %p331 = pneg %p65
        %p332 = pneg %p62
        %s333 = sand.u32 %s23, 1
        %s334 = scalar_lea.sflag [#allocation5], %s333
        %s335 = sand.u32 %s78, 1
        %s336 = smul.addr %s335, 4
        %s337 = scalar_lea.vmem [#allocation6], %s336
        %p338 = pneg %p91
        %p339 = pneg %p88
        %s340 = sand.u32 %s23, 1
        %s341 = scalar_lea.sflag [#allocation8], %s340
        %s342 = sand.u32 %s104, 1
        %s343 = smul.addr %s342, 4
        %s344 = scalar_lea.vmem [#allocation7], %s343
        %p345 = pneg %p117
        %p346 = pneg %p114
        %s347 = sand.u32 %s23, 1
        %s348 = scalar_lea.sflag [#allocation8], %s347
        %s349 = sand.u32 %s130, 1
        %s350 = smul.addr %s349, 4
        %s351 = scalar_lea.vmem [#allocation9], %s350
        %p352 = pneg %p143
        %p353 = pneg %p140
        %p354 = pneg %p169
        %p355 = pneg %p166
        %s356 = smul.u32 4, %s23
        %p357 = scmp.lt.s32.totalorder %s356, 7
        %s358 = scalar_select %p357, %s356, 7
        %s359 = scalar_lea.vmem %s5, %s358
        %s360 = smul.u32 4, %s23
        %s361 = smul.u32 4, %s23
        %s362 = smul.u32 4, %s23
        %s363 = smul.u32 4, %s23
        %s364 = smul.u32 4, %s23
        %p365 = scmp.lt.s32.totalorder %s364, 7
        %s366 = scalar_select %p365, %s364, 7
        %s367 = scalar_lea.vmem %s5, %s366
        %s368 = smul.u32 4, %s23
        %v370 = vld [vmem:[#allocation2] sm:$0x3]
        %v371 = vpack.c.bf16 %v370, %v370
        %v372 = vld [vmem:[%s292] sm:$0xff]
        %v373 = vld [vmem:[%s292 + $0x8] sm:$0xff]
        %v374 = vld [vmem:[%s292 + $0x10] sm:$0xff]
        %v375 = vld [vmem:[%s292 + $0x18] sm:$0xff]
        %v376 = vld [vmem:[%s292 + $0x20] sm:$0xff]
        %v377 = vld [vmem:[%s292 + $0x28] sm:$0xff]
        %v378 = vld [vmem:[%s292 + $0x30] sm:$0xff]
        %v379 = vld [vmem:[%s292 + $0x38] sm:$0xff]
        %v380 = vld [vmem:[%s292 + $0x40] sm:$0xff]
        %v381 = vld [vmem:[%s292 + $0x48] sm:$0xff]
        %v382 = vld [vmem:[%s292 + $0x50] sm:$0xff]
        %v383 = vld [vmem:[%s292 + $0x58] sm:$0xff]
        %v384 = vld [vmem:[%s292 + $0x60] sm:$0xff]
        %v385 = vld [vmem:[%s292 + $0x68] sm:$0xff]
        %v386 = vld [vmem:[%s292 + $0x70] sm:$0xff]
        %v387 = vld [vmem:[%s292 + $0x78] sm:$0xff]
        %v388 = vld [vmem:[%s292 + $0x80] sm:$0xff]
        %v389 = vld [vmem:[%s292 + $0x88] sm:$0xff]
        %v390 = vld [vmem:[%s292 + $0x90] sm:$0xff]
        %v391 = vld [vmem:[%s292 + $0x98] sm:$0xff]
        %v392 = vld [vmem:[%s292 + $0xa0] sm:$0xff]
        %v393 = vld [vmem:[%s292 + $0xa8] sm:$0xff]
        %v394 = vld [vmem:[%s292 + $0xb0] sm:$0xff]
        %v395 = vld [vmem:[%s292 + $0xb8] sm:$0xff]
        %v396 = vld [vmem:[%s301] sm:$0xf]
        %v398 = vlaneseq
        %v399 = vshrl.u32 %v398, 7
        %v400 = vsub.s32 0, %v399
        %v401 = vrot.slane %v396, %v400
        %v402 = vlaneseq
        %v403 = vshrl.u32 %v402, 7
        %v404 = vsub.s32 1, %v403
        %v405 = vrot.slane %v396, %v404
        %v406 = vlaneseq
        %v407 = vshrl.u32 %v406, 7
        %v408 = vsub.s32 2, %v407
        %v409 = vrot.slane %v396, %v408
        %v410 = vlaneseq
        %v411 = vshrl.u32 %v410, 7
        %v412 = vsub.s32 3, %v411
        %v413 = vrot.slane %v396, %v412
        %v442 = vunpack.c.l.b16 %v372
        %v443 = vunpack.c.h.b16 %v372
        %v444 = vunpack.c.l.b16 %v373
        %v445 = vunpack.c.h.b16 %v373
        %v446 = vunpack.c.l.b16 %v374
        %v447 = vunpack.c.h.b16 %v374
        %v448 = vunpack.c.l.b16 %v375
        %v449 = vunpack.c.h.b16 %v375
        %v450 = vunpack.c.l.b16 %v376
        %v451 = vunpack.c.h.b16 %v376
        %v452 = vunpack.c.l.b16 %v377
        %v453 = vunpack.c.h.b16 %v377
        %v454 = vunpack.c.l.b16 %v378
        %v455 = vunpack.c.h.b16 %v378
        %v456 = vunpack.c.l.b16 %v379
        %v457 = vunpack.c.h.b16 %v379
        %v458 = vunpack.c.l.b16 %v380
        %v459 = vunpack.c.h.b16 %v380
        %v460 = vunpack.c.l.b16 %v381
        %v461 = vunpack.c.h.b16 %v381
        %v462 = vunpack.c.l.b16 %v382
        %v463 = vunpack.c.h.b16 %v382
        %v464 = vunpack.c.l.b16 %v383
        %v465 = vunpack.c.h.b16 %v383
        %v466 = vunpack.c.l.b16 %v384
        %v467 = vunpack.c.h.b16 %v384
        %v468 = vunpack.c.l.b16 %v385
        %v469 = vunpack.c.h.b16 %v385
        %v470 = vunpack.c.l.b16 %v386
        %v471 = vunpack.c.h.b16 %v386
        %v472 = vunpack.c.l.b16 %v387
        %v473 = vunpack.c.h.b16 %v387
        %v474 = vunpack.c.l.b16 %v388
        %v475 = vunpack.c.h.b16 %v388
        %v476 = vunpack.c.l.b16 %v389
        %v477 = vunpack.c.h.b16 %v389
        %v478 = vunpack.c.l.b16 %v390
        %v479 = vunpack.c.h.b16 %v390
        %v480 = vunpack.c.l.b16 %v391
        %v481 = vunpack.c.h.b16 %v391
        %v482 = vunpack.c.l.b16 %v392
        %v483 = vunpack.c.h.b16 %v392
        %v484 = vunpack.c.l.b16 %v393
        %v485 = vunpack.c.h.b16 %v393
        %v486 = vunpack.c.l.b16 %v394
        %v487 = vunpack.c.h.b16 %v394
        %v488 = vunpack.c.l.b16 %v395
        %v489 = vunpack.c.h.b16 %v395
        %v490 = vpack.c.b16 %v446, %v442
        %v491 = vpack.c.b16 %v447, %v443
        %v492 = vpack.c.b16 %v448, %v444
        %v493 = vpack.c.b16 %v449, %v445
        %v494 = vpack.c.b16 %v454, %v450
        %v495 = vpack.c.b16 %v455, %v451
        %v496 = vpack.c.b16 %v456, %v452
        %v497 = vpack.c.b16 %v457, %v453
        %v498 = vpack.c.b16 %v462, %v458
        %v499 = vpack.c.b16 %v463, %v459
        %v500 = vpack.c.b16 %v464, %v460
        %v501 = vpack.c.b16 %v465, %v461
        %v502 = vpack.c.b16 %v470, %v466
        %v503 = vpack.c.b16 %v471, %v467
        %v504 = vpack.c.b16 %v472, %v468
        %v505 = vpack.c.b16 %v473, %v469
        %v506 = vpack.c.b16 %v478, %v474
        %v507 = vpack.c.b16 %v479, %v475
        %v508 = vpack.c.b16 %v480, %v476
        %v509 = vpack.c.b16 %v481, %v477
        %v510 = vpack.c.b16 %v486, %v482
        %v511 = vpack.c.b16 %v487, %v483
        %v512 = vpack.c.b16 %v488, %v484
        %v513 = vpack.c.b16 %v489, %v485
        %vm538 = vcmask 785408
        %v540 = vsel %vm538, %v371, 0
        %542 = vmatprep.subr.bf16.mxu0 %v491
        %543 = vmatpush1.bf16.msra.mxu0 %v490
        %544 = vmatprep.subr.bf16.mxu0 %v495
        %545 = vmatpush1.bf16.msra.mxu0 %v494
        %546 = vmatprep.subr.bf16.mxu0 %v499
        %547 = vmatpush1.bf16.msra.mxu0 %v498
        %548 = vmatprep.subr.bf16.mxu0 %v503
        %549 = vmatpush1.bf16.msra.mxu0 %v502
        %550 = vmatprep.subr.bf16.mxu0 %v507
        %551 = vmatpush1.bf16.msra.mxu0 %v506
        %552 = vmatprep.subr.bf16.mxu0 %v511
        %553 = vmatpush1.bf16.msra.mxu0 %v510
        %554 = vmatprep.subr.bf16.mxu0 0
        %555 = vmatpush1.bf16.msra.mxu0 0
        %556 = vmatprep.subr.bf16.mxu0 0
        %557 = vmatpush1.bf16.msra.mxu0 0
        %558 = vmatprep.subr.bf16.mxu0 0
        %559 = vmatpush1.bf16.msra.mxu0 0
        %560 = vmatprep.subr.bf16.mxu0 0
        %561 = vmatpush1.bf16.msra.mxu0 0
        %562 = vmatprep.subr.bf16.mxu0 0
        %563 = vmatpush1.bf16.msra.mxu0 0
        %564 = vmatprep.subr.bf16.mxu0 0
        %565 = vmatpush1.bf16.msra.mxu0 0
        %566 = vmatprep.subr.bf16.mxu0 0
        %567 = vmatpush1.bf16.msra.mxu0 0
        %568 = vmatprep.subr.bf16.mxu0 0
        %569 = vmatpush1.bf16.msra.mxu0 0
        %570 = vmatprep.subr.bf16.mxu0 0
        %571 = vmatpush1.bf16.msra.mxu0 0
        %572 = vmatprep.subr.bf16.mxu0 0
        %573 = vmatpush1.bf16.msra.mxu0 0
        %574 = vmatprep.mubr.bf16.mxu0 0
        %575 = vmatmul.mubr.bf16.gmra.mrb[0].mxu0 %v540
        %v576 = vpop.f32.mrb[0].mxu0
        %v577 = vadd.f32 %v401, %v576
        %v578 = vpop.f32.mrb[0].mxu0
        %v579 = vadd.f32 %v405, %v578
        %v580 = vpop.f32.mrb[0].mxu0
        %v581 = vpop.f32.mrb[0].mxu0
        %582 = vdwg.mxu0
        %583 = vmatprep.subr.bf16.mxu0 %v493
        %584 = vmatpush1.bf16.msra.mxu0 %v492
        %585 = vmatprep.subr.bf16.mxu0 %v497
        %586 = vmatpush1.bf16.msra.mxu0 %v496
        %587 = vmatprep.subr.bf16.mxu0 %v501
        %588 = vmatpush1.bf16.msra.mxu0 %v500
        %589 = vmatprep.subr.bf16.mxu0 %v505
        %590 = vmatpush1.bf16.msra.mxu0 %v504
        %591 = vmatprep.subr.bf16.mxu0 %v509
        %592 = vmatpush1.bf16.msra.mxu0 %v508
        %593 = vmatprep.subr.bf16.mxu0 %v513
        %594 = vmatpush1.bf16.msra.mxu0 %v512
        %595 = vmatprep.subr.bf16.mxu0 0
        %596 = vmatpush1.bf16.msra.mxu0 0
        %597 = vmatprep.subr.bf16.mxu0 0
        %598 = vmatpush1.bf16.msra.mxu0 0
        %599 = vmatprep.subr.bf16.mxu0 0
        %600 = vmatpush1.bf16.msra.mxu0 0
        %601 = vmatprep.subr.bf16.mxu0 0
        %602 = vmatpush1.bf16.msra.mxu0 0
        %603 = vmatprep.subr.bf16.mxu0 0
        %604 = vmatpush1.bf16.msra.mxu0 0
        %605 = vmatprep.subr.bf16.mxu0 0
        %606 = vmatpush1.bf16.msra.mxu0 0
        %607 = vmatprep.subr.bf16.mxu0 0
        %608 = vmatpush1.bf16.msra.mxu0 0
        %609 = vmatprep.subr.bf16.mxu0 0
        %610 = vmatpush1.bf16.msra.mxu0 0
        %611 = vmatprep.subr.bf16.mxu0 0
        %612 = vmatpush1.bf16.msra.mxu0 0
        %613 = vmatprep.subr.bf16.mxu0 0
        %614 = vmatpush1.bf16.msra.mxu0 0
        %615 = vmatprep.mubr.bf16.mxu0 0
        %616 = vmatmul.mubr.bf16.gmra.mrb[0].mxu0 %v540
        %v617 = vpop.f32.mrb[0].mxu0
        %v618 = vadd.f32 %v409, %v617
        %v619 = vpop.f32.mrb[0].mxu0
        %v620 = vadd.f32 %v413, %v619
        %v621 = vpop.f32.mrb[0].mxu0
        %v622 = vpop.f32.mrb[0].mxu0
        %623 = vdwg.mxu0
        %v624 = vmax.f32 %v577, 0.0
        %v625 = vmax.f32 %v579, 0.0
        %v626 = vmax.f32 %v618, 0.0
        %v627 = vmax.f32 %v620, 0.0
        %vm628 = vcmask 1041408
        %v629 = vsel %vm628, %v624, 0.0
        %v630 = vrot.slane %v629, 4
        %v631 = vadd.f32 %v629, %v630
        %v632 = vrot.slane %v631, 2
        %v633 = vadd.f32 %v631, %v632
        %v634 = vrot.slane %v633, 1
        %v635 = vadd.f32 %v633, %v634
        %v636 = vsel %vm628, %v625, 0.0
        %v637 = vrot.slane %v636, 4
        %v638 = vadd.f32 %v636, %v637
        %v639 = vrot.slane %v638, 2
        %v640 = vadd.f32 %v638, %v639
        %v641 = vrot.slane %v640, 1
        %v642 = vadd.f32 %v640, %v641
        %v643 = vsel %vm628, %v626, 0.0
        %v644 = vrot.slane %v643, 4
        %v645 = vadd.f32 %v643, %v644
        %v646 = vrot.slane %v645, 2
        %v647 = vadd.f32 %v645, %v646
        %v648 = vrot.slane %v647, 1
        %v649 = vadd.f32 %v647, %v648
        %v650 = vsel %vm628, %v627, 0.0
        %v651 = vrot.slane %v650, 4
        %v652 = vadd.f32 %v650, %v651
        %v653 = vrot.slane %v652, 2
        %v654 = vadd.f32 %v652, %v653
        %v655 = vrot.slane %v654, 1
        %v656 = vadd.f32 %v654, %v655
        %v657 = vmul.f32 %v624, %v624
        %v658 = vmul.f32 %v625, %v625
        %v659 = vmul.f32 %v626, %v626
        %v660 = vmul.f32 %v627, %v627
        %v661 = vsel %vm628, %v657, 0.0
        %v662 = vrot.slane %v661, 4
        %v663 = vadd.f32 %v661, %v662
        %v664 = vrot.slane %v663, 2
        %v665 = vadd.f32 %v663, %v664
        %v666 = vrot.slane %v665, 1
        %v667 = vadd.f32 %v665, %v666
        %v668 = vsel %vm628, %v658, 0.0
        %v669 = vrot.slane %v668, 4
        %v670 = vadd.f32 %v668, %v669
        %v671 = vrot.slane %v670, 2
        %v672 = vadd.f32 %v670, %v671
        %v673 = vrot.slane %v672, 1
        %v674 = vadd.f32 %v672, %v673
        %v675 = vsel %vm628, %v659, 0.0
        %v676 = vrot.slane %v675, 4
        %v677 = vadd.f32 %v675, %v676
        %v678 = vrot.slane %v677, 2
        %v679 = vadd.f32 %v677, %v678
        %v680 = vrot.slane %v679, 1
        %v681 = vadd.f32 %v679, %v680
        %v682 = vsel %vm628, %v660, 0.0
        %v683 = vrot.slane %v682, 4
        %v684 = vadd.f32 %v682, %v683
        %v685 = vrot.slane %v684, 2
        %v686 = vadd.f32 %v684, %v685
        %v687 = vrot.slane %v686, 1
        %v688 = vadd.f32 %v686, %v687
        %v689 = vrcp.pop 2.0
        %v690 = vmul.f32 %v635, %v689
        %v691 = vmul.f32 %v642, %v689
        %v692 = vmul.f32 %v649, %v689
        %v693 = vmul.f32 %v656, %v689
        %v694 = vmul.f32 %v667, %v689
        %v695 = vmul.f32 %v674, %v689
        %v696 = vmul.f32 %v681, %v689
        %v697 = vmul.f32 %v688, %v689
        %v698 = vmul.f32 %v690, %v690
        %v699 = vmul.f32 %v691, %v691
        %v700 = vmul.f32 %v692, %v692
        %v701 = vmul.f32 %v693, %v693
        %v702 = vsub.f32 %v694, %v698
        %v703 = vsub.f32 %v695, %v699
        %v704 = vsub.f32 %v696, %v700
        %v705 = vsub.f32 %v697, %v701
        %v706 = vmax.f32 %v702, 0.0
        %v707 = vmax.f32 %v703, 0.0
        %v708 = vmax.f32 %v704, 0.0
        %v709 = vmax.f32 %v705, 0.0
        %v710 = vld [vmem:[%s310] sm:$0xf]
        %v711 = vsub.f32 %v624, %v690
        %v712 = vsub.f32 %v625, %v691
        %v713 = vsub.f32 %v626, %v692
        %v714 = vsub.f32 %v627, %v693
        %v716 = vlaneseq
        %v717 = vshrl.u32 %v716, 7
        %v718 = vsub.s32 0, %v717
        %v719 = vrot.slane %v710, %v718
        %v720 = vlaneseq
        %v721 = vshrl.u32 %v720, 7
        %v722 = vsub.s32 1, %v721
        %v723 = vrot.slane %v710, %v722
        %v724 = vlaneseq
        %v725 = vshrl.u32 %v724, 7
        %v726 = vsub.s32 2, %v725
        %v727 = vrot.slane %v710, %v726
        %v728 = vlaneseq
        %v729 = vshrl.u32 %v728, 7
        %v730 = vsub.s32 3, %v729
        %v731 = vrot.slane %v710, %v730
        %v736 = vmul.f32 %v719, %v711
        %v737 = vmul.f32 %v723, %v712
        %v738 = vmul.f32 %v727, %v713
        %v739 = vmul.f32 %v731, %v714
        %v740 = vadd.f32 %v706, 1e-05
        %v741 = vadd.f32 %v707, 1e-05
        %v742 = vadd.f32 %v708, 1e-05
        %v743 = vadd.f32 %v709, 1e-05
        %v744 = vrsqrt.pop %v740
        %v745 = vrsqrt.pop %v741
        %v746 = vrsqrt.pop %v742
        %v747 = vrsqrt.pop %v743
        %v748 = vmul.f32 %v736, %v744
        %v749 = vmul.f32 %v737, %v745
        %v750 = vmul.f32 %v738, %v746
        %v751 = vmul.f32 %v739, %v747
        %v752 = vld [vmem:[%s319] sm:$0xf]
        %v754 = vlaneseq
        %v755 = vshrl.u32 %v754, 7
        %v756 = vsub.s32 0, %v755
        %v757 = vrot.slane %v752, %v756
        %v758 = vlaneseq
        %v759 = vshrl.u32 %v758, 7
        %v760 = vsub.s32 1, %v759
        %v761 = vrot.slane %v752, %v760
        %v762 = vlaneseq
        %v763 = vshrl.u32 %v762, 7
        %v764 = vsub.s32 2, %v763
        %v765 = vrot.slane %v752, %v764
        %v766 = vlaneseq
        %v767 = vshrl.u32 %v766, 7
        %v768 = vsub.s32 3, %v767
        %v769 = vrot.slane %v752, %v768
        %v774 = vadd.f32 %v748, %v757
        %v775 = vadd.f32 %v749, %v761
        %v776 = vadd.f32 %v750, %v765
        %v777 = vadd.f32 %v751, %v769
        %v778 = vpack.c.bf16 %v774, %v774
        %v779 = vpack.c.bf16 %v775, %v775
        %v780 = vpack.c.bf16 %v776, %v776
        %v781 = vpack.c.bf16 %v777, %v777
        %v786 = vcombine.low %v778, %v779
        %v787 = vcombine.low %v780, %v781
        %v789 = vunpack.c.l.s4 1966171168
        %v790 = vunpack.c.0.s8 %v789
        %v791 = vlaneseq
        %v792 = vshrl.u32 %v791, 7
        %v793 = vsub.s32 %v790, %v792
        %v794 = vrot.slane %v786, %v793
        %v796 = vunpack.c.l.s4 1966171168
        %v797 = vunpack.c.0.s8 %v796
        %v798 = vlaneseq
        %v799 = vshrl.u32 %v798, 7
        %v800 = vsub.s32 %v797, %v799
        %v801 = vrot.slane %v787, %v800
        %v802 = vcombine.low %v794, %v801
        %v804 = vunpack.c.l.s4 1966171168
        %v805 = vunpack.c.0.s8 %v804
        %v806 = vlaneseq
        %v807 = vshrl.u32 %v806, 7
        %v808 = vsub.s32 %v805, %v807
        %v809 = vrot.slane %v802, %v808
        %811 = vst [vmem:[%s367] sm:$0xf] %v809
        %s812 = smul.u32 4, %s23
        %p813 = scmp.lt.s32.totalorder %s812, 7
        %s814 = scalar_select %p813, %s812, 7
        %s815 = scalar_lea.vmem %s5, %s814
        // Predicated region
        $region61: #{generator_forward.4} parent=39 // pred_check
          %p816 = pneg %p166
        $region62: #{generator_forward.4} parent=39 // pred_check_branch
          %818 = sbr.rel (%p816) target = $region64
        $region63: #{generator_forward.4} parent=39 // pred_region
          %s819 = smul.u32 4, %s23
        $region64: #{generator_forward.4} parent=39 // pred_fallthru
          _
      $region40: #{generator_forward.4} parent=5 // pred_fallthru
        _
      %p820 = scmp.le.s32.totalorder 2, %s18
      // Predicated region
      $region65: #{generator_forward.4} parent=5 // pred_check
        %p821 = pneg %p820
      $region66: #{generator_forward.4} parent=5 // pred_check_branch
        %823 = sbr.rel (%p821) target = $region68
      $region67: #{generator_forward.4} parent=5 // pred_region
        %s824 = ssub.s32 %s18, 2
        // Predicated region
        $region69: #{generator_forward.4} parent=67 // pred_check
          %p825 = pneg %p172
        $region70: #{generator_forward.4} parent=67 // pred_check_branch
          %827 = sbr.rel (%p825) target = $region72
        $region71: #{generator_forward.4} parent=67 // pred_region
          %s828 = smul.u32 4, %s24
          %p829 = scmp.lt.s32.totalorder %s828, 7
          %s830 = scalar_select %p829, %s828, 7
          %s831 = scalar_lea.vmem %s5, %s830
        $region72: #{generator_forward.4} parent=67 // pred_fallthru
          _
      $region68: #{generator_forward.4} parent=5 // pred_fallthru
        _
    $region6: #{generator_forward.4} parent=1 // loop_footer
      %s22 = sadd.s32 1, %s18
    $region7: #{generator_forward.4} parent=1 // loop_footer_branch
      %17 = sbr.rel target = $region3
    $region8: #{generator_forward.4} parent=1 // loop_exit
      _
    %832 = vsyncpa [#allocation3], 1
    %s833 = scalar_lea.sflag [#allocation3], 1
    %834 = vsyncpa %s833, 1
    %835 = vsyncpa [#allocation5], 1
    %s836 = scalar_lea.sflag [#allocation5], 1
    %837 = vsyncpa %s836, 1
    %838 = vsyncpa [#allocation8], 1
    %s839 = scalar_lea.sflag [#allocation8], 1
    %840 = vsyncpa %s839, 1

// kernel: generator_forward.6
$region0: #{generator_forward.6}
  #allocation0 [shape = 'u32[]', space=smem, size = 0x4, offset = 0x4, fixed_abs, tag = 'smem constant byte address 0x4 - core index']
  #allocation1 [shape = 'u32[144,128]{1,0:T(1,128)}', space=vmem, size = 0x12000, scoped, tag = 'internal scratch']
  %s0 = inlined_call_operand.vmem [shape: bf16[98,128], index: 0, kind: input, shape index: {}]
  %s1 = inlined_call_operand.vmem [shape: bf16[128,1024], index: 1, kind: input, shape index: {}]
  %s2 = inlined_call_operand.vmem [shape: bf16[98,1024], index: 2, kind: output, shape index: {}]
  %s3 = sld [smem:[#allocation0]]
  $region67: #{generator_forward.6} parent=0
    _
  %s5 = ssub.s32 1, %s3
  %s6 = scalar_select 0, %s5, %s3
  $region1: #{generator_forward.6} parent=0
    #allocation2 [shape = 'u8[262144]{0}', space=vmem, size = 0x40000, scoped, tag = 'output window, operand 0']
    loop: start=0, step=1, limit=4
    $region2: #{generator_forward.6} parent=1 // loop_pre_header
      _
    $region3: #{generator_forward.6} parent=1 // loop_header
      %s8 = sphi 0, %s12
      %p9 = scmp.ge.s32.totalorder %s8, 4
      %s18 = sphi 0, %s20
      %s21 = sphi 0, %s18
      %s22 = sphi 0, %s21
      %s38 = sphi 0, %s22
      %s42 = sphi 0, %s42
      %s44 = sphi 0, %s42
      %s45 = sphi 0, %s44
      %s59 = sphi 0, %s45
      %s65 = sphi 0, %s67
      %s68 = sphi 0, %s65
      %s69 = sphi 0, %s68
      %s85 = sphi 0, %s69
    $region4: #{generator_forward.6} parent=1 // loop_header_branch
      %11 = sbr.rel (%p9) target = $region8
    $region5: #{generator_forward.6} parent=1 // loop_body
      %s13 = ssub.s32 %s8, 1
      %s14 = ssub.s32 %s8, 2
      %s15 = sadd.s32 %s8, 1
      %s16 = ssub.s32 %s8, %s15
      %p17 = scmp.eq.s32.totalorder %s16, 0
      %s19 = sadd.s32 %s18, 1
      %s20 = scalar_select %p17, %s18, %s19
      %p23 = pneg %p17
      %p24 = scmp.eq.s32.totalorder %s8, 1
      %p25 = por %p23, %p24
      %p26 = scmp.ne.s32.totalorder %s18, %s21
      %p27 = scmp.eq.s32.totalorder %s8, 0
      %p28 = por %p26, %p27
      %p29 = scmp.ne.s32.totalorder %s18, %s21
      %p30 = scmp.eq.s32.totalorder %s13, 1
      %p31 = por %p29, %p30
      %p32 = scmp.ne.s32.totalorder %s21, %s22
      %p33 = scmp.eq.s32.totalorder %s13, 0
      %p34 = por %p32, %p33
      %p35 = scmp.ne.s32.totalorder %s21, %s22
      %p36 = scmp.eq.s32.totalorder %s14, 1
      %p37 = por %p35, %p36
      %p39 = scmp.ne.s32.totalorder %s22, %s38
      %p40 = scmp.eq.s32.totalorder %s14, 0
      %p41 = por %p39, %p40
      %s43 = sadd.s32 %s42, 1
      %p46 = scmp.eq.s32.totalorder %s8, 1
      %p47 = scmp.ne.s32.totalorder %s42, %s44
      %p48 = scmp.eq.s32.totalorder %s8, 0
      %p49 = por %p47, %p48
      %p50 = scmp.ne.s32.totalorder %s42, %s44
      %p51 = scmp.eq.s32.totalorder %s13, 1
      %p52 = por %p50, %p51
      %p53 = scmp.ne.s32.totalorder %s44, %s45
      %p54 = scmp.eq.s32.totalorder %s13, 0
      %p55 = por %p53, %p54
      %p56 = scmp.ne.s32.totalorder %s44, %s45
      %p57 = scmp.eq.s32.totalorder %s14, 1
      %p58 = por %p56, %p57
      %p60 = scmp.ne.s32.totalorder %s45, %s59
      %p61 = scmp.eq.s32.totalorder %s14, 0
      %p62 = por %p60, %p61
      %s63 = ssub.s32 %s8, %s15
      %p64 = scmp.eq.s32.totalorder %s63, 0
      %s66 = sadd.s32 %s65, 1
      %s67 = scalar_select %p64, %s65, %s66
      %p70 = pneg %p64
      %p71 = scmp.eq.s32.totalorder %s8, 1
      %p72 = por %p70, %p71
      %p73 = scmp.ne.s32.totalorder %s65, %s68
      %p74 = scmp.eq.s32.totalorder %s8, 0
      %p75 = por %p73, %p74
      %p76 = scmp.ne.s32.totalorder %s65, %s68
      %p77 = scmp.eq.s32.totalorder %s13, 1
      %p78 = por %p76, %p77
      %p79 = scmp.ne.s32.totalorder %s68, %s69
      %p80 = scmp.eq.s32.totalorder %s13, 0
      %p81 = por %p79, %p80
      %p82 = scmp.ne.s32.totalorder %s68, %s69
      %p83 = scmp.eq.s32.totalorder %s14, 1
      %p84 = por %p82, %p83
      %p86 = scmp.ne.s32.totalorder %s69, %s85
      %p87 = scmp.eq.s32.totalorder %s14, 0
      %p88 = por %p86, %p87
      %p89 = scmp.le.s32.totalorder 1, %s8
      %p90 = scmp.lt.s32.totalorder %s8, 3
      %p91 = pnand %p89, %p90
      %p92 = pneg %p91
      // Predicated region
      $region9: #{generator_forward.6} parent=5 // pred_check
        _
      $region10: #{generator_forward.6} parent=5 // pred_check_branch
        %94 = sbr.rel (%p91) target = $region12
      $region11: #{generator_forward.6} parent=5 // pred_region
        %s95 = ssub.s32 %s8, 1
        // Predicated region
        $region13: #{generator_forward.6} parent=11 // pred_check
          %p96 = pneg %p55
        $region14: #{generator_forward.6} parent=11 // pred_check_branch
          %98 = sbr.rel (%p96) target = $region16
        $region15: #{generator_forward.6} parent=11 // pred_region
          _
        $region16: #{generator_forward.6} parent=11 // pred_fallthru
          _
      $region12: #{generator_forward.6} parent=5 // pred_fallthru
        _
      %p99 = scmp.lt.s32.totalorder %s8, 2
      // Predicated region
      $region17: #{generator_forward.6} parent=5 // pred_check
        %p100 = pneg %p99
      $region18: #{generator_forward.6} parent=5 // pred_check_branch
        %102 = sbr.rel (%p100) target = $region20
      $region19: #{generator_forward.6} parent=5 // pred_region
        // Predicated region
        $region21: #{generator_forward.6} parent=19 // pred_check
          %p103 = pneg %p28
        $region22: #{generator_forward.6} parent=19 // pred_check_branch
          %105 = sbr.rel (%p103) target = $region24
        $region23: #{generator_forward.6} parent=19 // pred_region
          %s106 = smul.u32 8, %s8
          %s107 = ssub.s32 13, %s106
          %p108 = scmp.lt.s32.totalorder %s107, 8
          %s109 = scalar_select %p108, %s107, 8
          %s110 = smul.u32 64, %s109
          %p111 = scmp.lt.s32.totalorder %s106, 12
          %s112 = scalar_select %p111, %s106, 12
          %s113 = smul.addr %s112, 4
          %s114 = scalar_lea.vmem %s0, %s113
          %s115 = smul.u32 8, %s8
          %s116 = ssub.s32 13, %s115
          %p117 = scmp.lt.s32.totalorder %s116, 8
          %s118 = scalar_select %p117, %s116, 8
          %s119 = smul.u32 64, %s118
        $region24: #{generator_forward.6} parent=19 // pred_fallthru
          _
      $region20: #{generator_forward.6} parent=5 // pred_fallthru
        _
      %p120 = scmp.le.s32.totalorder 1, %s8
      %p121 = scmp.lt.s32.totalorder %s8, 3
      %p122 = pnand %p120, %p121
      %p123 = pneg %p122
      // Predicated region
      $region25: #{generator_forward.6} parent=5 // pred_check
        _
      $region26: #{generator_forward.6} parent=5 // pred_check_branch
        %125 = sbr.rel (%p122) target = $region28
      $region27: #{generator_forward.6} parent=5 // pred_region
        %s126 = ssub.s32 %s8, 1
        %s127 = smul.u32 8, %s13
        %s128 = ssub.s32 13, %s127
        %p129 = scmp.lt.s32.totalorder %s128, 8
        %s130 = scalar_select %p129, %s128, 8
        %s131 = smul.u32 64, %s130
        %p132 = scmp.lt.s32.totalorder %s127, 12
        %s133 = scalar_select %p132, %s127, 12
        %s134 = smul.addr %s133, 4
        %s135 = scalar_lea.vmem %s0, %s134
        %p136 = pneg %p34
        %p137 = pneg %p31
        %p138 = pneg %p55
        %p139 = pneg %p52
        %p140 = pneg %p81
        %p141 = pneg %p78
        %s142 = sand.u32 %s68, 1
        %s143 = sand.u32 %s68, 1
        %s144 = smul.addr %s143, 256
        %s145 = scalar_lea.vmem [#allocation2], %s144
        %s146 = smul.u32 8, %s13
        %s147 = ssub.s32 13, %s146
        %p148 = scmp.lt.s32.totalorder %s147, 8
        %s149 = scalar_select %p148, %s147, 8
        %s150 = smul.u32 64, %s149
        %p151 = scmp.lt.s32.totalorder %s146, 12
        %s152 = scalar_select %p151, %s146, 12
        %s153 = smul.addr %s152, 4
        %s154 = scalar_lea.vmem %s0, %s153
        %s155 = smul.u32 8, %s13
        %s156 = ssub.s32 13, %s155
        %p157 = scmp.lt.s32.totalorder %s156, 8
        %s158 = scalar_select %p157, %s156, 8
        %s159 = smul.u32 64, %s158
        %s160 = smul.u32 8, %s13
        %s161 = ssub.s32 13, %s160
        %p162 = scmp.lt.s32.totalorder %s161, 8
        %s163 = scalar_select %p162, %s161, 8
        %s164 = smul.u32 64, %s163
        %s165 = smul.u32 %s164, 8
        %v167 = vld [vmem:[%s154] sm:$0xf]
        %v168 = vld [vmem:[%s154 + $0x4] sm:$0xf]
        %v169 = vld [vmem:[%s154 + $0x8] sm:$0xf]
        %v170 = vld [vmem:[%s154 + $0xc] sm:$0xf]
        %v171 = vld [vmem:[%s154 + $0x10] sm:$0xf]
        %v172 = vld [vmem:[%s154 + $0x14] sm:$0xf]
        %v173 = vld [vmem:[%s154 + $0x18] sm:$0xf]
        %v174 = vld [vmem:[%s154 + $0x1c] sm:$0xf]
        %v175 = vld [vmem:[%s1] sm:$0xff]
        %v176 = vld [vmem:[%s1 + $0x8] sm:$0xff]
        %v177 = vld [vmem:[%s1 + $0x10] sm:$0xff]
        %v178 = vld [vmem:[%s1 + $0x18] sm:$0xff]
        %v179 = vld [vmem:[%s1 + $0x20] sm:$0xff]
        %v180 = vld [vmem:[%s1 + $0x28] sm:$0xff]
        %v181 = vld [vmem:[%s1 + $0x30] sm:$0xff]
        %v182 = vld [vmem:[%s1 + $0x38] sm:$0xff]
        %v183 = vld [vmem:[%s1 + $0x40] sm:$0xff]
        %v184 = vld [vmem:[%s1 + $0x48] sm:$0xff]
        %v185 = vld [vmem:[%s1 + $0x50] sm:$0xff]
        %v186 = vld [vmem:[%s1 + $0x58] sm:$0xff]
        %v187 = vld [vmem:[%s1 + $0x60] sm:$0xff]
        %v188 = vld [vmem:[%s1 + $0x68] sm:$0xff]
        %v189 = vld [vmem:[%s1 + $0x70] sm:$0xff]
        %v190 = vld [vmem:[%s1 + $0x78] sm:$0xff]
        %v191 = vld [vmem:[%s1 + $0x80] sm:$0xff]
        %v192 = vld [vmem:[%s1 + $0x88] sm:$0xff]
        %v193 = vld [vmem:[%s1 + $0x90] sm:$0xff]
        %v194 = vld [vmem:[%s1 + $0x98] sm:$0xff]
        %v195 = vld [vmem:[%s1 + $0xa0] sm:$0xff]
        %v196 = vld [vmem:[%s1 + $0xa8] sm:$0xff]
        %v197 = vld [vmem:[%s1 + $0xb0] sm:$0xff]
        %v198 = vld [vmem:[%s1 + $0xb8] sm:$0xff]
        %v199 = vld [vmem:[%s1 + $0xc0] sm:$0xff]
        %v200 = vld [vmem:[%s1 + $0xc8] sm:$0xff]
        %v201 = vld [vmem:[%s1 + $0xd0] sm:$0xff]
        %v202 = vld [vmem:[%s1 + $0xd8] sm:$0xff]
        %v203 = vld [vmem:[%s1 + $0xe0] sm:$0xff]
        %v204 = vld [vmem:[%s1 + $0xe8] sm:$0xff]
        %v205 = vld [vmem:[%s1 + $0xf0] sm:$0xff]
        %v206 = vld [vmem:[%s1 + $0xf8] sm:$0xff]
        %v207 = vld [vmem:[%s1 + $0x100] sm:$0xff]
        %v208 = vld [vmem:[%s1 + $0x108] sm:$0xff]
        %v209 = vld [vmem:[%s1 + $0x110] sm:$0xff]
        %v210 = vld [vmem:[%s1 + $0x118] sm:$0xff]
        %v211 = vld [vmem:[%s1 + $0x120] sm:$0xff]
        %v212 = vld [vmem:[%s1 + $0x128] sm:$0xff]
        %v213 = vld [vmem:[%s1 + $0x130] sm:$0xff]
        %v214 = vld [vmem:[%s1 + $0x138] sm:$0xff]
        %v215 = vld [vmem:[%s1 + $0x140] sm:$0xff]
        %v216 = vld [vmem:[%s1 + $0x148] sm:$0xff]
        %v217 = vld [vmem:[%s1 + $0x150] sm:$0xff]
        %v218 = vld [vmem:[%s1 + $0x158] sm:$0xff]
        %v219 = vld [vmem:[%s1 + $0x160] sm:$0xff]
        %v220 = vld [vmem:[%s1 + $0x168] sm:$0xff]
        %v221 = vld [vmem:[%s1 + $0x170] sm:$0xff]
        %v222 = vld [vmem:[%s1 + $0x178] sm:$0xff]
        %v223 = vld [vmem:[%s1 + $0x180] sm:$0xff]
        %v224 = vld [vmem:[%s1 + $0x188] sm:$0xff]
        %v225 = vld [vmem:[%s1 + $0x190] sm:$0xff]
        %v226 = vld [vmem:[%s1 + $0x198] sm:$0xff]
        %v227 = vld [vmem:[%s1 + $0x1a0] sm:$0xff]
        %v228 = vld [vmem:[%s1 + $0x1a8] sm:$0xff]
        %v229 = vld [vmem:[%s1 + $0x1b0] sm:$0xff]
        %v230 = vld [vmem:[%s1 + $0x1b8] sm:$0xff]
        %v231 = vld [vmem:[%s1 + $0x1c0] sm:$0xff]
        %v232 = vld [vmem:[%s1 + $0x1c8] sm:$0xff]
        %v233 = vld [vmem:[%s1 + $0x1d0] sm:$0xff]
        %v234 = vld [vmem:[%s1 + $0x1d8] sm:$0xff]
        %v235 = vld [vmem:[%s1 + $0x1e0] sm:$0xff]
        %v236 = vld [vmem:[%s1 + $0x1e8] sm:$0xff]
        %v237 = vld [vmem:[%s1 + $0x1f0] sm:$0xff]
        %v238 = vld [vmem:[%s1 + $0x1f8] sm:$0xff]
        %v247 = vunpack.c.l.b16 %v167
        %v248 = vunpack.c.l.b16 %v168
        %v249 = vunpack.c.l.b16 %v169
        %v250 = vunpack.c.l.b16 %v170
        %v251 = vunpack.c.l.b16 %v171
        %v252 = vunpack.c.l.b16 %v172
        %v253 = vunpack.c.l.b16 %v173
        %v254 = vunpack.c.l.b16 %v174
        %v255 = vpack.c.b16 %v248, %v247
        %v256 = vpack.c.b16 %v250, %v249
        %v257 = vpack.c.b16 %v252, %v251
        %v258 = vpack.c.b16 %v254, %v253
        %v327 = vunpack.c.l.b16 %v175
        %v328 = vunpack.c.h.b16 %v175
        %v329 = vunpack.c.l.b16 %v176
        %v330 = vunpack.c.h.b16 %v176
        %v331 = vunpack.c.l.b16 %v177
        %v332 = vunpack.c.h.b16 %v177
        %v333 = vunpack.c.l.b16 %v178
        %v334 = vunpack.c.h.b16 %v178
        %v335 = vunpack.c.l.b16 %v179
        %v336 = vunpack.c.h.b16 %v179
        %v337 = vunpack.c.l.b16 %v180
        %v338 = vunpack.c.h.b16 %v180
        %v339 = vunpack.c.l.b16 %v181
        %v340 = vunpack.c.h.b16 %v181
        %v341 = vunpack.c.l.b16 %v182
        %v342 = vunpack.c.h.b16 %v182
        %v343 = vunpack.c.l.b16 %v183
        %v344 = vunpack.c.h.b16 %v183
        %v345 = vunpack.c.l.b16 %v184
        %v346 = vunpack.c.h.b16 %v184
        %v347 = vunpack.c.l.b16 %v185
        %v348 = vunpack.c.h.b16 %v185
        %v349 = vunpack.c.l.b16 %v186
        %v350 = vunpack.c.h.b16 %v186
        %v351 = vunpack.c.l.b16 %v187
        %v352 = vunpack.c.h.b16 %v187
        %v353 = vunpack.c.l.b16 %v188
        %v354 = vunpack.c.h.b16 %v188
        %v355 = vunpack.c.l.b16 %v189
        %v356 = vunpack.c.h.b16 %v189
        %v357 = vunpack.c.l.b16 %v190
        %v358 = vunpack.c.h.b16 %v190
        %v359 = vunpack.c.l.b16 %v191
        %v360 = vunpack.c.h.b16 %v191
        %v361 = vunpack.c.l.b16 %v192
        %v362 = vunpack.c.h.b16 %v192
        %v363 = vunpack.c.l.b16 %v193
        %v364 = vunpack.c.h.b16 %v193
        %v365 = vunpack.c.l.b16 %v194
        %v366 = vunpack.c.h.b16 %v194
        %v367 = vunpack.c.l.b16 %v195
        %v368 = vunpack.c.h.b16 %v195
        %v369 = vunpack.c.l.b16 %v196
        %v370 = vunpack.c.h.b16 %v196
        %v371 = vunpack.c.l.b16 %v197
        %v372 = vunpack.c.h.b16 %v197
        %v373 = vunpack.c.l.b16 %v198
        %v374 = vunpack.c.h.b16 %v198
        %v375 = vunpack.c.l.b16 %v199
        %v376 = vunpack.c.h.b16 %v199
        %v377 = vunpack.c.l.b16 %v200
        %v378 = vunpack.c.h.b16 %v200
        %v379 = vunpack.c.l.b16 %v201
        %v380 = vunpack.c.h.b16 %v201
        %v381 = vunpack.c.l.b16 %v202
        %v382 = vunpack.c.h.b16 %v202
        %v383 = vunpack.c.l.b16 %v203
        %v384 = vunpack.c.h.b16 %v203
        %v385 = vunpack.c.l.b16 %v204
        %v386 = vunpack.c.h.b16 %v204
        %v387 = vunpack.c.l.b16 %v205
        %v388 = vunpack.c.h.b16 %v205
        %v389 = vunpack.c.l.b16 %v206
        %v390 = vunpack.c.h.b16 %v206
        %v391 = vunpack.c.l.b16 %v207
        %v392 = vunpack.c.h.b16 %v207
        %v393 = vunpack.c.l.b16 %v208
        %v394 = vunpack.c.h.b16 %v208
        %v395 = vunpack.c.l.b16 %v209
        %v396 = vunpack.c.h.b16 %v209
        %v397 = vunpack.c.l.b16 %v210
        %v398 = vunpack.c.h.b16 %v210
        %v399 = vunpack.c.l.b16 %v211
        %v400 = vunpack.c.h.b16 %v211
        %v401 = vunpack.c.l.b16 %v212
        %v402 = vunpack.c.h.b16 %v212
        %v403 = vunpack.c.l.b16 %v213
        %v404 = vunpack.c.h.b16 %v213
        %v405 = vunpack.c.l.b16 %v214
        %v406 = vunpack.c.h.b16 %v214
        %v407 = vunpack.c.l.b16 %v215
        %v408 = vunpack.c.h.b16 %v215
        %v409 = vunpack.c.l.b16 %v216
        %v410 = vunpack.c.h.b16 %v216
        %v411 = vunpack.c.l.b16 %v217
        %v412 = vunpack.c.h.b16 %v217
        %v413 = vunpack.c.l.b16 %v218
        %v414 = vunpack.c.h.b16 %v218
        %v415 = vunpack.c.l.b16 %v219
        %v416 = vunpack.c.h.b16 %v219
        %v417 = vunpack.c.l.b16 %v220
        %v418 = vunpack.c.h.b16 %v220
        %v419 = vunpack.c.l.b16 %v221
        %v420 = vunpack.c.h.b16 %v221
        %v421 = vunpack.c.l.b16 %v222
        %v422 = vunpack.c.h.b16 %v222
        %v423 = vunpack.c.l.b16 %v223
        %v424 = vunpack.c.h.b16 %v223
        %v425 = vunpack.c.l.b16 %v224
        %v426 = vunpack.c.h.b16 %v224
        %v427 = vunpack.c.l.b16 %v225
        %v428 = vunpack.c.h.b16 %v225
        %v429 = vunpack.c.l.b16 %v226
        %v430 = vunpack.c.h.b16 %v226
        %v431 = vunpack.c.l.b16 %v227
        %v432 = vunpack.c.h.b16 %v227
        %v433 = vunpack.c.l.b16 %v228
        %v434 = vunpack.c.h.b16 %v228
        %v435 = vunpack.c.l.b16 %v229
        %v436 = vunpack.c.h.b16 %v229
        %v437 = vunpack.c.l.b16 %v230
        %v438 = vunpack.c.h.b16 %v230
        %v439 = vunpack.c.l.b16 %v231
        %v440 = vunpack.c.h.b16 %v231
        %v441 = vunpack.c.l.b16 %v232
        %v442 = vunpack.c.h.b16 %v232
        %v443 = vunpack.c.l.b16 %v233
        %v444 = vunpack.c.h.b16 %v233
        %v445 = vunpack.c.l.b16 %v234
        %v446 = vunpack.c.h.b16 %v234
        %v447 = vunpack.c.l.b16 %v235
        %v448 = vunpack.c.h.b16 %v235
        %v449 = vunpack.c.l.b16 %v236
        %v450 = vunpack.c.h.b16 %v236
        %v451 = vunpack.c.l.b16 %v237
        %v452 = vunpack.c.h.b16 %v237
        %v453 = vunpack.c.l.b16 %v238
        %v454 = vunpack.c.h.b16 %v238
        %v455 = vpack.c.b16 %v335, %v327
        %v456 = vpack.c.b16 %v336, %v328
        %v457 = vpack.c.b16 %v337, %v329
        %v458 = vpack.c.b16 %v338, %v330
        %v459 = vpack.c.b16 %v339, %v331
        %v460 = vpack.c.b16 %v340, %v332
        %v461 = vpack.c.b16 %v341, %v333
        %v462 = vpack.c.b16 %v342, %v334
        %v463 = vpack.c.b16 %v351, %v343
        %v464 = vpack.c.b16 %v352, %v344
        %v465 = vpack.c.b16 %v353, %v345
        %v466 = vpack.c.b16 %v354, %v346
        %v467 = vpack.c.b16 %v355, %v347
        %v468 = vpack.c.b16 %v356, %v348
        %v469 = vpack.c.b16 %v357, %v349
        %v470 = vpack.c.b16 %v358, %v350
        %v471 = vpack.c.b16 %v367, %v359
        %v472 = vpack.c.b16 %v368, %v360
        %v473 = vpack.c.b16 %v369, %v361
        %v474 = vpack.c.b16 %v370, %v362
        %v475 = vpack.c.b16 %v371, %v363
        %v476 = vpack.c.b16 %v372, %v364
        %v477 = vpack.c.b16 %v373, %v365
        %v478 = vpack.c.b16 %v374, %v366
        %v479 = vpack.c.b16 %v383, %v375
        %v480 = vpack.c.b16 %v384, %v376
        %v481 = vpack.c.b16 %v385, %v377
        %v482 = vpack.c.b16 %v386, %v378
        %v483 = vpack.c.b16 %v387, %v379
        %v484 = vpack.c.b16 %v388, %v380
        %v485 = vpack.c.b16 %v389, %v381
        %v486 = vpack.c.b16 %v390, %v382
        %v487 = vpack.c.b16 %v399, %v391
        %v488 = vpack.c.b16 %v400, %v392
        %v489 = vpack.c.b16 %v401, %v393
        %v490 = vpack.c.b16 %v402, %v394
        %v491 = vpack.c.b16 %v403, %v395
        %v492 = vpack.c.b16 %v404, %v396
        %v493 = vpack.c.b16 %v405, %v397
        %v494 = vpack.c.b16 %v406, %v398
        %v495 = vpack.c.b16 %v415, %v407
        %v496 = vpack.c.b16 %v416, %v408
        %v497 = vpack.c.b16 %v417, %v409
        %v498 = vpack.c.b16 %v418, %v410
        %v499 = vpack.c.b16 %v419, %v411
        %v500 = vpack.c.b16 %v420, %v412
        %v501 = vpack.c.b16 %v421, %v413
        %v502 = vpack.c.b16 %v422, %v414
        %v503 = vpack.c.b16 %v431, %v423
        %v504 = vpack.c.b16 %v432, %v424
        %v505 = vpack.c.b16 %v433, %v425
        %v506 = vpack.c.b16 %v434, %v426
        %v507 = vpack.c.b16 %v435, %v427
        %v508 = vpack.c.b16 %v436, %v428
        %v509 = vpack.c.b16 %v437, %v429
        %v510 = vpack.c.b16 %v438, %v430
        %v511 = vpack.c.b16 %v447, %v439
        %v512 = vpack.c.b16 %v448, %v440
        %v513 = vpack.c.b16 %v449, %v441
        %v514 = vpack.c.b16 %v450, %v442
        %v515 = vpack.c.b16 %v451, %v443
        %v516 = vpack.c.b16 %v452, %v444
        %v517 = vpack.c.b16 %v453, %v445
        %v518 = vpack.c.b16 %v454, %v446
        %583 = vmatprep.subr.bf16.mxu0 %v456
        %584 = vmatpush1.bf16.msra.mxu0 %v455
        %585 = vmatprep.subr.bf16.mxu0 %v464
        %586 = vmatpush1.bf16.msra.mxu0 %v463
        %587 = vmatprep.subr.bf16.mxu0 %v472
        %588 = vmatpush1.bf16.msra.mxu0 %v471
        %589 = vmatprep.subr.bf16.mxu0 %v480
        %590 = vmatpush1.bf16.msra.mxu0 %v479
        %591 = vmatprep.subr.bf16.mxu0 %v488
        %592 = vmatpush1.bf16.msra.mxu0 %v487
        %593 = vmatprep.subr.bf16.mxu0 %v496
        %594 = vmatpush1.bf16.msra.mxu0 %v495
        %595 = vmatprep.subr.bf16.mxu0 %v504
        %596 = vmatpush1.bf16.msra.mxu0 %v503
        %597 = vmatprep.subr.bf16.mxu0 %v512
        %598 = vmatpush1.bf16.msra.mxu0 %v511
        %599 = vmatprep.subr.bf16.mxu0 0
        %600 = vmatpush1.bf16.msra.mxu0 0
        %601 = vmatprep.subr.bf16.mxu0 0
        %602 = vmatpush1.bf16.msra.mxu0 0
        %603 = vmatprep.subr.bf16.mxu0 0
        %604 = vmatpush1.bf16.msra.mxu0 0
        %605 = vmatprep.subr.bf16.mxu0 0
        %606 = vmatpush1.bf16.msra.mxu0 0
        %607 = vmatprep.subr.bf16.mxu0 0
        %608 = vmatpush1.bf16.msra.mxu0 0
        %609 = vmatprep.subr.bf16.mxu0 0
        %610 = vmatpush1.bf16.msra.mxu0 0
        %611 = vmatprep.subr.bf16.mxu0 0
        %612 = vmatpush1.bf16.msra.mxu0 0
        %613 = vmatprep.subr.bf16.mxu0 0
        %614 = vmatpush1.bf16.msra.mxu0 0
        %615 = vmatprep.mubr.bf16.mxu0 0
        %616 = vmatmul.mubr.bf16.gmra.mrb[0].mxu0 %v255
        %v617 = vpop.f32.mrb[0].mxu0
        %v618 = vadd.f32 0.0, %v617
        %v619 = vpop.f32.mrb[0].mxu0
        %v620 = vadd.f32 0.0, %v619
        %v621 = vpop.f32.mrb[0].mxu0
        %v622 = vadd.f32 0.0, %v621
        %v623 = vpop.f32.mrb[0].mxu0
        %v624 = vadd.f32 0.0, %v623
        %625 = vmatprep.mubr.bf16.mxu0 0
        %626 = vmatmul.mubr.bf16.gmra.mrb[0].mxu0 %v256
        %v627 = vpop.f32.mrb[0].mxu0
        %v628 = vadd.f32 0.0, %v627
        %v629 = vpop.f32.mrb[0].mxu0
        %v630 = vadd.f32 0.0, %v629
        %v631 = vpop.f32.mrb[0].mxu0
        %v632 = vadd.f32 0.0, %v631
        %v633 = vpop.f32.mrb[0].mxu0
        %v634 = vadd.f32 0.0, %v633
        %635 = vmatprep.mubr.bf16.mxu0 0
        %636 = vmatmul.mubr.bf16.gmra.mrb[0].mxu0 %v257
        %v637 = vpop.f32.mrb[0].mxu0
        %v638 = vadd.f32 0.0, %v637
        %v639 = vpop.f32.mrb[0].mxu0
        %v640 = vadd.f32 0.0, %v639
        %v641 = vpop.f32.mrb[0].mxu0
        %v642 = vadd.f32 0.0, %v641
        %v643 = vpop.f32.mrb[0].mxu0
        %v644 = vadd.f32 0.0, %v643
        %645 = vmatprep.mubr.bf16.mxu0 0
        %646 = vmatmul.mubr.bf16.gmra.mrb[0].mxu0 %v258
        %v647 = vpop.f32.mrb[0].mxu0
        %v648 = vadd.f32 0.0, %v647
        %v649 = vpop.f32.mrb[0].mxu0
        %v650 = vadd.f32 0.0, %v649
        %v651 = vpop.f32.mrb[0].mxu0
        %v652 = vadd.f32 0.0, %v651
        %v653 = vpop.f32.mrb[0].mxu0
        %v654 = vadd.f32 0.0, %v653
        %655 = vdwg.mxu0
        %656 = vmatprep.subr.bf16.mxu0 %v458
        %657 = vmatpush1.bf16.msra.mxu0 %v457
        %658 = vmatprep.subr.bf16.mxu0 %v466
        %659 = vmatpush1.bf16.msra.mxu0 %v465
        %660 = vmatprep.subr.bf16.mxu0 %v474
        %661 = vmatpush1.bf16.msra.mxu0 %v473
        %662 = vmatprep.subr.bf16.mxu0 %v482
        %663 = vmatpush1.bf16.msra.mxu0 %v481
        %664 = vmatprep.subr.bf16.mxu0 %v490
        %665 = vmatpush1.bf16.msra.mxu0 %v489
        %666 = vmatprep.subr.bf16.mxu0 %v498
        %667 = vmatpush1.bf16.msra.mxu0 %v497
        %668 = vmatprep.subr.bf16.mxu0 %v506
        %669 = vmatpush1.bf16.msra.mxu0 %v505
        %670 = vmatprep.subr.bf16.mxu0 %v514
        %671 = vmatpush1.bf16.msra.mxu0 %v513
        %672 = vmatprep.subr.bf16.mxu0 0
        %673 = vmatpush1.bf16.msra.mxu0 0
        %674 = vmatprep.subr.bf16.mxu0 0
        %675 = vmatpush1.bf16.msra.mxu0 0
        %676 = vmatprep.subr.bf16.mxu0 0
        %677 = vmatpush1.bf16.msra.mxu0 0
        %678 = vmatprep.subr.bf16.mxu0 0
        %679 = vmatpush1.bf16.msra.mxu0 0
        %680 = vmatprep.subr.bf16.mxu0 0
        %681 = vmatpush1.bf16.msra.mxu0 0
        %682 = vmatprep.subr.bf16.mxu0 0
        %683 = vmatpush1.bf16.msra.mxu0 0
        %684 = vmatprep.subr.bf16.mxu0 0
        %685 = vmatpush1.bf16.msra.mxu0 0
        %686 = vmatprep.subr.bf16.mxu0 0
        %687 = vmatpush1.bf16.msra.mxu0 0
        %688 = vmatprep.mubr.bf16.mxu0 0
        %689 = vmatmul.mubr.bf16.gmra.mrb[0].mxu0 %v255
        %v690 = vpop.f32.mrb[0].mxu0
        %v691 = vadd.f32 0.0, %v690
        %v692 = vpop.f32.mrb[0].mxu0
        %v693 = vadd.f32 0.0, %v692
        %v694 = vpop.f32.mrb[0].mxu0
        %v695 = vadd.f32 0.0, %v694
        %v696 = vpop.f32.mrb[0].mxu0
        %v697 = vadd.f32 0.0, %v696
        %698 = vmatprep.mubr.bf16.mxu0 0
        %699 = vmatmul.mubr.bf16.gmra.mrb[0].mxu0 %v256
        %v700 = vpop.f32.mrb[0].mxu0
        %v701 = vadd.f32 0.0, %v700
        %v702 = vpop.f32.mrb[0].mxu0
        %v703 = vadd.f32 0.0, %v702
        %v704 = vpop.f32.mrb[0].mxu0
        %v705 = vadd.f32 0.0, %v704
        %v706 = vpop.f32.mrb[0].mxu0
        %v707 = vadd.f32 0.0, %v706
        %708 = vmatprep.mubr.bf16.mxu0 0
        %709 = vmatmul.mubr.bf16.gmra.mrb[0].mxu0 %v257
        %v710 = vpop.f32.mrb[0].mxu0
        %v711 = vadd.f32 0.0, %v710
        %v712 = vpop.f32.mrb[0].mxu0
        %v713 = vadd.f32 0.0, %v712
        %v714 = vpop.f32.mrb[0].mxu0
        %v715 = vadd.f32 0.0, %v714
        %v716 = vpop.f32.mrb[0].mxu0
        %v717 = vadd.f32 0.0, %v716
        %718 = vmatprep.mubr.bf16.mxu0 0
        %719 = vmatmul.mubr.bf16.gmra.mrb[0].mxu0 %v258
        %v720 = vpop.f32.mrb[0].mxu0
        %v721 = vadd.f32 0.0, %v720
        %v722 = vpop.f32.mrb[0].mxu0
        %v723 = vadd.f32 0.0, %v722
        %v724 = vpop.f32.mrb[0].mxu0
        %v725 = vadd.f32 0.0, %v724
        %v726 = vpop.f32.mrb[0].mxu0
        %v727 = vadd.f32 0.0, %v726
        %728 = vdwg.mxu0
        %729 = vmatprep.subr.bf16.mxu0 %v460
        %730 = vmatpush1.bf16.msra.mxu0 %v459
        %731 = vmatprep.subr.bf16.mxu0 %v468
        %732 = vmatpush1.bf16.msra.mxu0 %v467
        %733 = vmatprep.subr.bf16.mxu0 %v476
        %734 = vmatpush1.bf16.msra.mxu0 %v475
        %735 = vmatprep.subr.bf16.mxu0 %v484
        %736 = vmatpush1.bf16.msra.mxu0 %v483
        %737 = vmatprep.subr.bf16.mxu0 %v492
        %738 = vmatpush1.bf16.msra.mxu0 %v491
        %739 = vmatprep.subr.bf16.mxu0 %v500
        %740 = vmatpush1.bf16.msra.mxu0 %v499
        %741 = vmatprep.subr.bf16.mxu0 %v508
        %742 = vmatpush1.bf16.msra.mxu0 %v507
        %743 = vmatprep.subr.bf16.mxu0 %v516
        %744 = vmatpush1.bf16.msra.mxu0 %v515
        %745 = vmatprep.subr.bf16.mxu0 0
        %746 = vmatpush1.bf16.msra.mxu0 0
        %747 = vmatprep.subr.bf16.mxu0 0
        %748 = vmatpush1.bf16.msra.mxu0 0
        %749 = vmatprep.subr.bf16.mxu0 0
        %750 = vmatpush1.bf16.msra.mxu0 0
        %751 = vmatprep.subr.bf16.mxu0 0
        %752 = vmatpush1.bf16.msra.mxu0 0
        %753 = vmatprep.subr.bf16.mxu0 0
        %754 = vmatpush1.bf16.msra.mxu0 0
        %755 = vmatprep.subr.bf16.mxu0 0
        %756 = vmatpush1.bf16.msra.mxu0 0
        %757 = vmatprep.subr.bf16.mxu0 0
        %758 = vmatpush1.bf16.msra.mxu0 0
        %759 = vmatprep.subr.bf16.mxu0 0
        %760 = vmatpush1.bf16.msra.mxu0 0
        %761 = vmatprep.mubr.bf16.mxu0 0
        %762 = vmatmul.mubr.bf16.gmra.mrb[0].mxu0 %v255
        %v763 = vpop.f32.mrb[0].mxu0
        %v764 = vadd.f32 0.0, %v763
        %v765 = vpop.f32.mrb[0].mxu0
        %v766 = vadd.f32 0.0, %v765
        %v767 = vpop.f32.mrb[0].mxu0
        %v768 = vadd.f32 0.0, %v767
        %v769 = vpop.f32.mrb[0].mxu0
        %v770 = vadd.f32 0.0, %v769
        %771 = vmatprep.mubr.bf16.mxu0 0
        %772 = vmatmul.mubr.bf16.gmra.mrb[0].mxu0 %v256
        %v773 = vpop.f32.mrb[0].mxu0
        %v774 = vadd.f32 0.0, %v773
        %v775 = vpop.f32.mrb[0].mxu0
        %v776 = vadd.f32 0.0, %v775
        %v777 = vpop.f32.mrb[0].mxu0
        %v778 = vadd.f32 0.0, %v777
        %v779 = vpop.f32.mrb[0].mxu0
        %v780 = vadd.f32 0.0, %v779
        %781 = vmatprep.mubr.bf16.mxu0 0
        %782 = vmatmul.mubr.bf16.gmra.mrb[0].mxu0 %v257
        %v783 = vpop.f32.mrb[0].mxu0
        %v784 = vadd.f32 0.0, %v783
        %v785 = vpop.f32.mrb[0].mxu0
        %v786 = vadd.f32 0.0, %v785
        %v787 = vpop.f32.mrb[0].mxu0
        %v788 = vadd.f32 0.0, %v787
        %v789 = vpop.f32.mrb[0].mxu0
        %v790 = vadd.f32 0.0, %v789
        %791 = vmatprep.mubr.bf16.mxu0 0
        %792 = vmatmul.mubr.bf16.gmra.mrb[0].mxu0 %v258
        %v793 = vpop.f32.mrb[0].mxu0
        %v794 = vadd.f32 0.0, %v793
        %v795 = vpop.f32.mrb[0].mxu0
        %v796 = vadd.f32 0.0, %v795
        %v797 = vpop.f32.mrb[0].mxu0
        %v798 = vadd.f32 0.0, %v797
        %v799 = vpop.f32.mrb[0].mxu0
        %v800 = vadd.f32 0.0, %v799
        %801 = vdwg.mxu0
        %802 = vmatprep.subr.bf16.mxu0 %v462
        %803 = vmatpush1.bf16.msra.mxu0 %v461
        %804 = vmatprep.subr.bf16.mxu0 %v470
        %805 = vmatpush1.bf16.msra.mxu0 %v469
        %806 = vmatprep.subr.bf16.mxu0 %v478
        %807 = vmatpush1.bf16.msra.mxu0 %v477
        %808 = vmatprep.subr.bf16.mxu0 %v486
        %809 = vmatpush1.bf16.msra.mxu0 %v485
        %810 = vmatprep.subr.bf16.mxu0 %v494
        %811 = vmatpush1.bf16.msra.mxu0 %v493
        %812 = vmatprep.subr.bf16.mxu0 %v502
        %813 = vmatpush1.bf16.msra.mxu0 %v501
        %814 = vmatprep.subr.bf16.mxu0 %v510
        %815 = vmatpush1.bf16.msra.mxu0 %v509
        %816 = vmatprep.subr.bf16.mxu0 %v518
        %817 = vmatpush1.bf16.msra.mxu0 %v517
        %818 = vmatprep.subr.bf16.mxu0 0
        %819 = vmatpush1.bf16.msra.mxu0 0
        %820 = vmatprep.subr.bf16.mxu0 0
        %821 = vmatpush1.bf16.msra.mxu0 0
        %822 = vmatprep.subr.bf16.mxu0 0
        %823 = vmatpush1.bf16.msra.mxu0 0
        %824 = vmatprep.subr.bf16.mxu0 0
        %825 = vmatpush1.bf16.msra.mxu0 0
        %826 = vmatprep.subr.bf16.mxu0 0
        %827 = vmatpush1.bf16.msra.mxu0 0
        %828 = vmatprep.subr.bf16.mxu0 0
        %829 = vmatpush1.bf16.msra.mxu0 0
        %830 = vmatprep.subr.bf16.mxu0 0
        %831 = vmatpush1.bf16.msra.mxu0 0
        %832 = vmatprep.subr.bf16.mxu0 0
        %833 = vmatpush1.bf16.msra.mxu0 0
        %834 = vmatprep.mubr.bf16.mxu0 0
        %835 = vmatmul.mubr.bf16.gmra.mrb[0].mxu0 %v255
        %v836 = vpop.f32.mrb[0].mxu0
        %v837 = vadd.f32 0.0, %v836
        %v838 = vpop.f32.mrb[0].mxu0
        %v839 = vadd.f32 0.0, %v838
        %v840 = vpop.f32.mrb[0].mxu0
        %v841 = vadd.f32 0.0, %v840
        %v842 = vpop.f32.mrb[0].mxu0
        %v843 = vadd.f32 0.0, %v842
        %844 = vmatprep.mubr.bf16.mxu0 0
        %845 = vmatmul.mubr.bf16.gmra.mrb[0].mxu0 %v256
        %v846 = vpop.f32.mrb[0].mxu0
        %v847 = vadd.f32 0.0, %v846
        %v848 = vpop.f32.mrb[0].mxu0
        %v849 = vadd.f32 0.0, %v848
        %v850 = vpop.f32.mrb[0].mxu0
        %v851 = vadd.f32 0.0, %v850
        %v852 = vpop.f32.mrb[0].mxu0
        %v853 = vadd.f32 0.0, %v852
        %854 = vmatprep.mubr.bf16.mxu0 0
        %855 = vmatmul.mubr.bf16.gmra.mrb[0].mxu0 %v257
        %v856 = vpop.f32.mrb[0].mxu0
        %v857 = vadd.f32 0.0, %v856
        %v858 = vpop.f32.mrb[0].mxu0
        %v859 = vadd.f32 0.0, %v858
        %v860 = vpop.f32.mrb[0].mxu0
        %v861 = vadd.f32 0.0, %v860
        %v862 = vpop.f32.mrb[0].mxu0
        %v863 = vadd.f32 0.0, %v862
        %864 = vmatprep.mubr.bf16.mxu0 0
        %865 = vmatmul.mubr.bf16.gmra.mrb[0].mxu0 %v258
        %v866 = vpop.f32.mrb[0].mxu0
        %v867 = vadd.f32 0.0, %v866
        %v868 = vpop.f32.mrb[0].mxu0
        %v869 = vadd.f32 0.0, %v868
        %v870 = vpop.f32.mrb[0].mxu0
        %v871 = vadd.f32 0.0, %v870
        %v872 = vpop.f32.mrb[0].mxu0
        %v873 = vadd.f32 0.0, %v872
        %874 = vdwg.mxu0
        %v875 = vpack.c.bf16 %v622, %v618
        %v876 = vpack.c.bf16 %v624, %v620
        %v877 = vpack.c.bf16 %v695, %v691
        %v878 = vpack.c.bf16 %v697, %v693
        %v879 = vpack.c.bf16 %v768, %v764
        %v880 = vpack.c.bf16 %v770, %v766
        %v881 = vpack.c.bf16 %v841, %v837
        %v882 = vpack.c.bf16 %v843, %v839
        %v883 = vpack.c.bf16 %v632, %v628
        %v884 = vpack.c.bf16 %v634, %v630
        %v885 = vpack.c.bf16 %v705, %v701
        %v886 = vpack.c.bf16 %v707, %v703
        %v887 = vpack.c.bf16 %v778, %v774
        %v888 = vpack.c.bf16 %v780, %v776
        %v889 = vpack.c.bf16 %v851, %v847
        %v890 = vpack.c.bf16 %v853, %v849
        %v891 = vpack.c.bf16 %v642, %v638
        %v892 = vpack.c.bf16 %v644, %v640
        %v893 = vpack.c.bf16 %v715, %v711
        %v894 = vpack.c.bf16 %v717, %v713
        %v895 = vpack.c.bf16 %v788, %v784
        %v896 = vpack.c.bf16 %v790, %v786
        %v897 = vpack.c.bf16 %v861, %v857
        %v898 = vpack.c.bf16 %v863, %v859
        %v899 = vpack.c.bf16 %v652, %v648
        %v900 = vpack.c.bf16 %v654, %v650
        %v901 = vpack.c.bf16 %v725, %v721
        %v902 = vpack.c.bf16 %v727, %v723
        %v903 = vpack.c.bf16 %v798, %v794
        %v904 = vpack.c.bf16 %v800, %v796
        %v905 = vpack.c.bf16 %v871, %v867
        %v906 = vpack.c.bf16 %v873, %v869
        %v939 = vunpack.c.l.b16 %v875
        %v940 = vunpack.c.l.b16 %v876
        %v941 = vunpack.c.l.b16 %v877
        %v942 = vunpack.c.l.b16 %v878
        %v943 = vunpack.c.l.b16 %v879
        %v944 = vunpack.c.l.b16 %v880
        %v945 = vunpack.c.l.b16 %v881
        %v946 = vunpack.c.l.b16 %v882
        %v947 = vunpack.c.h.b16 %v875
        %v948 = vunpack.c.h.b16 %v876
        %v949 = vunpack.c.h.b16 %v877
        %v950 = vunpack.c.h.b16 %v878
        %v951 = vunpack.c.h.b16 %v879
        %v952 = vunpack.c.h.b16 %v880
        %v953 = vunpack.c.h.b16 %v881
        %v954 = vunpack.c.h.b16 %v882
        %v955 = vunpack.c.l.b16 %v883
        %v956 = vunpack.c.l.b16 %v884
        %v957 = vunpack.c.l.b16 %v885
        %v958 = vunpack.c.l.b16 %v886
        %v959 = vunpack.c.l.b16 %v887
        %v960 = vunpack.c.l.b16 %v888
        %v961 = vunpack.c.l.b16 %v889
        %v962 = vunpack.c.l.b16 %v890
        %v963 = vunpack.c.h.b16 %v883
        %v964 = vunpack.c.h.b16 %v884
        %v965 = vunpack.c.h.b16 %v885
        %v966 = vunpack.c.h.b16 %v886
        %v967 = vunpack.c.h.b16 %v887
        %v968 = vunpack.c.h.b16 %v888
        %v969 = vunpack.c.h.b16 %v889
        %v970 = vunpack.c.h.b16 %v890
        %v971 = vunpack.c.l.b16 %v891
        %v972 = vunpack.c.l.b16 %v892
        %v973 = vunpack.c.l.b16 %v893
        %v974 = vunpack.c.l.b16 %v894
        %v975 = vunpack.c.l.b16 %v895
        %v976 = vunpack.c.l.b16 %v896
        %v977 = vunpack.c.l.b16 %v897
        %v978 = vunpack.c.l.b16 %v898
        %v979 = vunpack.c.h.b16 %v891
        %v980 = vunpack.c.h.b16 %v892
        %v981 = vunpack.c.h.b16 %v893
        %v982 = vunpack.c.h.b16 %v894
        %v983 = vunpack.c.h.b16 %v895
        %v984 = vunpack.c.h.b16 %v896
        %v985 = vunpack.c.h.b16 %v897
        %v986 = vunpack.c.h.b16 %v898
        %v987 = vunpack.c.l.b16 %v899
        %v988 = vunpack.c.l.b16 %v900
        %v989 = vunpack.c.l.b16 %v901
        %v990 = vunpack.c.l.b16 %v902
        %v991 = vunpack.c.l.b16 %v903
        %v992 = vunpack.c.l.b16 %v904
        %v993 = vunpack.c.l.b16 %v905
        %v994 = vunpack.c.l.b16 %v906
        %v995 = vunpack.c.h.b16 %v899
        %v996 = vunpack.c.h.b16 %v900
        %v997 = vunpack.c.h.b16 %v901
        %v998 = vunpack.c.h.b16 %v902
        %v999 = vunpack.c.h.b16 %v903
        %v1000 = vunpack.c.h.b16 %v904
        %v1001 = vunpack.c.h.b16 %v905
        %v1002 = vunpack.c.h.b16 %v906
        %v1003 = vpack.c.b16 %v940, %v939
        %v1004 = vpack.c.b16 %v942, %v941
        %v1005 = vpack.c.b16 %v944, %v943
        %v1006 = vpack.c.b16 %v946, %v945
        %v1007 = vpack.c.b16 %v948, %v947
        %v1008 = vpack.c.b16 %v950, %v949
        %v1009 = vpack.c.b16 %v952, %v951
        %v1010 = vpack.c.b16 %v954, %v953
        %v1011 = vpack.c.b16 %v956, %v955
        %v1012 = vpack.c.b16 %v958, %v957
        %v1013 = vpack.c.b16 %v960, %v959
        %v1014 = vpack.c.b16 %v962, %v961
        %v1015 = vpack.c.b16 %v964, %v963
        %v1016 = vpack.c.b16 %v966, %v965
        %v1017 = vpack.c.b16 %v968, %v967
        %v1018 = vpack.c.b16 %v970, %v969
        %v1019 = vpack.c.b16 %v972, %v971
        %v1020 = vpack.c.b16 %v974, %v973
        %v1021 = vpack.c.b16 %v976, %v975
        %v1022 = vpack.c.b16 %v978, %v977
        %v1023 = vpack.c.b16 %v980, %v979
        %v1024 = vpack.c.b16 %v982, %v981
        %v1025 = vpack.c.b16 %v984, %v983
        %v1026 = vpack.c.b16 %v986, %v985
        %v1027 = vpack.c.b16 %v988, %v987
        %v1028 = vpack.c.b16 %v990, %v989
        %v1029 = vpack.c.b16 %v992, %v991
        %v1030 = vpack.c.b16 %v994, %v993
        %v1031 = vpack.c.b16 %v996, %v995
        %v1032 = vpack.c.b16 %v998, %v997
        %v1033 = vpack.c.b16 %v1000, %v999
        %v1034 = vpack.c.b16 %v1002, %v1001
        %1067 = vst [vmem:[%s145] sm:$0xff] %v1003
        %1068 = vst [vmem:[%s145 + $0x8] sm:$0xff] %v1004
        %1069 = vst [vmem:[%s145 + $0x10] sm:$0xff] %v1005
        %1070 = vst [vmem:[%s145 + $0x18] sm:$0xff] %v1006
        %1071 = vst [vmem:[%s145 + $0x20] sm:$0xff] %v1007
        %1072 = vst [vmem:[%s145 + $0x28] sm:$0xff] %v1008
        %1073 = vst [vmem:[%s145 + $0x30] sm:$0xff] %v1009
        %1074 = vst [vmem:[%s145 + $0x38] sm:$0xff] %v1010
        %1075 = vst [vmem:[%s145 + $0x40] sm:$0xff] %v1011
        %1076 = vst [vmem:[%s145 + $0x48] sm:$0xff] %v1012
        %1077 = vst [vmem:[%s145 + $0x50] sm:$0xff] %v1013
        %1078 = vst [vmem:[%s145 + $0x58] sm:$0xff] %v1014
        %1079 = vst [vmem:[%s145 + $0x60] sm:$0xff] %v1015
        %1080 = vst [vmem:[%s145 + $0x68] sm:$0xff] %v1016
        %1081 = vst [vmem:[%s145 + $0x70] sm:$0xff] %v1017
        %1082 = vst [vmem:[%s145 + $0x78] sm:$0xff] %v1018
        %1083 = vst [vmem:[%s145 + $0x80] sm:$0xff] %v1019
        %1084 = vst [vmem:[%s145 + $0x88] sm:$0xff] %v1020
        %1085 = vst [vmem:[%s145 + $0x90] sm:$0xff] %v1021
        %1086 = vst [vmem:[%s145 + $0x98] sm:$0xff] %v1022
        %1087 = vst [vmem:[%s145 + $0xa0] sm:$0xff] %v1023
        %1088 = vst [vmem:[%s145 + $0xa8] sm:$0xff] %v1024
        %1089 = vst [vmem:[%s145 + $0xb0] sm:$0xff] %v1025
        %1090 = vst [vmem:[%s145 + $0xb8] sm:$0xff] %v1026
        %1091 = vst [vmem:[%s145 + $0xc0] sm:$0xff] %v1027
        %1092 = vst [vmem:[%s145 + $0xc8] sm:$0xff] %v1028
        %1093 = vst [vmem:[%s145 + $0xd0] sm:$0xff] %v1029
        %1094 = vst [vmem:[%s145 + $0xd8] sm:$0xff] %v1030
        %1095 = vst [vmem:[%s145 + $0xe0] sm:$0xff] %v1031
        %1096 = vst [vmem:[%s145 + $0xe8] sm:$0xff] %v1032
        %1097 = vst [vmem:[%s145 + $0xf0] sm:$0xff] %v1033
        %1098 = vst [vmem:[%s145 + $0xf8] sm:$0xff] %v1034
        %s1099 = sand.u32 %s68, 1
        %s1100 = sand.u32 %s68, 1
        %s1101 = smul.addr %s1100, 256
        %s1102 = scalar_lea.vmem [#allocation2], %s1101
        // Predicated region
        $region29: #{generator_forward.6} parent=27 // pred_check
          %p1103 = pneg %p78
        $region30: #{generator_forward.6} parent=27 // pred_check_branch
          %1105 = sbr.rel (%p1103) target = $region32
        $region31: #{generator_forward.6} parent=27 // pred_region
          %s1106 = smul.u32 8, %s13
          %s1107 = ssub.s32 13, %s1106
          %p1108 = scmp.lt.s32.totalorder %s1107, 8
          %s1109 = scalar_select %p1108, %s1107, 8
          %s1110 = smul.u32 64, %s1109
          %s1111 = smul.u32 %s1110, 8
          %p1112 = scmp.ne.s32.totalorder 0, %s1111
          %s1113 = smul.addr %s1106, 8
          %s1114 = smul.addr %s1113, 4
          %s1115 = scalar_lea.vmem %s2, %s1114
          // Predicated region
          $region33: #{generator_forward.6} parent=31 // pred_check
            %p1116 = pneg %p1112
          $region34: #{generator_forward.6} parent=31 // pred_check_branch
            %1118 = sbr.rel (%p1116) target = $region36
          $region35: #{generator_forward.6} parent=31 // pred_region
            // Predicated region
            $region37: #{generator_forward.6} parent=35 // pred_check
              _
            $region38: #{generator_forward.6} parent=35 // pred_check_branch
              %1120 = sbr.rel (0) target = $region40
            $region39: #{generator_forward.6} parent=35 // pred_region
              %s1121 = sshrl.u32 %s1109, 3
              // While loop
              $region41: #{generator_forward.6} parent=39 // loop_pre_header
                _
              $region42: #{generator_forward.6} parent=39 // loop_header
                %s1123 = sphi 0, %s1125
                %p1124 = scmp.ge.s32.totalorder %s1123, %s1121
                %s1128 = sphi 0, %s1197
                %s1129 = sphi %s1102, %s1200
                %s1130 = sphi %s1115, %s1201
              $region43: #{generator_forward.6} parent=39 // loop_header_branch
                %1127 = sbr.rel (%p1124) target = $region47
              $region44: #{generator_forward.6} parent=39 // loop_body
                %v1131 = vld [vmem:[%s1129] sm:$0xff]
                %1132 = vst [vmem:[%s1130] sm:$0xff] %v1131
                %v1133 = vld [vmem:[%s1129 + $0x20] sm:$0xff]
                %1134 = vst [vmem:[%s1130 + $0x20] sm:$0xff] %v1133
                %v1135 = vld [vmem:[%s1129 + $0x40] sm:$0xff]
                %1136 = vst [vmem:[%s1130 + $0x40] sm:$0xff] %v1135
                %v1137 = vld [vmem:[%s1129 + $0x60] sm:$0xff]
                %1138 = vst [vmem:[%s1130 + $0x60] sm:$0xff] %v1137
                %v1139 = vld [vmem:[%s1129 + $0x80] sm:$0xff]
                %1140 = vst [vmem:[%s1130 + $0x80] sm:$0xff] %v1139
                %v1141 = vld [vmem:[%s1129 + $0xa0] sm:$0xff]
                %1142 = vst [vmem:[%s1130 + $0xa0] sm:$0xff] %v1141
                %v1143 = vld [vmem:[%s1129 + $0xc0] sm:$0xff]
                %1144 = vst [vmem:[%s1130 + $0xc0] sm:$0xff] %v1143
                %v1145 = vld [vmem:[%s1129 + $0xe0] sm:$0xff]
                %1146 = vst [vmem:[%s1130 + $0xe0] sm:$0xff] %v1145
                %v1147 = vld [vmem:[%s1129 + $0x8] sm:$0xff]
                %1148 = vst [vmem:[%s1130 + $0x8] sm:$0xff] %v1147
                %v1149 = vld [vmem:[%s1129 + $0x28] sm:$0xff]
                %1150 = vst [vmem:[%s1130 + $0x28] sm:$0xff] %v1149
                %v1151 = vld [vmem:[%s1129 + $0x48] sm:$0xff]
                %1152 = vst [vmem:[%s1130 + $0x48] sm:$0xff] %v1151
                %v1153 = vld [vmem:[%s1129 + $0x68] sm:$0xff]
                %1154 = vst [vmem:[%s1130 + $0x68] sm:$0xff] %v1153
                %v1155 = vld [vmem:[%s1129 + $0x88] sm:$0xff]
                %1156 = vst [vmem:[%s1130 + $0x88] sm:$0xff] %v1155
                %v1157 = vld [vmem:[%s1129 + $0xa8] sm:$0xff]
                %1158 = vst [vmem:[%s1130 + $0xa8] sm:$0xff] %v1157
                %v1159 = vld [vmem:[%s1129 + $0xc8] sm:$0xff]
                %1160 = vst [vmem:[%s1130 + $0xc8] sm:$0xff] %v1159
                %v1161 = vld [vmem:[%s1129 + $0xe8] sm:$0xff]
                %1162 = vst [vmem:[%s1130 + $0xe8] sm:$0xff] %v1161
                %v1163 = vld [vmem:[%s1129 + $0x10] sm:$0xff]
                %1164 = vst [vmem:[%s1130 + $0x10] sm:$0xff] %v1163
                %v1165 = vld [vmem:[%s1129 + $0x30] sm:$0xff]
                %1166 = vst [vmem:[%s1130 + $0x30] sm:$0xff] %v1165
                %v1167 = vld [vmem:[%s1129 + $0x50] sm:$0xff]
                %1168 = vst [vmem:[%s1130 + $0x50] sm:$0xff] %v1167
                %v1169 = vld [vmem:[%s1129 + $0x70] sm:$0xff]
                %1170 = vst [vmem:[%s1130 + $0x70] sm:$0xff] %v1169
                %v1171 = vld [vmem:[%s1129 + $0x90] sm:$0xff]
                %1172 = vst [vmem:[%s1130 + $0x90] sm:$0xff] %v1171
                %v1173 = vld [vmem:[%s1129 + $0xb0] sm:$0xff]
                %1174 = vst [vmem:[%s1130 + $0xb0] sm:$0xff] %v1173
                %v1175 = vld [vmem:[%s1129 + $0xd0] sm:$0xff]
                %1176 = vst [vmem:[%s1130 + $0xd0] sm:$0xff] %v1175
                %v1177 = vld [vmem:[%s1129 + $0xf0] sm:$0xff]
                %1178 = vst [vmem:[%s1130 + $0xf0] sm:$0xff] %v1177
                %v1179 = vld [vmem:[%s1129 + $0x18] sm:$0xff]
                %1180 = vst [vmem:[%s1130 + $0x18] sm:$0xff] %v1179
                %v1181 = vld [vmem:[%s1129 + $0x38] sm:$0xff]
                %1182 = vst [vmem:[%s1130 + $0x38] sm:$0xff] %v1181
                %v1183 = vld [vmem:[%s1129 + $0x58] sm:$0xff]
                %1184 = vst [vmem:[%s1130 + $0x58] sm:$0xff] %v1183
                %v1185 = vld [vmem:[%s1129 + $0x78] sm:$0xff]
                %1186 = vst [vmem:[%s1130 + $0x78] sm:$0xff] %v1185
                %v1187 = vld [vmem:[%s1129 + $0x98] sm:$0xff]
                %1188 = vst [vmem:[%s1130 + $0x98] sm:$0xff] %v1187
                %v1189 = vld [vmem:[%s1129 + $0xb8] sm:$0xff]
                %1190 = vst [vmem:[%s1130 + $0xb8] sm:$0xff] %v1189
                %v1191 = vld [vmem:[%s1129 + $0xd8] sm:$0xff]
                %1192 = vst [vmem:[%s1130 + $0xd8] sm:$0xff] %v1191
                %v1193 = vld [vmem:[%s1129 + $0xf8] sm:$0xff]
                %1194 = vst [vmem:[%s1130 + $0xf8] sm:$0xff] %v1193
                %s1195 = sadd.s32 1, %s1128
                %p1196 = scmp.ge.s32.totalorder %s1195, %s1121
                %s1197 = scalar_select %p1196, 0, %s1195
                %s1198 = smul.u32 %s1197, 256
                %s1199 = smul.u32 %s1197, 256
                %s1200 = scalar_lea.vmem %s1102, %s1198 [#allocation2]
                %s1201 = scalar_lea.vmem %s1115, %s1199
              $region45: #{generator_forward.6} parent=39 // loop_footer
                %s1125 = sadd.s32 %s1123, 1
              $region46: #{generator_forward.6} parent=39 // loop_footer_branch
                %1122 = sbr.rel target = $region42
              $region47: #{generator_forward.6} parent=39 // loop_exit
                _
              %s1202 = sshrl.u32 %s1109, 3
              %s1203 = sand.u32 %s1109, 7
              %s1204 = smul.u32 %s1202, 8
              %s1205 = smul.u32 32, %s1204
              %s1206 = scalar_lea.vmem %s1102, %s1205 [#allocation2]
              %s1207 = smul.u32 32, %s1204
              %s1208 = scalar_lea.vmem %s1115, %s1207
              // While loop
              $region48: #{generator_forward.6} parent=39 // loop_pre_header
                _
              $region49: #{generator_forward.6} parent=39 // loop_header
                %s1210 = sphi 0, %s1212
                %p1211 = scmp.ge.s32.totalorder %s1210, %s1203
                %s1215 = sphi 0, %s1228
                %s1216 = sphi %s1206, %s1231
                %s1217 = sphi %s1208, %s1232
              $region50: #{generator_forward.6} parent=39 // loop_header_branch
                %1214 = sbr.rel (%p1211) target = $region54
              $region51: #{generator_forward.6} parent=39 // loop_body
                %v1218 = vld [vmem:[%s1216] sm:$0xff]
                %1219 = vst [vmem:[%s1217] sm:$0xff] %v1218
                %v1220 = vld [vmem:[%s1216 + $0x8] sm:$0xff]
                %1221 = vst [vmem:[%s1217 + $0x8] sm:$0xff] %v1220
                %v1222 = vld [vmem:[%s1216 + $0x10] sm:$0xff]
                %1223 = vst [vmem:[%s1217 + $0x10] sm:$0xff] %v1222
                %v1224 = vld [vmem:[%s1216 + $0x18] sm:$0xff]
                %1225 = vst [vmem:[%s1217 + $0x18] sm:$0xff] %v1224
                %s1226 = sadd.s32 1, %s1215
                %p1227 = scmp.ge.s32.totalorder %s1226, %s1203
                %s1228 = scalar_select %p1227, 0, %s1226
                %s1229 = smul.u32 %s1228, 32
                %s1230 = smul.u32 %s1228, 32
                %s1231 = scalar_lea.vmem %s1206, %s1229 [#allocation2]
                %s1232 = scalar_lea.vmem %s1208, %s1230
              $region52: #{generator_forward.6} parent=39 // loop_footer
                %s1212 = sadd.s32 %s1210, 1
              $region53: #{generator_forward.6} parent=39 // loop_footer_branch
                %1209 = sbr.rel target = $region49
              $region54: #{generator_forward.6} parent=39 // loop_exit
                _
            $region40: #{generator_forward.6} parent=35 // pred_fallthru
              _
            // Predicated region
            $region55: #{generator_forward.6} parent=35 // pred_check
              _
            $region56: #{generator_forward.6} parent=35 // pred_check_branch
              %1234 = sbr.rel target = $region58
            $region57: #{generator_forward.6} parent=35 // pred_region
              _
            $region58: #{generator_forward.6} parent=35 // pred_fallthru
              _
          $region36: #{generator_forward.6} parent=31 // pred_fallthru
            _
          %1235 = vnop
        $region32: #{generator_forward.6} parent=27 // pred_fallthru
          _
      $region28: #{generator_forward.6} parent=5 // pred_fallthru
        _
      %p1236 = scmp.le.s32.totalorder 2, %s8
      // Predicated region
      $region59: #{generator_forward.6} parent=5 // pred_check
        %p1237 = pneg %p1236
      $region60: #{generator_forward.6} parent=5 // pred_check_branch
        %1239 = sbr.rel (%p1237) target = $region62
      $region61: #{generator_forward.6} parent=5 // pred_region
        %s1240 = ssub.s32 %s8, 2
        // Predicated region
        $region63: #{generator_forward.6} parent=61 // pred_check
          %p1241 = pneg %p84
        $region64: #{generator_forward.6} parent=61 // pred_check_branch
          %1243 = sbr.rel (%p1241) target = $region66
        $region65: #{generator_forward.6} parent=61 // pred_region
          %s1244 = sand.u32 %s69, 1
          %s1245 = sand.u32 %s69, 1
          %s1246 = smul.addr %s1245, 256
          %s1247 = scalar_lea.vmem [#allocation2], %s1246
        $region66: #{generator_forward.6} parent=61 // pred_fallthru
          _
      $region62: #{generator_forward.6} parent=5 // pred_fallthru
        _
    $region6: #{generator_forward.6} parent=1 // loop_footer
      %s12 = sadd.s32 1, %s8
    $region7: #{generator_forward.6} parent=1 // loop_footer_branch
      %7 = sbr.rel target = $region3
    $region8: #{generator_forward.6} parent=1 // loop_exit
      _

// kernel: generator_forward.5
$region0: #{generator_forward.5}
  #allocation0 [shape = 'u32[]', space=smem, size = 0x4, offset = 0x4, fixed_abs, tag = 'smem constant byte address 0x4 - core index']
  #allocation1 [shape = 'u32[144,128]{1,0:T(1,128)}', space=vmem, size = 0x12000, scoped, tag = 'internal scratch']
  %s0 = inlined_call_operand.vmem [shape: bf16[2,1024], index: 0, kind: input, shape index: {}]
  %s1 = inlined_call_operand.hbm [shape: bf16[1024,6272], index: 1, kind: input, shape index: {}]
  %s2 = inlined_call_operand.vmem [shape: f32[1,6272], index: 2, kind: input, shape index: {}]
  %s3 = inlined_call_operand.vmem [shape: f32[1,6272], index: 3, kind: input, shape index: {}]
  %s4 = inlined_call_operand.vmem [shape: f32[1,6272], index: 4, kind: input, shape index: {}]
  %s5 = inlined_call_operand.vmem [shape: bf16[2,6272], index: 5, kind: output, shape index: {}]
  %s6 = sld [smem:[#allocation0]]
  $region119: #{generator_forward.5} parent=0
    _
  %s8 = ssub.s32 1, %s6
  %s9 = scalar_select 0, %s8, %s6
  $region1: #{generator_forward.5} parent=0
    #allocation2 [shape = 'u8[2621440]{0}', space=vmem, size = 0x280000, scoped, tag = 'input window, operand 1']
    #allocation3 [shape = 's32[2]{0}', space=sflag, size = 0x8, scoped, tag = 'scoped memory for generator_forward.5']
    #allocation4 [shape = 'u8[5120]{0}', space=vmem, size = 0x1400, scoped, tag = 'output window, operand 0']
    %10 = vsyncpa [#allocation3], 0
    %s11 = scalar_lea.sflag [#allocation3], 1
    %12 = vsyncpa %s11, 0
    loop: start=0, step=1, limit=12
    $region2: #{generator_forward.5} parent=1 // loop_pre_header
      _
    $region3: #{generator_forward.5} parent=1 // loop_header
      %s14 = sphi 0, %s18
      %p15 = scmp.ge.s32.totalorder %s14, 12
      %s22 = sphi 0, %s22
      %s24 = sphi 0, %s22
      %s25 = sphi 0, %s24
      %s39 = sphi 0, %s25
      %s45 = sphi 0, %s47
      %s48 = sphi 0, %s45
      %s49 = sphi 0, %s48
      %s65 = sphi 0, %s49
      %s71 = sphi 0, %s73
      %s74 = sphi 0, %s71
      %s75 = sphi 0, %s74
      %s91 = sphi 0, %s75
      %s97 = sphi 0, %s99
      %s100 = sphi 0, %s97
      %s101 = sphi 0, %s100
      %s117 = sphi 0, %s101
      %s123 = sphi 0, %s125
      %s126 = sphi 0, %s123
      %s127 = sphi 0, %s126
      %s143 = sphi 0, %s127
      %s149 = sphi 0, %s151
      %s152 = sphi 0, %s149
      %s153 = sphi 0, %s152
      %s169 = sphi 0, %s153
    $region4: #{generator_forward.5} parent=1 // loop_header_branch
      %17 = sbr.rel (%p15) target = $region8
    $region5: #{generator_forward.5} parent=1 // loop_body
      %s19 = ssub.s32 %s14, 1
      %s20 = ssub.s32 %s14, 2
      %s21 = sadd.s32 %s14, 1
      %s23 = sadd.s32 %s22, 1
      %p26 = scmp.eq.s32.totalorder %s14, 9
      %p27 = scmp.ne.s32.totalorder %s22, %s24
      %p28 = scmp.eq.s32.totalorder %s14, 0
      %p29 = por %p27, %p28
      %p30 = scmp.ne.s32.totalorder %s22, %s24
      %p31 = scmp.eq.s32.totalorder %s19, 9
      %p32 = por %p30, %p31
      %p33 = scmp.ne.s32.totalorder %s24, %s25
      %p34 = scmp.eq.s32.totalorder %s19, 0
      %p35 = por %p33, %p34
      %p36 = scmp.ne.s32.totalorder %s24, %s25
      %p37 = scmp.eq.s32.totalorder %s20, 9
      %p38 = por %p36, %p37
      %p40 = scmp.ne.s32.totalorder %s25, %s39
      %p41 = scmp.eq.s32.totalorder %s20, 0
      %p42 = por %p40, %p41
      %s43 = ssub.s32 %s14, %s21
      %p44 = scmp.eq.s32.totalorder %s43, 0
      %s46 = sadd.s32 %s45, 1
      %s47 = scalar_select %p44, %s45, %s46
      %p50 = pneg %p44
      %p51 = scmp.eq.s32.totalorder %s14, 9
      %p52 = por %p50, %p51
      %p53 = scmp.ne.s32.totalorder %s45, %s48
      %p54 = scmp.eq.s32.totalorder %s14, 0
      %p55 = por %p53, %p54
      %p56 = scmp.ne.s32.totalorder %s45, %s48
      %p57 = scmp.eq.s32.totalorder %s19, 9
      %p58 = por %p56, %p57
      %p59 = scmp.ne.s32.totalorder %s48, %s49
      %p60 = scmp.eq.s32.totalorder %s19, 0
      %p61 = por %p59, %p60
      %p62 = scmp.ne.s32.totalorder %s48, %s49
      %p63 = scmp.eq.s32.totalorder %s20, 9
      %p64 = por %p62, %p63
      %p66 = scmp.ne.s32.totalorder %s49, %s65
      %p67 = scmp.eq.s32.totalorder %s20, 0
      %p68 = por %p66, %p67
      %s69 = ssub.s32 %s14, %s21
      %p70 = scmp.eq.s32.totalorder %s69, 0
      %s72 = sadd.s32 %s71, 1
      %s73 = scalar_select %p70, %s71, %s72
      %p76 = pneg %p70
      %p77 = scmp.eq.s32.totalorder %s14, 9
      %p78 = por %p76, %p77
      %p79 = scmp.ne.s32.totalorder %s71, %s74
      %p80 = scmp.eq.s32.totalorder %s14, 0
      %p81 = por %p79, %p80
      %p82 = scmp.ne.s32.totalorder %s71, %s74
      %p83 = scmp.eq.s32.totalorder %s19, 9
      %p84 = por %p82, %p83
      %p85 = scmp.ne.s32.totalorder %s74, %s75
      %p86 = scmp.eq.s32.totalorder %s19, 0
      %p87 = por %p85, %p86
      %p88 = scmp.ne.s32.totalorder %s74, %s75
      %p89 = scmp.eq.s32.totalorder %s20, 9
      %p90 = por %p88, %p89
      %p92 = scmp.ne.s32.totalorder %s75, %s91
      %p93 = scmp.eq.s32.totalorder %s20, 0
      %p94 = por %p92, %p93
      %s95 = ssub.s32 %s14, %s21
      %p96 = scmp.eq.s32.totalorder %s95, 0
      %s98 = sadd.s32 %s97, 1
      %s99 = scalar_select %p96, %s97, %s98
      %p102 = pneg %p96
      %p103 = scmp.eq.s32.totalorder %s14, 9
      %p104 = por %p102, %p103
      %p105 = scmp.ne.s32.totalorder %s97, %s100
      %p106 = scmp.eq.s32.totalorder %s14, 0
      %p107 = por %p105, %p106
      %p108 = scmp.ne.s32.totalorder %s97, %s100
      %p109 = scmp.eq.s32.totalorder %s19, 9
      %p110 = por %p108, %p109
      %p111 = scmp.ne.s32.totalorder %s100, %s101
      %p112 = scmp.eq.s32.totalorder %s19, 0
      %p113 = por %p111, %p112
      %p114 = scmp.ne.s32.totalorder %s100, %s101
      %p115 = scmp.eq.s32.totalorder %s20, 9
      %p116 = por %p114, %p115
      %p118 = scmp.ne.s32.totalorder %s101, %s117
      %p119 = scmp.eq.s32.totalorder %s20, 0
      %p120 = por %p118, %p119
      %s121 = ssub.s32 %s14, %s21
      %p122 = scmp.eq.s32.totalorder %s121, 0
      %s124 = sadd.s32 %s123, 1
      %s125 = scalar_select %p122, %s123, %s124
      %p128 = pneg %p122
      %p129 = scmp.eq.s32.totalorder %s14, 9
      %p130 = por %p128, %p129
      %p131 = scmp.ne.s32.totalorder %s123, %s126
      %p132 = scmp.eq.s32.totalorder %s14, 0
      %p133 = por %p131, %p132
      %p134 = scmp.ne.s32.totalorder %s123, %s126
      %p135 = scmp.eq.s32.totalorder %s19, 9
      %p136 = por %p134, %p135
      %p137 = scmp.ne.s32.totalorder %s126, %s127
      %p138 = scmp.eq.s32.totalorder %s19, 0
      %p139 = por %p137, %p138
      %p140 = scmp.ne.s32.totalorder %s126, %s127
      %p141 = scmp.eq.s32.totalorder %s20, 9
      %p142 = por %p140, %p141
      %p144 = scmp.ne.s32.totalorder %s127, %s143
      %p145 = scmp.eq.s32.totalorder %s20, 0
      %p146 = por %p144, %p145
      %s147 = ssub.s32 %s14, %s21
      %p148 = scmp.eq.s32.totalorder %s147, 0
      %s150 = sadd.s32 %s149, 1
      %s151 = scalar_select %p148, %s149, %s150
      %p154 = pneg %p148
      %p155 = scmp.eq.s32.totalorder %s14, 9
      %p156 = por %p154, %p155
      %p157 = scmp.ne.s32.totalorder %s149, %s152
      %p158 = scmp.eq.s32.totalorder %s14, 0
      %p159 = por %p157, %p158
      %p160 = scmp.ne.s32.totalorder %s149, %s152
      %p161 = scmp.eq.s32.totalorder %s19, 9
      %p162 = por %p160, %p161
      %p163 = scmp.ne.s32.totalorder %s152, %s153
      %p164 = scmp.eq.s32.totalorder %s19, 0
      %p165 = por %p163, %p164
      %p166 = scmp.ne.s32.totalorder %s152, %s153
      %p167 = scmp.eq.s32.totalorder %s20, 9
      %p168 = por %p166, %p167
      %p170 = scmp.ne.s32.totalorder %s153, %s169
      %p171 = scmp.eq.s32.totalorder %s20, 0
      %p172 = por %p170, %p171
      %p173 = scmp.le.s32.totalorder 1, %s14
      %p174 = scmp.lt.s32.totalorder %s14, 11
      %p175 = pnand %p173, %p174
      %p176 = pneg %p175
      // Predicated region
      $region9: #{generator_forward.5} parent=5 // pred_check
        _
      $region10: #{generator_forward.5} parent=5 // pred_check_branch
        %178 = sbr.rel (%p175) target = $region12
      $region11: #{generator_forward.5} parent=5 // pred_region
        %s179 = ssub.s32 %s14, 1
        // Predicated region
        $region13: #{generator_forward.5} parent=11 // pred_check
          %p180 = pneg %p35
        $region14: #{generator_forward.5} parent=11 // pred_check_branch
          %182 = sbr.rel (%p180) target = $region16
        $region15: #{generator_forward.5} parent=11 // pred_region
          _
        $region16: #{generator_forward.5} parent=11 // pred_fallthru
          _
      $region12: #{generator_forward.5} parent=5 // pred_fallthru
        _
      %p183 = scmp.lt.s32.totalorder %s14, 10
      // Predicated region
      $region17: #{generator_forward.5} parent=5 // pred_check
        %p184 = pneg %p183
      $region18: #{generator_forward.5} parent=5 // pred_check_branch
        %186 = sbr.rel (%p184) target = $region20
      $region19: #{generator_forward.5} parent=5 // pred_region
        // Predicated region
        $region21: #{generator_forward.5} parent=19 // pred_check
          %p187 = pneg %p55
        $region22: #{generator_forward.5} parent=19 // pred_check_branch
          %189 = sbr.rel (%p187) target = $region24
        $region23: #{generator_forward.5} parent=19 // pred_region
          %s190 = sand.u32 %s45, 1
          %s191 = scalar_lea.sflag [#allocation3], %s190
          %s192 = sand.u32 %s45, 1
          %s193 = smul.addr %s192, 2560
          %s194 = scalar_lea.vmem [#allocation2], %s193
          %s195 = smul.u32 5, %s14
          %s196 = ssub.s32 49, %s195
          %p197 = scmp.lt.s32.totalorder %s196, 5
          %s198 = scalar_select %p197, %s196, 5
          %s199 = smul.u32 8192, %s198
          %s201 = ssub.s32 40960, %s199
          %202 = vsyncadd %s191, %s201
          %p203 = scmp.ne.s32.totalorder 0, %s199
          %s204 = smul.addr %s195, 64
          %s205 = scalar_lea.hbm %s1, %s204
          %s206 = smul.u32 %s198, 4
          %s207 = smul.u32 %s206, 128
          %s208 = sshll.u32 %s194, 4
          %s209 = int_to_ptr.vmem [resolvable:$true] %s208
          %s210 = sshll.u32 %s207, 4
          %214 = dma.hbm_to_vmem [thread:$0]  (%p203), %s205, %s210, %s209, %s191, 3136, 320, %s206
        $region24: #{generator_forward.5} parent=19 // pred_fallthru
          _
        // Predicated region
        $region25: #{generator_forward.5} parent=19 // pred_check
          %p215 = pneg %p81
        $region26: #{generator_forward.5} parent=19 // pred_check_branch
          %217 = sbr.rel (%p215) target = $region28
        $region27: #{generator_forward.5} parent=19 // pred_region
          %s218 = smul.u32 5, %s14
          %s219 = ssub.s32 49, %s218
          %p220 = scmp.lt.s32.totalorder %s219, 5
          %s221 = scalar_select %p220, %s219, 5
          %s222 = smul.u32 16, %s221
          %p223 = scmp.lt.s32.totalorder %s218, 48
          %s224 = scalar_select %p223, %s218, 48
          %s225 = scalar_lea.vmem %s2, %s224
          %s226 = smul.u32 5, %s14
          %s227 = ssub.s32 49, %s226
          %p228 = scmp.lt.s32.totalorder %s227, 5
          %s229 = scalar_select %p228, %s227, 5
          %s230 = smul.u32 16, %s229
        $region28: #{generator_forward.5} parent=19 // pred_fallthru
          _
        // Predicated region
        $region29: #{generator_forward.5} parent=19 // pred_check
          %p231 = pneg %p107
        $region30: #{generator_forward.5} parent=19 // pred_check_branch
          %233 = sbr.rel (%p231) target = $region32
        $region31: #{generator_forward.5} parent=19 // pred_region
          %s234 = smul.u32 5, %s14
          %s235 = ssub.s32 49, %s234
          %p236 = scmp.lt.s32.totalorder %s235, 5
          %s237 = scalar_select %p236, %s235, 5
          %s238 = smul.u32 16, %s237
          %p239 = scmp.lt.s32.totalorder %s234, 48
          %s240 = scalar_select %p239, %s234, 48
          %s241 = scalar_lea.vmem %s3, %s240
          %s242 = smul.u32 5, %s14
          %s243 = ssub.s32 49, %s242
          %p244 = scmp.lt.s32.totalorder %s243, 5
          %s245 = scalar_select %p244, %s243, 5
          %s246 = smul.u32 16, %s245
        $region32: #{generator_forward.5} parent=19 // pred_fallthru
          _
        // Predicated region
        $region33: #{generator_forward.5} parent=19 // pred_check
          %p247 = pneg %p133
        $region34: #{generator_forward.5} parent=19 // pred_check_branch
          %249 = sbr.rel (%p247) target = $region36
        $region35: #{generator_forward.5} parent=19 // pred_region
          %s250 = smul.u32 5, %s14
          %s251 = ssub.s32 49, %s250
          %p252 = scmp.lt.s32.totalorder %s251, 5
          %s253 = scalar_select %p252, %s251, 5
          %s254 = smul.u32 16, %s253
          %p255 = scmp.lt.s32.totalorder %s250, 48
          %s256 = scalar_select %p255, %s250, 48
          %s257 = scalar_lea.vmem %s4, %s256
          %s258 = smul.u32 5, %s14
          %s259 = ssub.s32 49, %s258
          %p260 = scmp.lt.s32.totalorder %s259, 5
          %s261 = scalar_select %p260, %s259, 5
          %s262 = smul.u32 16, %s261
        $region36: #{generator_forward.5} parent=19 // pred_fallthru
          _
      $region20: #{generator_forward.5} parent=5 // pred_fallthru
        _
      %p263 = scmp.le.s32.totalorder 1, %s14
      %p264 = scmp.lt.s32.totalorder %s14, 11
      %p265 = pnand %p263, %p264
      %p266 = pneg %p265
      // Predicated region
      $region37: #{generator_forward.5} parent=5 // pred_check
        _
      $region38: #{generator_forward.5} parent=5 // pred_check_branch
        %268 = sbr.rel (%p265) target = $region40
      $region39: #{generator_forward.5} parent=5 // pred_region
        %s269 = ssub.s32 %s14, 1
        %s270 = sand.u32 %s48, 1
        %s271 = scalar_lea.sflag [#allocation3], %s270
        %s272 = sand.u32 %s48, 1
        %s273 = smul.addr %s272, 2560
        %s274 = scalar_lea.vmem [#allocation2], %s273
        // Predicated region
        $region41: #{generator_forward.5} parent=39 // pred_check
          %p275 = pneg %p61
        $region42: #{generator_forward.5} parent=39 // pred_check_branch
          %277 = sbr.rel (%p275) target = $region44
        $region43: #{generator_forward.5} parent=39 // pred_region
          %278 = dma.done %s271, 40960
        $region44: #{generator_forward.5} parent=39 // pred_fallthru
          _
        %p279 = pneg %p35
        %p280 = pneg %p32
        %s281 = sand.u32 %s48, 1
        %s282 = scalar_lea.sflag [#allocation3], %s281
        %s283 = sand.u32 %s48, 1
        %s284 = smul.addr %s283, 2560
        %s285 = scalar_lea.vmem [#allocation2], %s284
        %p286 = pneg %p61
        %p287 = pneg %p58
        %s288 = smul.u32 5, %s19
        %s289 = ssub.s32 49, %s288
        %p290 = scmp.lt.s32.totalorder %s289, 5
        %s291 = scalar_select %p290, %s289, 5
        %s292 = smul.u32 16, %s291
        %p293 = scmp.lt.s32.totalorder %s288, 48
        %s294 = scalar_select %p293, %s288, 48
        %s295 = scalar_lea.vmem %s2, %s294
        %p296 = pneg %p87
        %p297 = pneg %p84
        %s298 = smul.u32 5, %s19
        %s299 = ssub.s32 49, %s298
        %p300 = scmp.lt.s32.totalorder %s299, 5
        %s301 = scalar_select %p300, %s299, 5
        %s302 = smul.u32 16, %s301
        %p303 = scmp.lt.s32.totalorder %s298, 48
        %s304 = scalar_select %p303, %s298, 48
        %s305 = scalar_lea.vmem %s3, %s304
        %p306 = pneg %p113
        %p307 = pneg %p110
        %s308 = smul.u32 5, %s19
        %s309 = ssub.s32 49, %s308
        %p310 = scmp.lt.s32.totalorder %s309, 5
        %s311 = scalar_select %p310, %s309, 5
        %s312 = smul.u32 16, %s311
        %p313 = scmp.lt.s32.totalorder %s308, 48
        %s314 = scalar_select %p313, %s308, 48
        %s315 = scalar_lea.vmem %s4, %s314
        %p316 = pneg %p139
        %p317 = pneg %p136
        %p318 = pneg %p165
        %p319 = pneg %p162
        %s320 = sand.u32 %s152, 1
        %s321 = sand.u32 %s152, 1
        %s322 = smul.addr %s321, 5
        %s323 = scalar_lea.vmem [#allocation4], %s322
        %s324 = smul.u32 5, %s19
        %s325 = ssub.s32 49, %s324
        %p326 = scmp.lt.s32.totalorder %s325, 5
        %s327 = scalar_select %p326, %s325, 5
        %s328 = smul.u32 8192, %s327
        %s329 = smul.u32 5, %s19
        %s330 = ssub.s32 49, %s329
        %p331 = scmp.lt.s32.totalorder %s330, 5
        %s332 = scalar_select %p331, %s330, 5
        %s333 = smul.u32 16, %s332
        %p334 = scmp.lt.s32.totalorder %s329, 48
        %s335 = scalar_select %p334, %s329, 48
        %s336 = scalar_lea.vmem %s2, %s335
        %s337 = smul.u32 5, %s19
        %s338 = ssub.s32 49, %s337
        %p339 = scmp.lt.s32.totalorder %s338, 5
        %s340 = scalar_select %p339, %s338, 5
        %s341 = smul.u32 16, %s340
        %s342 = smul.u32 5, %s19
        %s343 = ssub.s32 49, %s342
        %p344 = scmp.lt.s32.totalorder %s343, 5
        %s345 = scalar_select %p344, %s343, 5
        %s346 = smul.u32 16, %s345
        %p347 = scmp.lt.s32.totalorder %s342, 48
        %s348 = scalar_select %p347, %s342, 48
        %s349 = scalar_lea.vmem %s3, %s348
        %s350 = smul.u32 5, %s19
        %s351 = ssub.s32 49, %s350
        %p352 = scmp.lt.s32.totalorder %s351, 5
        %s353 = scalar_select %p352, %s351, 5
        %s354 = smul.u32 16, %s353
        %s355 = smul.u32 5, %s19
        %s356 = ssub.s32 49, %s355
        %p357 = scmp.lt.s32.totalorder %s356, 5
        %s358 = scalar_select %p357, %s356, 5
        %s359 = smul.u32 16, %s358
        %p360 = scmp.lt.s32.totalorder %s355, 48
        %s361 = scalar_select %p360, %s355, 48
        %s362 = scalar_lea.vmem %s4, %s361
        %s363 = smul.u32 5, %s19
        %s364 = ssub.s32 49, %s363
        %p365 = scmp.lt.s32.totalorder %s364, 5
        %s366 = scalar_select %p365, %s364, 5
        %s367 = smul.u32 16, %s366
        %s368 = smul.u32 5, %s19
        %s369 = ssub.s32 49, %s368
        %p370 = scmp.lt.s32.totalorder %s369, 5
        %s371 = scalar_select %p370, %s369, 5
        %s372 = smul.u32 16, %s371
        %v374 = vld [vmem:[%s0] sm:$0xff]
        %v375 = vld [vmem:[%s274] sm:$0xff]
        %v376 = vld [vmem:[%s274 + $0x8] sm:$0xff]
        %v377 = vld [vmem:[%s274 + $0x10] sm:$0xf]
        %v378 = vld [vmem:[%s274 + $0x14] sm:$0xff]
        %v379 = vld [vmem:[%s274 + $0x1c] sm:$0xff]
        %v380 = vld [vmem:[%s274 + $0x24] sm:$0xf]
        %v381 = vld [vmem:[%s274 + $0x28] sm:$0xff]
        %v382 = vld [vmem:[%s274 + $0x30] sm:$0xff]
        %v383 = vld [vmem:[%s274 + $0x38] sm:$0xf]
        %v384 = vld [vmem:[%s274 + $0x3c] sm:$0xff]
        %v385 = vld [vmem:[%s274 + $0x44] sm:$0xff]
        %v386 = vld [vmem:[%s274 + $0x4c] sm:$0xf]
        %v387 = vld [vmem:[%s274 + $0x50] sm:$0xff]
        %v388 = vld [vmem:[%s274 + $0x58] sm:$0xff]
        %v389 = vld [vmem:[%s274 + $0x60] sm:$0xf]
        %v390 = vld [vmem:[%s274 + $0x64] sm:$0xff]
        %v391 = vld [vmem:[%s274 + $0x6c] sm:$0xff]
        %v392 = vld [vmem:[%s274 + $0x74] sm:$0xf]
        %v393 = vld [vmem:[%s274 + $0x78] sm:$0xff]
        %v394 = vld [vmem:[%s274 + $0x80] sm:$0xff]
        %v395 = vld [vmem:[%s274 + $0x88] sm:$0xf]
        %v396 = vld [vmem:[%s274 + $0x8c] sm:$0xff]
        %v397 = vld [vmem:[%s274 + $0x94] sm:$0xff]
        %v398 = vld [vmem:[%s274 + $0x9c] sm:$0xf]
        %v399 = vld [vmem:[%s274 + $0xa0] sm:$0xff]
        %v400 = vld [vmem:[%s274 + $0xa8] sm:$0xff]
        %v401 = vld [vmem:[%s274 + $0xb0] sm:$0xf]
        %v402 = vld [vmem:[%s274 + $0xb4] sm:$0xff]
        %v403 = vld [vmem:[%s274 + $0xbc] sm:$0xff]
        %v404 = vld [vmem:[%s274 + $0xc4] sm:$0xf]
        %v405 = vld [vmem:[%s274 + $0xc8] sm:$0xff]
        %v406 = vld [vmem:[%s274 + $0xd0] sm:$0xff]
        %v407 = vld [vmem:[%s274 + $0xd8] sm:$0xf]
        %v408 = vld [vmem:[%s274 + $0xdc] sm:$0xff]
        %v409 = vld [vmem:[%s274 + $0xe4] sm:$0xff]
        %v410 = vld [vmem:[%s274 + $0xec] sm:$0xf]
        %v411 = vld [vmem:[%s274 + $0xf0] sm:$0xff]
        %v412 = vld [vmem:[%s274 + $0xf8] sm:$0xff]
        %v413 = vld [vmem:[%s274 + $0x100] sm:$0xf]
        %v414 = vld [vmem:[%s274 + $0x104] sm:$0xff]
        %v415 = vld [vmem:[%s274 + $0x10c] sm:$0xff]
        %v416 = vld [vmem:[%s274 + $0x114] sm:$0xf]
        %v417 = vld [vmem:[%s274 + $0x118] sm:$0xff]
        %v418 = vld [vmem:[%s274 + $0x120] sm:$0xff]
        %v419 = vld [vmem:[%s274 + $0x128] sm:$0xf]
        %v420 = vld [vmem:[%s274 + $0x12c] sm:$0xff]
        %v421 = vld [vmem:[%s274 + $0x134] sm:$0xff]
        %v422 = vld [vmem:[%s274 + $0x13c] sm:$0xf]
        %v423 = vld [vmem:[%s274 + $0x140] sm:$0xff]
        %v424 = vld [vmem:[%s274 + $0x148] sm:$0xff]
        %v425 = vld [vmem:[%s274 + $0x150] sm:$0xf]
        %v426 = vld [vmem:[%s274 + $0x154] sm:$0xff]
        %v427 = vld [vmem:[%s274 + $0x15c] sm:$0xff]
        %v428 = vld [vmem:[%s274 + $0x164] sm:$0xf]
        %v429 = vld [vmem:[%s274 + $0x168] sm:$0xff]
        %v430 = vld [vmem:[%s274 + $0x170] sm:$0xff]
        %v431 = vld [vmem:[%s274 + $0x178] sm:$0xf]
        %v432 = vld [vmem:[%s274 + $0x17c] sm:$0xff]
        %v433 = vld [vmem:[%s274 + $0x184] sm:$0xff]
        %v434 = vld [vmem:[%s274 + $0x18c] sm:$0xf]
        %v435 = vld [vmem:[%s274 + $0x190] sm:$0xff]
        %v436 = vld [vmem:[%s274 + $0x198] sm:$0xff]
        %v437 = vld [vmem:[%s274 + $0x1a0] sm:$0xf]
        %v438 = vld [vmem:[%s274 + $0x1a4] sm:$0xff]
        %v439 = vld [vmem:[%s274 + $0x1ac] sm:$0xff]
        %v440 = vld [vmem:[%s274 + $0x1b4] sm:$0xf]
        %v441 = vld [vmem:[%s274 + $0x1b8] sm:$0xff]
        %v442 = vld [vmem:[%s274 + $0x1c0] sm:$0xff]
        %v443 = vld [vmem:[%s274 + $0x1c8] sm:$0xf]
        %v444 = vld [vmem:[%s274 + $0x1cc] sm:$0xff]
        %v445 = vld [vmem:[%s274 + $0x1d4] sm:$0xff]
        %v446 = vld [vmem:[%s274 + $0x1dc] sm:$0xf]
        %v447 = vld [vmem:[%s274 + $0x1e0] sm:$0xff]
        %v448 = vld [vmem:[%s274 + $0x1e8] sm:$0xff]
        %v449 = vld [vmem:[%s274 + $0x1f0] sm:$0xf]
        %v450 = vld [vmem:[%s274 + $0x1f4] sm:$0xff]
        %v451 = vld [vmem:[%s274 + $0x1fc] sm:$0xff]
        %v452 = vld [vmem:[%s274 + $0x204] sm:$0xf]
        %v453 = vld [vmem:[%s274 + $0x208] sm:$0xff]
        %v454 = vld [vmem:[%s274 + $0x210] sm:$0xff]
        %v455 = vld [vmem:[%s274 + $0x218] sm:$0xf]
        %v456 = vld [vmem:[%s274 + $0x21c] sm:$0xff]
        %v457 = vld [vmem:[%s274 + $0x224] sm:$0xff]
        %v458 = vld [vmem:[%s274 + $0x22c] sm:$0xf]
        %v459 = vld [vmem:[%s274 + $0x230] sm:$0xff]
        %v460 = vld [vmem:[%s274 + $0x238] sm:$0xff]
        %v461 = vld [vmem:[%s274 + $0x240] sm:$0xf]
        %v462 = vld [vmem:[%s274 + $0x244] sm:$0xff]
        %v463 = vld [vmem:[%s274 + $0x24c] sm:$0xff]
        %v464 = vld [vmem:[%s274 + $0x254] sm:$0xf]
        %v465 = vld [vmem:[%s274 + $0x258] sm:$0xff]
        %v466 = vld [vmem:[%s274 + $0x260] sm:$0xff]
        %v467 = vld [vmem:[%s274 + $0x268] sm:$0xf]
        %v468 = vld [vmem:[%s274 + $0x26c] sm:$0xff]
        %v469 = vld [vmem:[%s274 + $0x274] sm:$0xff]
        %v470 = vld [vmem:[%s274 + $0x27c] sm:$0xf]
        %v471 = vld [vmem:[%s274 + $0x280] sm:$0xff]
        %v472 = vld [vmem:[%s274 + $0x288] sm:$0xff]
        %v473 = vld [vmem:[%s274 + $0x290] sm:$0xf]
        %v474 = vld [vmem:[%s274 + $0x294] sm:$0xff]
        %v475 = vld [vmem:[%s274 + $0x29c] sm:$0xff]
        %v476 = vld [vmem:[%s274 + $0x2a4] sm:$0xf]
        %v477 = vld [vmem:[%s274 + $0x2a8] sm:$0xff]
        %v478 = vld [vmem:[%s274 + $0x2b0] sm:$0xff]
        %v479 = vld [vmem:[%s274 + $0x2b8] sm:$0xf]
        %v480 = vld [vmem:[%s274 + $0x2bc] sm:$0xff]
        %v481 = vld [vmem:[%s274 + $0x2c4] sm:$0xff]
        %v482 = vld [vmem:[%s274 + $0x2cc] sm:$0xf]
        %v483 = vld [vmem:[%s274 + $0x2d0] sm:$0xff]
        %v484 = vld [vmem:[%s274 + $0x2d8] sm:$0xff]
        %v485 = vld [vmem:[%s274 + $0x2e0] sm:$0xf]
        %v486 = vld [vmem:[%s274 + $0x2e4] sm:$0xff]
        %v487 = vld [vmem:[%s274 + $0x2ec] sm:$0xff]
        %v488 = vld [vmem:[%s274 + $0x2f4] sm:$0xf]
        %v489 = vld [vmem:[%s274 + $0x2f8] sm:$0xff]
        %v490 = vld [vmem:[%s274 + $0x300] sm:$0xff]
        %v491 = vld [vmem:[%s274 + $0x308] sm:$0xf]
        %v492 = vld [vmem:[%s274 + $0x30c] sm:$0xff]
        %v493 = vld [vmem:[%s274 + $0x314] sm:$0xff]
        %v494 = vld [vmem:[%s274 + $0x31c] sm:$0xf]
        %v495 = vld [vmem:[%s274 + $0x320] sm:$0xff]
        %v496 = vld [vmem:[%s274 + $0x328] sm:$0xff]
        %v497 = vld [vmem:[%s274 + $0x330] sm:$0xf]
        %v498 = vld [vmem:[%s274 + $0x334] sm:$0xff]
        %v499 = vld [vmem:[%s274 + $0x33c] sm:$0xff]
        %v500 = vld [vmem:[%s274 + $0x344] sm:$0xf]
        %v501 = vld [vmem:[%s274 + $0x348] sm:$0xff]
        %v502 = vld [vmem:[%s274 + $0x350] sm:$0xff]
        %v503 = vld [vmem:[%s274 + $0x358] sm:$0xf]
        %v504 = vld [vmem:[%s274 + $0x35c] sm:$0xff]
        %v505 = vld [vmem:[%s274 + $0x364] sm:$0xff]
        %v506 = vld [vmem:[%s274 + $0x36c] sm:$0xf]
        %v507 = vld [vmem:[%s274 + $0x370] sm:$0xff]
        %v508 = vld [vmem:[%s274 + $0x378] sm:$0xff]
        %v509 = vld [vmem:[%s274 + $0x380] sm:$0xf]
        %v510 = vld [vmem:[%s274 + $0x384] sm:$0xff]
        %v511 = vld [vmem:[%s274 + $0x38c] sm:$0xff]
        %v512 = vld [vmem:[%s274 + $0x394] sm:$0xf]
        %v513 = vld [vmem:[%s274 + $0x398] sm:$0xff]
        %v514 = vld [vmem:[%s274 + $0x3a0] sm:$0xff]
        %v515 = vld [vmem:[%s274 + $0x3a8] sm:$0xf]
        %v516 = vld [vmem:[%s274 + $0x3ac] sm:$0xff]
        %v517 = vld [vmem:[%s274 + $0x3b4] sm:$0xff]
        %v518 = vld [vmem:[%s274 + $0x3bc] sm:$0xf]
        %v519 = vld [vmem:[%s274 + $0x3c0] sm:$0xff]
        %v520 = vld [vmem:[%s274 + $0x3c8] sm:$0xff]
        %v521 = vld [vmem:[%s274 + $0x3d0] sm:$0xf]
        %v522 = vld [vmem:[%s274 + $0x3d4] sm:$0xff]
        %v523 = vld [vmem:[%s274 + $0x3dc] sm:$0xff]
        %v524 = vld [vmem:[%s274 + $0x3e4] sm:$0xf]
        %v525 = vld [vmem:[%s274 + $0x3e8] sm:$0xff]
        %v526 = vld [vmem:[%s274 + $0x3f0] sm:$0xff]
        %v527 = vld [vmem:[%s274 + $0x3f8] sm:$0xf]
        %v528 = vld [vmem:[%s274 + $0x3fc] sm:$0xff]
        %v529 = vld [vmem:[%s274 + $0x404] sm:$0xff]
        %v530 = vld [vmem:[%s274 + $0x40c] sm:$0xf]
        %v531 = vld [vmem:[%s274 + $0x410] sm:$0xff]
        %v532 = vld [vmem:[%s274 + $0x418] sm:$0xff]
        %v533 = vld [vmem:[%s274 + $0x420] sm:$0xf]
        %v534 = vld [vmem:[%s274 + $0x424] sm:$0xff]
        %v535 = vld [vmem:[%s274 + $0x42c] sm:$0xff]
        %v536 = vld [vmem:[%s274 + $0x434] sm:$0xf]
        %v537 = vld [vmem:[%s274 + $0x438] sm:$0xff]
        %v538 = vld [vmem:[%s274 + $0x440] sm:$0xff]
        %v539 = vld [vmem:[%s274 + $0x448] sm:$0xf]
        %v540 = vld [vmem:[%s274 + $0x44c] sm:$0xff]
        %v541 = vld [vmem:[%s274 + $0x454] sm:$0xff]
        %v542 = vld [vmem:[%s274 + $0x45c] sm:$0xf]
        %v543 = vld [vmem:[%s274 + $0x460] sm:$0xff]
        %v544 = vld [vmem:[%s274 + $0x468] sm:$0xff]
        %v545 = vld [vmem:[%s274 + $0x470] sm:$0xf]
        %v546 = vld [vmem:[%s274 + $0x474] sm:$0xff]
        %v547 = vld [vmem:[%s274 + $0x47c] sm:$0xff]
        %v548 = vld [vmem:[%s274 + $0x484] sm:$0xf]
        %v549 = vld [vmem:[%s274 + $0x488] sm:$0xff]
        %v550 = vld [vmem:[%s274 + $0x490] sm:$0xff]
        %v551 = vld [vmem:[%s274 + $0x498] sm:$0xf]
        %v552 = vld [vmem:[%s274 + $0x49c] sm:$0xff]
        %v553 = vld [vmem:[%s274 + $0x4a4] sm:$0xff]
        %v554 = vld [vmem:[%s274 + $0x4ac] sm:$0xf]
        %v555 = vld [vmem:[%s274 + $0x4b0] sm:$0xff]
        %v556 = vld [vmem:[%s274 + $0x4b8] sm:$0xff]
        %v557 = vld [vmem:[%s274 + $0x4c0] sm:$0xf]
        %v558 = vld [vmem:[%s274 + $0x4c4] sm:$0xff]
        %v559 = vld [vmem:[%s274 + $0x4cc] sm:$0xff]
        %v560 = vld [vmem:[%s274 + $0x4d4] sm:$0xf]
        %v561 = vld [vmem:[%s274 + $0x4d8] sm:$0xff]
        %v562 = vld [vmem:[%s274 + $0x4e0] sm:$0xff]
        %v563 = vld [vmem:[%s274 + $0x4e8] sm:$0xf]
        %v564 = vld [vmem:[%s274 + $0x4ec] sm:$0xff]
        %v565 = vld [vmem:[%s274 + $0x4f4] sm:$0xff]
        %v566 = vld [vmem:[%s274 + $0x4fc] sm:$0xf]
        %v567 = vld [vmem:[%s274 + $0x500] sm:$0xff]
        %v568 = vld [vmem:[%s274 + $0x508] sm:$0xff]
        %v569 = vld [vmem:[%s274 + $0x510] sm:$0xf]
        %v570 = vld [vmem:[%s274 + $0x514] sm:$0xff]
        %v571 = vld [vmem:[%s274 + $0x51c] sm:$0xff]
        %v572 = vld [vmem:[%s274 + $0x524] sm:$0xf]
        %v573 = vld [vmem:[%s274 + $0x528] sm:$0xff]
        %v574 = vld [vmem:[%s274 + $0x530] sm:$0xff]
        %v575 = vld [vmem:[%s274 + $0x538] sm:$0xf]
        %v576 = vld [vmem:[%s274 + $0x53c] sm:$0xff]
        %v577 = vld [vmem:[%s274 + $0x544] sm:$0xff]
        %v578 = vld [vmem:[%s274 + $0x54c] sm:$0xf]
        %v579 = vld [vmem:[%s274 + $0x550] sm:$0xff]
        %v580 = vld [vmem:[%s274 + $0x558] sm:$0xff]
        %v581 = vld [vmem:[%s274 + $0x560] sm:$0xf]
        %v582 = vld [vmem:[%s274 + $0x564] sm:$0xff]
        %v583 = vld [vmem:[%s274 + $0x56c] sm:$0xff]
        %v584 = vld [vmem:[%s274 + $0x574] sm:$0xf]
        %v585 = vld [vmem:[%s274 + $0x578] sm:$0xff]
        %v586 = vld [vmem:[%s274 + $0x580] sm:$0xff]
        %v587 = vld [vmem:[%s274 + $0x588] sm:$0xf]
        %v588 = vld [vmem:[%s274 + $0x58c] sm:$0xff]
        %v589 = vld [vmem:[%s274 + $0x594] sm:$0xff]
        %v590 = vld [vmem:[%s274 + $0x59c] sm:$0xf]
        %v591 = vld [vmem:[%s274 + $0x5a0] sm:$0xff]
        %v592 = vld [vmem:[%s274 + $0x5a8] sm:$0xff]
        %v593 = vld [vmem:[%s274 + $0x5b0] sm:$0xf]
        %v594 = vld [vmem:[%s274 + $0x5b4] sm:$0xff]
        %v595 = vld [vmem:[%s274 + $0x5bc] sm:$0xff]
        %v596 = vld [vmem:[%s274 + $0x5c4] sm:$0xf]
        %v597 = vld [vmem:[%s274 + $0x5c8] sm:$0xff]
        %v598 = vld [vmem:[%s274 + $0x5d0] sm:$0xff]
        %v599 = vld [vmem:[%s274 + $0x5d8] sm:$0xf]
        %v600 = vld [vmem:[%s274 + $0x5dc] sm:$0xff]
        %v601 = vld [vmem:[%s274 + $0x5e4] sm:$0xff]
        %v602 = vld [vmem:[%s274 + $0x5ec] sm:$0xf]
        %v603 = vld [vmem:[%s274 + $0x5f0] sm:$0xff]
        %v604 = vld [vmem:[%s274 + $0x5f8] sm:$0xff]
        %v605 = vld [vmem:[%s274 + $0x600] sm:$0xf]
        %v606 = vld [vmem:[%s274 + $0x604] sm:$0xff]
        %v607 = vld [vmem:[%s274 + $0x60c] sm:$0xff]
        %v608 = vld [vmem:[%s274 + $0x614] sm:$0xf]
        %v609 = vld [vmem:[%s274 + $0x618] sm:$0xff]
        %v610 = vld [vmem:[%s274 + $0x620] sm:$0xff]
        %v611 = vld [vmem:[%s274 + $0x628] sm:$0xf]
        %v612 = vld [vmem:[%s274 + $0x62c] sm:$0xff]
        %v613 = vld [vmem:[%s274 + $0x634] sm:$0xff]
        %v614 = vld [vmem:[%s274 + $0x63c] sm:$0xf]
        %v615 = vld [vmem:[%s274 + $0x640] sm:$0xff]
        %v616 = vld [vmem:[%s274 + $0x648] sm:$0xff]
        %v617 = vld [vmem:[%s274 + $0x650] sm:$0xf]
        %v618 = vld [vmem:[%s274 + $0x654] sm:$0xff]
        %v619 = vld [vmem:[%s274 + $0x65c] sm:$0xff]
        %v620 = vld [vmem:[%s274 + $0x664] sm:$0xf]
        %v621 = vld [vmem:[%s274 + $0x668] sm:$0xff]
        %v622 = vld [vmem:[%s274 + $0x670] sm:$0xff]
        %v623 = vld [vmem:[%s274 + $0x678] sm:$0xf]
        %v624 = vld [vmem:[%s274 + $0x67c] sm:$0xff]
        %v625 = vld [vmem:[%s274 + $0x684] sm:$0xff]
        %v626 = vld [vmem:[%s274 + $0x68c] sm:$0xf]
        %v627 = vld [vmem:[%s274 + $0x690] sm:$0xff]
        %v628 = vld [vmem:[%s274 + $0x698] sm:$0xff]
        %v629 = vld [vmem:[%s274 + $0x6a0] sm:$0xf]
        %v630 = vld [vmem:[%s274 + $0x6a4] sm:$0xff]
        %v631 = vld [vmem:[%s274 + $0x6ac] sm:$0xff]
        %v632 = vld [vmem:[%s274 + $0x6b4] sm:$0xf]
        %v633 = vld [vmem:[%s274 + $0x6b8] sm:$0xff]
        %v634 = vld [vmem:[%s274 + $0x6c0] sm:$0xff]
        %v635 = vld [vmem:[%s274 + $0x6c8] sm:$0xf]
        %v636 = vld [vmem:[%s274 + $0x6cc] sm:$0xff]
        %v637 = vld [vmem:[%s274 + $0x6d4] sm:$0xff]
        %v638 = vld [vmem:[%s274 + $0x6dc] sm:$0xf]
        %v639 = vld [vmem:[%s274 + $0x6e0] sm:$0xff]
        %v640 = vld [vmem:[%s274 + $0x6e8] sm:$0xff]
        %v641 = vld [vmem:[%s274 + $0x6f0] sm:$0xf]
        %v642 = vld [vmem:[%s274 + $0x6f4] sm:$0xff]
        %v643 = vld [vmem:[%s274 + $0x6fc] sm:$0xff]
        %v644 = vld [vmem:[%s274 + $0x704] sm:$0xf]
        %v645 = vld [vmem:[%s274 + $0x708] sm:$0xff]
        %v646 = vld [vmem:[%s274 + $0x710] sm:$0xff]
        %v647 = vld [vmem:[%s274 + $0x718] sm:$0xf]
        %v648 = vld [vmem:[%s274 + $0x71c] sm:$0xff]
        %v649 = vld [vmem:[%s274 + $0x724] sm:$0xff]
        %v650 = vld [vmem:[%s274 + $0x72c] sm:$0xf]
        %v651 = vld [vmem:[%s274 + $0x730] sm:$0xff]
        %v652 = vld [vmem:[%s274 + $0x738] sm:$0xff]
        %v653 = vld [vmem:[%s274 + $0x740] sm:$0xf]
        %v654 = vld [vmem:[%s274 + $0x744] sm:$0xff]
        %v655 = vld [vmem:[%s274 + $0x74c] sm:$0xff]
        %v656 = vld [vmem:[%s274 + $0x754] sm:$0xf]
        %v657 = vld [vmem:[%s274 + $0x758] sm:$0xff]
        %v658 = vld [vmem:[%s274 + $0x760] sm:$0xff]
        %v659 = vld [vmem:[%s274 + $0x768] sm:$0xf]
        %v660 = vld [vmem:[%s274 + $0x76c] sm:$0xff]
        %v661 = vld [vmem:[%s274 + $0x774] sm:$0xff]
        %v662 = vld [vmem:[%s274 + $0x77c] sm:$0xf]
        %v663 = vld [vmem:[%s274 + $0x780] sm:$0xff]
        %v664 = vld [vmem:[%s274 + $0x788] sm:$0xff]
        %v665 = vld [vmem:[%s274 + $0x790] sm:$0xf]
        %v666 = vld [vmem:[%s274 + $0x794] sm:$0xff]
        %v667 = vld [vmem:[%s274 + $0x79c] sm:$0xff]
        %v668 = vld [vmem:[%s274 + $0x7a4] sm:$0xf]
        %v669 = vld [vmem:[%s274 + $0x7a8] sm:$0xff]
        %v670 = vld [vmem:[%s274 + $0x7b0] sm:$0xff]
        %v671 = vld [vmem:[%s274 + $0x7b8] sm:$0xf]
        %v672 = vld [vmem:[%s274 + $0x7bc] sm:$0xff]
        %v673 = vld [vmem:[%s274 + $0x7c4] sm:$0xff]
        %v674 = vld [vmem:[%s274 + $0x7cc] sm:$0xf]
        %v675 = vld [vmem:[%s274 + $0x7d0] sm:$0xff]
        %v676 = vld [vmem:[%s274 + $0x7d8] sm:$0xff]
        %v677 = vld [vmem:[%s274 + $0x7e0] sm:$0xf]
        %v678 = vld [vmem:[%s274 + $0x7e4] sm:$0xff]
        %v679 = vld [vmem:[%s274 + $0x7ec] sm:$0xff]
        %v680 = vld [vmem:[%s274 + $0x7f4] sm:$0xf]
        %v681 = vld [vmem:[%s274 + $0x7f8] sm:$0xff]
        %v682 = vld [vmem:[%s274 + $0x800] sm:$0xff]
        %v683 = vld [vmem:[%s274 + $0x808] sm:$0xf]
        %v684 = vld [vmem:[%s274 + $0x80c] sm:$0xff]
        %v685 = vld [vmem:[%s274 + $0x814] sm:$0xff]
        %v686 = vld [vmem:[%s274 + $0x81c] sm:$0xf]
        %v687 = vld [vmem:[%s274 + $0x820] sm:$0xff]
        %v688 = vld [vmem:[%s274 + $0x828] sm:$0xff]
        %v689 = vld [vmem:[%s274 + $0x830] sm:$0xf]
        %v690 = vld [vmem:[%s274 + $0x834] sm:$0xff]
        %v691 = vld [vmem:[%s274 + $0x83c] sm:$0xff]
        %v692 = vld [vmem:[%s274 + $0x844] sm:$0xf]
        %v693 = vld [vmem:[%s274 + $0x848] sm:$0xff]
        %v694 = vld [vmem:[%s274 + $0x850] sm:$0xff]
        %v695 = vld [vmem:[%s274 + $0x858] sm:$0xf]
        %v696 = vld [vmem:[%s274 + $0x85c] sm:$0xff]
        %v697 = vld [vmem:[%s274 + $0x864] sm:$0xff]
        %v698 = vld [vmem:[%s274 + $0x86c] sm:$0xf]
        %v699 = vld [vmem:[%s274 + $0x870] sm:$0xff]
        %v700 = vld [vmem:[%s274 + $0x878] sm:$0xff]
        %v701 = vld [vmem:[%s274 + $0x880] sm:$0xf]
        %v702 = vld [vmem:[%s274 + $0x884] sm:$0xff]
        %v703 = vld [vmem:[%s274 + $0x88c] sm:$0xff]
        %v704 = vld [vmem:[%s274 + $0x894] sm:$0xf]
        %v705 = vld [vmem:[%s274 + $0x898] sm:$0xff]
        %v706 = vld [vmem:[%s274 + $0x8a0] sm:$0xff]
        %v707 = vld [vmem:[%s274 + $0x8a8] sm:$0xf]
        %v708 = vld [vmem:[%s274 + $0x8ac] sm:$0xff]
        %v709 = vld [vmem:[%s274 + $0x8b4] sm:$0xff]
        %v710 = vld [vmem:[%s274 + $0x8bc] sm:$0xf]
        %v711 = vld [vmem:[%s274 + $0x8c0] sm:$0xff]
        %v712 = vld [vmem:[%s274 + $0x8c8] sm:$0xff]
        %v713 = vld [vmem:[%s274 + $0x8d0] sm:$0xf]
        %v714 = vld [vmem:[%s274 + $0x8d4] sm:$0xff]
        %v715 = vld [vmem:[%s274 + $0x8dc] sm:$0xff]
        %v716 = vld [vmem:[%s274 + $0x8e4] sm:$0xf]
        %v717 = vld [vmem:[%s274 + $0x8e8] sm:$0xff]
        %v718 = vld [vmem:[%s274 + $0x8f0] sm:$0xff]
        %v719 = vld [vmem:[%s274 + $0x8f8] sm:$0xf]
        %v720 = vld [vmem:[%s274 + $0x8fc] sm:$0xff]
        %v721 = vld [vmem:[%s274 + $0x904] sm:$0xff]
        %v722 = vld [vmem:[%s274 + $0x90c] sm:$0xf]
        %v723 = vld [vmem:[%s274 + $0x910] sm:$0xff]
        %v724 = vld [vmem:[%s274 + $0x918] sm:$0xff]
        %v725 = vld [vmem:[%s274 + $0x920] sm:$0xf]
        %v726 = vld [vmem:[%s274 + $0x924] sm:$0xff]
        %v727 = vld [vmem:[%s274 + $0x92c] sm:$0xff]
        %v728 = vld [vmem:[%s274 + $0x934] sm:$0xf]
        %v729 = vld [vmem:[%s274 + $0x938] sm:$0xff]
        %v730 = vld [vmem:[%s274 + $0x940] sm:$0xff]
        %v731 = vld [vmem:[%s274 + $0x948] sm:$0xf]
        %v732 = vld [vmem:[%s274 + $0x94c] sm:$0xff]
        %v733 = vld [vmem:[%s274 + $0x954] sm:$0xff]
        %v734 = vld [vmem:[%s274 + $0x95c] sm:$0xf]
        %v735 = vld [vmem:[%s274 + $0x960] sm:$0xff]
        %v736 = vld [vmem:[%s274 + $0x968] sm:$0xff]
        %v737 = vld [vmem:[%s274 + $0x970] sm:$0xf]
        %v738 = vld [vmem:[%s274 + $0x974] sm:$0xff]
        %v739 = vld [vmem:[%s274 + $0x97c] sm:$0xff]
        %v740 = vld [vmem:[%s274 + $0x984] sm:$0xf]
        %v741 = vld [vmem:[%s274 + $0x988] sm:$0xff]
        %v742 = vld [vmem:[%s274 + $0x990] sm:$0xff]
        %v743 = vld [vmem:[%s274 + $0x998] sm:$0xf]
        %v744 = vld [vmem:[%s274 + $0x99c] sm:$0xff]
        %v745 = vld [vmem:[%s274 + $0x9a4] sm:$0xff]
        %v746 = vld [vmem:[%s274 + $0x9ac] sm:$0xf]
        %v747 = vld [vmem:[%s274 + $0x9b0] sm:$0xff]
        %v748 = vld [vmem:[%s274 + $0x9b8] sm:$0xff]
        %v749 = vld [vmem:[%s274 + $0x9c0] sm:$0xf]
        %v750 = vld [vmem:[%s274 + $0x9c4] sm:$0xff]
        %v751 = vld [vmem:[%s274 + $0x9cc] sm:$0xff]
        %v752 = vld [vmem:[%s274 + $0x9d4] sm:$0xf]
        %v753 = vld [vmem:[%s274 + $0x9d8] sm:$0xff]
        %v754 = vld [vmem:[%s274 + $0x9e0] sm:$0xff]
        %v755 = vld [vmem:[%s274 + $0x9e8] sm:$0xf]
        %v756 = vld [vmem:[%s274 + $0x9ec] sm:$0xff]
        %v757 = vld [vmem:[%s274 + $0x9f4] sm:$0xff]
        %v758 = vld [vmem:[%s274 + $0x9fc] sm:$0xf]
        %v759 = vld [vmem:[%s336] sm:$0x1f]
        %v761 = vlaneseq
        %v762 = vshrl.u32 %v761, 7
        %v763 = vsub.s32 0, %v762
        %v764 = vrot.slane %v759, %v763
        %v765 = vlaneseq
        %v766 = vshrl.u32 %v765, 7
        %v767 = vsub.s32 1, %v766
        %v768 = vrot.slane %v759, %v767
        %v769 = vlaneseq
        %v770 = vshrl.u32 %v769, 7
        %v771 = vsub.s32 2, %v770
        %v772 = vrot.slane %v759, %v771
        %v773 = vlaneseq
        %v774 = vshrl.u32 %v773, 7
        %v775 = vsub.s32 3, %v774
        %v776 = vrot.slane %v759, %v775
        %v777 = vlaneseq
        %v778 = vshrl.u32 %v777, 7
        %v779 = vsub.s32 4, %v778
        %v780 = vrot.slane %v759, %v779
        %v787 = vcombine.high %v374, %v374
        %v789 = vunpack.c.l.s4 1966171168
        %v790 = vunpack.c.0.s8 %v789
        %v791 = vlaneseq
        %v792 = vshrl.u32 %v791, 7
        %v793 = vsub.s32 %v790, %v792
        %v794 = vrot.slane %v374, %v793
        %v796 = vunpack.c.l.s4 1966171168
        %v797 = vunpack.c.0.s8 %v796
        %v798 = vlaneseq
        %v799 = vshrl.u32 %v798, 7
        %v800 = vsub.s32 %v797, %v799
        %v801 = vrot.slane %v787, %v800
        %v802 = vcombine.high %v794, %v794
        %v803 = vcombine.high %v801, %v801
        %v805 = vunpack.c.l.s4 1966171168
        %v806 = vunpack.c.0.s8 %v805
        %v807 = vlaneseq
        %v808 = vshrl.u32 %v807, 7
        %v809 = vsub.s32 %v806, %v808
        %v810 = vrot.slane %v794, %v809
        %v812 = vunpack.c.l.s4 1966171168
        %v813 = vunpack.c.0.s8 %v812
        %v814 = vlaneseq
        %v815 = vshrl.u32 %v814, 7
        %v816 = vsub.s32 %v813, %v815
        %v817 = vrot.slane %v801, %v816
        %v819 = vunpack.c.l.s4 1966171168
        %v820 = vunpack.c.0.s8 %v819
        %v821 = vlaneseq
        %v822 = vshrl.u32 %v821, 7
        %v823 = vsub.s32 %v820, %v822
        %v824 = vrot.slane %v802, %v823
        %v826 = vunpack.c.l.s4 1966171168
        %v827 = vunpack.c.0.s8 %v826
        %v828 = vlaneseq
        %v829 = vshrl.u32 %v828, 7
        %v830 = vsub.s32 %v827, %v829
        %v831 = vrot.slane %v803, %v830
        %v832 = vcombine.high %v810, %v810
        %v833 = vcombine.high %v817, %v817
        %v834 = vcombine.high %v824, %v824
        %v835 = vcombine.high %v831, %v831
        %v1228 = vunpack.c.l.b16 %v375
        %v1229 = vunpack.c.h.b16 %v375
        %v1230 = vunpack.c.l.b16 %v376
        %v1231 = vunpack.c.h.b16 %v376
        %v1232 = vunpack.c.l.b16 %v377
        %v1233 = vunpack.c.l.b16 %v378
        %v1234 = vunpack.c.h.b16 %v378
        %v1235 = vunpack.c.l.b16 %v379
        %v1236 = vunpack.c.h.b16 %v379
        %v1237 = vunpack.c.l.b16 %v380
        %v1238 = vunpack.c.l.b16 %v381
        %v1239 = vunpack.c.h.b16 %v381
        %v1240 = vunpack.c.l.b16 %v382
        %v1241 = vunpack.c.h.b16 %v382
        %v1242 = vunpack.c.l.b16 %v383
        %v1243 = vunpack.c.l.b16 %v384
        %v1244 = vunpack.c.h.b16 %v384
        %v1245 = vunpack.c.l.b16 %v385
        %v1246 = vunpack.c.h.b16 %v385
        %v1247 = vunpack.c.l.b16 %v386
        %v1248 = vunpack.c.l.b16 %v387
        %v1249 = vunpack.c.h.b16 %v387
        %v1250 = vunpack.c.l.b16 %v388
        %v1251 = vunpack.c.h.b16 %v388
        %v1252 = vunpack.c.l.b16 %v389
        %v1253 = vunpack.c.l.b16 %v390
        %v1254 = vunpack.c.h.b16 %v390
        %v1255 = vunpack.c.l.b16 %v391
        %v1256 = vunpack.c.h.b16 %v391
        %v1257 = vunpack.c.l.b16 %v392
        %v1258 = vunpack.c.l.b16 %v393
        %v1259 = vunpack.c.h.b16 %v393
        %v1260 = vunpack.c.l.b16 %v394
        %v1261 = vunpack.c.h.b16 %v394
        %v1262 = vunpack.c.l.b16 %v395
        %v1263 = vunpack.c.l.b16 %v396
        %v1264 = vunpack.c.h.b16 %v396
        %v1265 = vunpack.c.l.b16 %v397
        %v1266 = vunpack.c.h.b16 %v397
        %v1267 = vunpack.c.l.b16 %v398
        %v1268 = vunpack.c.l.b16 %v399
        %v1269 = vunpack.c.h.b16 %v399
        %v1270 = vunpack.c.l.b16 %v400
        %v1271 = vunpack.c.h.b16 %v400
        %v1272 = vunpack.c.l.b16 %v401
        %v1273 = vunpack.c.l.b16 %v402
        %v1274 = vunpack.c.h.b16 %v402
        %v1275 = vunpack.c.l.b16 %v403
        %v1276 = vunpack.c.h.b16 %v403
        %v1277 = vunpack.c.l.b16 %v404
        %v1278 = vunpack.c.l.b16 %v405
        %v1279 = vunpack.c.h.b16 %v405
        %v1280 = vunpack.c.l.b16 %v406
        %v1281 = vunpack.c.h.b16 %v406
        %v1282 = vunpack.c.l.b16 %v407
        %v1283 = vunpack.c.l.b16 %v408
        %v1284 = vunpack.c.h.b16 %v408
        %v1285 = vunpack.c.l.b16 %v409
        %v1286 = vunpack.c.h.b16 %v409
        %v1287 = vunpack.c.l.b16 %v410
        %v1288 = vunpack.c.l.b16 %v411
        %v1289 = vunpack.c.h.b16 %v411
        %v1290 = vunpack.c.l.b16 %v412
        %v1291 = vunpack.c.h.b16 %v412
        %v1292 = vunpack.c.l.b16 %v413
        %v1293 = vunpack.c.l.b16 %v414
        %v1294 = vunpack.c.h.b16 %v414
        %v1295 = vunpack.c.l.b16 %v415
        %v1296 = vunpack.c.h.b16 %v415
        %v1297 = vunpack.c.l.b16 %v416
        %v1298 = vunpack.c.l.b16 %v417
        %v1299 = vunpack.c.h.b16 %v417
        %v1300 = vunpack.c.l.b16 %v418
        %v1301 = vunpack.c.h.b16 %v418
        %v1302 = vunpack.c.l.b16 %v419
        %v1303 = vunpack.c.l.b16 %v420
        %v1304 = vunpack.c.h.b16 %v420
        %v1305 = vunpack.c.l.b16 %v421
        %v1306 = vunpack.c.h.b16 %v421
        %v1307 = vunpack.c.l.b16 %v422
        %v1308 = vunpack.c.l.b16 %v423
        %v1309 = vunpack.c.h.b16 %v423
        %v1310 = vunpack.c.l.b16 %v424
        %v1311 = vunpack.c.h.b16 %v424
        %v1312 = vunpack.c.l.b16 %v425
        %v1313 = vunpack.c.l.b16 %v426
        %v1314 = vunpack.c.h.b16 %v426
        %v1315 = vunpack.c.l.b16 %v427
        %v1316 = vunpack.c.h.b16 %v427
        %v1317 = vunpack.c.l.b16 %v428
        %v1318 = vunpack.c.l.b16 %v429
        %v1319 = vunpack.c.h.b16 %v429
        %v1320 = vunpack.c.l.b16 %v430
        %v1321 = vunpack.c.h.b16 %v430
        %v1322 = vunpack.c.l.b16 %v431
        %v1323 = vunpack.c.l.b16 %v432
        %v1324 = vunpack.c.h.b16 %v432
        %v1325 = vunpack.c.l.b16 %v433
        %v1326 = vunpack.c.h.b16 %v433
        %v1327 = vunpack.c.l.b16 %v434
        %v1328 = vunpack.c.l.b16 %v435
        %v1329 = vunpack.c.h.b16 %v435
        %v1330 = vunpack.c.l.b16 %v436
        %v1331 = vunpack.c.h.b16 %v436
        %v1332 = vunpack.c.l.b16 %v437
        %v1333 = vunpack.c.l.b16 %v438
        %v1334 = vunpack.c.h.b16 %v438
        %v1335 = vunpack.c.l.b16 %v439
        %v1336 = vunpack.c.h.b16 %v439
        %v1337 = vunpack.c.l.b16 %v440
        %v1338 = vunpack.c.l.b16 %v441
        %v1339 = vunpack.c.h.b16 %v441
        %v1340 = vunpack.c.l.b16 %v442
        %v1341 = vunpack.c.h.b16 %v442
        %v1342 = vunpack.c.l.b16 %v443
        %v1343 = vunpack.c.l.b16 %v444
        %v1344 = vunpack.c.h.b16 %v444
        %v1345 = vunpack.c.l.b16 %v445
        %v1346 = vunpack.c.h.b16 %v445
        %v1347 = vunpack.c.l.b16 %v446
        %v1348 = vunpack.c.l.b16 %v447
        %v1349 = vunpack.c.h.b16 %v447
        %v1350 = vunpack.c.l.b16 %v448
        %v1351 = vunpack.c.h.b16 %v448
        %v1352 = vunpack.c.l.b16 %v449
        %v1353 = vunpack.c.l.b16 %v450
        %v1354 = vunpack.c.h.b16 %v450
        %v1355 = vunpack.c.l.b16 %v451
        %v1356 = vunpack.c.h.b16 %v451
        %v1357 = vunpack.c.l.b16 %v452
        %v1358 = vunpack.c.l.b16 %v453
        %v1359 = vunpack.c.h.b16 %v453
        %v1360 = vunpack.c.l.b16 %v454
        %v1361 = vunpack.c.h.b16 %v454
        %v1362 = vunpack.c.l.b16 %v455
        %v1363 = vunpack.c.l.b16 %v456
        %v1364 = vunpack.c.h.b16 %v456
        %v1365 = vunpack.c.l.b16 %v457
        %v1366 = vunpack.c.h.b16 %v457
        %v1367 = vunpack.c.l.b16 %v458
        %v1368 = vunpack.c.l.b16 %v459
        %v1369 = vunpack.c.h.b16 %v459
        %v1370 = vunpack.c.l.b16 %v460
        %v1371 = vunpack.c.h.b16 %v460
        %v1372 = vunpack.c.l.b16 %v461
        %v1373 = vunpack.c.l.b16 %v462
        %v1374 = vunpack.c.h.b16 %v462
        %v1375 = vunpack.c.l.b16 %v463
        %v1376 = vunpack.c.h.b16 %v463
        %v1377 = vunpack.c.l.b16 %v464
        %v1378 = vunpack.c.l.b16 %v465
        %v1379 = vunpack.c.h.b16 %v465
        %v1380 = vunpack.c.l.b16 %v466
        %v1381 = vunpack.c.h.b16 %v466
        %v1382 = vunpack.c.l.b16 %v467
        %v1383 = vunpack.c.l.b16 %v468
        %v1384 = vunpack.c.h.b16 %v468
        %v1385 = vunpack.c.l.b16 %v469
        %v1386 = vunpack.c.h.b16 %v469
        %v1387 = vunpack.c.l.b16 %v470
        %v1388 = vunpack.c.l.b16 %v471
        %v1389 = vunpack.c.h.b16 %v471
        %v1390 = vunpack.c.l.b16 %v472
        %v1391 = vunpack.c.h.b16 %v472
        %v1392 = vunpack.c.l.b16 %v473
        %v1393 = vunpack.c.l.b16 %v474
        %v1394 = vunpack.c.h.b16 %v474
        %v1395 = vunpack.c.l.b16 %v475
        %v1396 = vunpack.c.h.b16 %v475
        %v1397 = vunpack.c.l.b16 %v476
        %v1398 = vunpack.c.l.b16 %v477
        %v1399 = vunpack.c.h.b16 %v477
        %v1400 = vunpack.c.l.b16 %v478
        %v1401 = vunpack.c.h.b16 %v478
        %v1402 = vunpack.c.l.b16 %v479
        %v1403 = vunpack.c.l.b16 %v480
        %v1404 = vunpack.c.h.b16 %v480
        %v1405 = vunpack.c.l.b16 %v481
        %v1406 = vunpack.c.h.b16 %v481
        %v1407 = vunpack.c.l.b16 %v482
        %v1408 = vunpack.c.l.b16 %v483
        %v1409 = vunpack.c.h.b16 %v483
        %v1410 = vunpack.c.l.b16 %v484
        %v1411 = vunpack.c.h.b16 %v484
        %v1412 = vunpack.c.l.b16 %v485
        %v1413 = vunpack.c.l.b16 %v486
        %v1414 = vunpack.c.h.b16 %v486
        %v1415 = vunpack.c.l.b16 %v487
        %v1416 = vunpack.c.h.b16 %v487
        %v1417 = vunpack.c.l.b16 %v488
        %v1418 = vunpack.c.l.b16 %v489
        %v1419 = vunpack.c.h.b16 %v489
        %v1420 = vunpack.c.l.b16 %v490
        %v1421 = vunpack.c.h.b16 %v490
        %v1422 = vunpack.c.l.b16 %v491
        %v1423 = vunpack.c.l.b16 %v492
        %v1424 = vunpack.c.h.b16 %v492
        %v1425 = vunpack.c.l.b16 %v493
        %v1426 = vunpack.c.h.b16 %v493
        %v1427 = vunpack.c.l.b16 %v494
        %v1428 = vunpack.c.l.b16 %v495
        %v1429 = vunpack.c.h.b16 %v495
        %v1430 = vunpack.c.l.b16 %v496
        %v1431 = vunpack.c.h.b16 %v496
        %v1432 = vunpack.c.l.b16 %v497
        %v1433 = vunpack.c.l.b16 %v498
        %v1434 = vunpack.c.h.b16 %v498
        %v1435 = vunpack.c.l.b16 %v499
        %v1436 = vunpack.c.h.b16 %v499
        %v1437 = vunpack.c.l.b16 %v500
        %v1438 = vunpack.c.l.b16 %v501
        %v1439 = vunpack.c.h.b16 %v501
        %v1440 = vunpack.c.l.b16 %v502
        %v1441 = vunpack.c.h.b16 %v502
        %v1442 = vunpack.c.l.b16 %v503
        %v1443 = vunpack.c.l.b16 %v504
        %v1444 = vunpack.c.h.b16 %v504
        %v1445 = vunpack.c.l.b16 %v505
        %v1446 = vunpack.c.h.b16 %v505
        %v1447 = vunpack.c.l.b16 %v506
        %v1448 = vunpack.c.l.b16 %v507
        %v1449 = vunpack.c.h.b16 %v507
        %v1450 = vunpack.c.l.b16 %v508
        %v1451 = vunpack.c.h.b16 %v508
        %v1452 = vunpack.c.l.b16 %v509
        %v1453 = vunpack.c.l.b16 %v510
        %v1454 = vunpack.c.h.b16 %v510
        %v1455 = vunpack.c.l.b16 %v511
        %v1456 = vunpack.c.h.b16 %v511
        %v1457 = vunpack.c.l.b16 %v512
        %v1458 = vunpack.c.l.b16 %v513
        %v1459 = vunpack.c.h.b16 %v513
        %v1460 = vunpack.c.l.b16 %v514
        %v1461 = vunpack.c.h.b16 %v514
        %v1462 = vunpack.c.l.b16 %v515
        %v1463 = vunpack.c.l.b16 %v516
        %v1464 = vunpack.c.h.b16 %v516
        %v1465 = vunpack.c.l.b16 %v517
        %v1466 = vunpack.c.h.b16 %v517
        %v1467 = vunpack.c.l.b16 %v518
        %v1468 = vunpack.c.l.b16 %v519
        %v1469 = vunpack.c.h.b16 %v519
        %v1470 = vunpack.c.l.b16 %v520
        %v1471 = vunpack.c.h.b16 %v520
        %v1472 = vunpack.c.l.b16 %v521
        %v1473 = vunpack.c.l.b16 %v522
        %v1474 = vunpack.c.h.b16 %v522
        %v1475 = vunpack.c.l.b16 %v523
        %v1476 = vunpack.c.h.b16 %v523
        %v1477 = vunpack.c.l.b16 %v524
        %v1478 = vunpack.c.l.b16 %v525
        %v1479 = vunpack.c.h.b16 %v525
        %v1480 = vunpack.c.l.b16 %v526
        %v1481 = vunpack.c.h.b16 %v526
        %v1482 = vunpack.c.l.b16 %v527
        %v1483 = vunpack.c.l.b16 %v528
        %v1484 = vunpack.c.h.b16 %v528
        %v1485 = vunpack.c.l.b16 %v529
        %v1486 = vunpack.c.h.b16 %v529
        %v1487 = vunpack.c.l.b16 %v530
        %v1488 = vunpack.c.l.b16 %v531
        %v1489 = vunpack.c.h.b16 %v531
        %v1490 = vunpack.c.l.b16 %v532
        %v1491 = vunpack.c.h.b16 %v532
        %v1492 = vunpack.c.l.b16 %v533
        %v1493 = vunpack.c.l.b16 %v534
        %v1494 = vunpack.c.h.b16 %v534
        %v1495 = vunpack.c.l.b16 %v535
        %v1496 = vunpack.c.h.b16 %v535
        %v1497 = vunpack.c.l.b16 %v536
        %v1498 = vunpack.c.l.b16 %v537
        %v1499 = vunpack.c.h.b16 %v537
        %v1500 = vunpack.c.l.b16 %v538
        %v1501 = vunpack.c.h.b16 %v538
        %v1502 = vunpack.c.l.b16 %v539
        %v1503 = vunpack.c.l.b16 %v540
        %v1504 = vunpack.c.h.b16 %v540
        %v1505 = vunpack.c.l.b16 %v541
        %v1506 = vunpack.c.h.b16 %v541
        %v1507 = vunpack.c.l.b16 %v542
        %v1508 = vunpack.c.l.b16 %v543
        %v1509 = vunpack.c.h.b16 %v543
        %v1510 = vunpack.c.l.b16 %v544
        %v1511 = vunpack.c.h.b16 %v544
        %v1512 = vunpack.c.l.b16 %v545
        %v1513 = vunpack.c.l.b16 %v546
        %v1514 = vunpack.c.h.b16 %v546
        %v1515 = vunpack.c.l.b16 %v547
        %v1516 = vunpack.c.h.b16 %v547
        %v1517 = vunpack.c.l.b16 %v548
        %v1518 = vunpack.c.l.b16 %v549
        %v1519 = vunpack.c.h.b16 %v549
        %v1520 = vunpack.c.l.b16 %v550
        %v1521 = vunpack.c.h.b16 %v550
        %v1522 = vunpack.c.l.b16 %v551
        %v1523 = vunpack.c.l.b16 %v552
        %v1524 = vunpack.c.h.b16 %v552
        %v1525 = vunpack.c.l.b16 %v553
        %v1526 = vunpack.c.h.b16 %v553
        %v1527 = vunpack.c.l.b16 %v554
        %v1528 = vunpack.c.l.b16 %v555
        %v1529 = vunpack.c.h.b16 %v555
        %v1530 = vunpack.c.l.b16 %v556
        %v1531 = vunpack.c.h.b16 %v556
        %v1532 = vunpack.c.l.b16 %v557
        %v1533 = vunpack.c.l.b16 %v558
        %v1534 = vunpack.c.h.b16 %v558
        %v1535 = vunpack.c.l.b16 %v559
        %v1536 = vunpack.c.h.b16 %v559
        %v1537 = vunpack.c.l.b16 %v560
        %v1538 = vunpack.c.l.b16 %v561
        %v1539 = vunpack.c.h.b16 %v561
        %v1540 = vunpack.c.l.b16 %v562
        %v1541 = vunpack.c.h.b16 %v562
        %v1542 = vunpack.c.l.b16 %v563
        %v1543 = vunpack.c.l.b16 %v564
        %v1544 = vunpack.c.h.b16 %v564
        %v1545 = vunpack.c.l.b16 %v565
        %v1546 = vunpack.c.h.b16 %v565
        %v1547 = vunpack.c.l.b16 %v566
        %v1548 = vunpack.c.l.b16 %v567
        %v1549 = vunpack.c.h.b16 %v567
        %v1550 = vunpack.c.l.b16 %v568
        %v1551 = vunpack.c.h.b16 %v568
        %v1552 = vunpack.c.l.b16 %v569
        %v1553 = vunpack.c.l.b16 %v570
        %v1554 = vunpack.c.h.b16 %v570
        %v1555 = vunpack.c.l.b16 %v571
        %v1556 = vunpack.c.h.b16 %v571
        %v1557 = vunpack.c.l.b16 %v572
        %v1558 = vunpack.c.l.b16 %v573
        %v1559 = vunpack.c.h.b16 %v573
        %v1560 = vunpack.c.l.b16 %v574
        %v1561 = vunpack.c.h.b16 %v574
        %v1562 = vunpack.c.l.b16 %v575
        %v1563 = vunpack.c.l.b16 %v576
        %v1564 = vunpack.c.h.b16 %v576
        %v1565 = vunpack.c.l.b16 %v577
        %v1566 = vunpack.c.h.b16 %v577
        %v1567 = vunpack.c.l.b16 %v578
        %v1568 = vunpack.c.l.b16 %v579
        %v1569 = vunpack.c.h.b16 %v579
        %v1570 = vunpack.c.l.b16 %v580
        %v1571 = vunpack.c.h.b16 %v580
        %v1572 = vunpack.c.l.b16 %v581
        %v1573 = vunpack.c.l.b16 %v582
        %v1574 = vunpack.c.h.b16 %v582
        %v1575 = vunpack.c.l.b16 %v583
        %v1576 = vunpack.c.h.b16 %v583
        %v1577 = vunpack.c.l.b16 %v584
        %v1578 = vunpack.c.l.b16 %v585
        %v1579 = vunpack.c.h.b16 %v585
        %v1580 = vunpack.c.l.b16 %v586
        %v1581 = vunpack.c.h.b16 %v586
        %v1582 = vunpack.c.l.b16 %v587
        %v1583 = vunpack.c.l.b16 %v588
        %v1584 = vunpack.c.h.b16 %v588
        %v1585 = vunpack.c.l.b16 %v589
        %v1586 = vunpack.c.h.b16 %v589
        %v1587 = vunpack.c.l.b16 %v590
        %v1588 = vunpack.c.l.b16 %v591
        %v1589 = vunpack.c.h.b16 %v591
        %v1590 = vunpack.c.l.b16 %v592
        %v1591 = vunpack.c.h.b16 %v592
        %v1592 = vunpack.c.l.b16 %v593
        %v1593 = vunpack.c.l.b16 %v594
        %v1594 = vunpack.c.h.b16 %v594
        %v1595 = vunpack.c.l.b16 %v595
        %v1596 = vunpack.c.h.b16 %v595
        %v1597 = vunpack.c.l.b16 %v596
        %v1598 = vunpack.c.l.b16 %v597
        %v1599 = vunpack.c.h.b16 %v597
        %v1600 = vunpack.c.l.b16 %v598
        %v1601 = vunpack.c.h.b16 %v598
        %v1602 = vunpack.c.l.b16 %v599
        %v1603 = vunpack.c.l.b16 %v600
        %v1604 = vunpack.c.h.b16 %v600
        %v1605 = vunpack.c.l.b16 %v601
        %v1606 = vunpack.c.h.b16 %v601
        %v1607 = vunpack.c.l.b16 %v602
        %v1608 = vunpack.c.l.b16 %v603
        %v1609 = vunpack.c.h.b16 %v603
        %v1610 = vunpack.c.l.b16 %v604
        %v1611 = vunpack.c.h.b16 %v604
        %v1612 = vunpack.c.l.b16 %v605
        %v1613 = vunpack.c.l.b16 %v606
        %v1614 = vunpack.c.h.b16 %v606
        %v1615 = vunpack.c.l.b16 %v607
        %v1616 = vunpack.c.h.b16 %v607
        %v1617 = vunpack.c.l.b16 %v608
        %v1618 = vunpack.c.l.b16 %v609
        %v1619 = vunpack.c.h.b16 %v609
        %v1620 = vunpack.c.l.b16 %v610
        %v1621 = vunpack.c.h.b16 %v610
        %v1622 = vunpack.c.l.b16 %v611
        %v1623 = vunpack.c.l.b16 %v612
        %v1624 = vunpack.c.h.b16 %v612
        %v1625 = vunpack.c.l.b16 %v613
        %v1626 = vunpack.c.h.b16 %v613
        %v1627 = vunpack.c.l.b16 %v614
        %v1628 = vunpack.c.l.b16 %v615
        %v1629 = vunpack.c.h.b16 %v615
        %v1630 = vunpack.c.l.b16 %v616
        %v1631 = vunpack.c.h.b16 %v616
        %v1632 = vunpack.c.l.b16 %v617
        %v1633 = vunpack.c.l.b16 %v618
        %v1634 = vunpack.c.h.b16 %v618
        %v1635 = vunpack.c.l.b16 %v619
        %v1636 = vunpack.c.h.b16 %v619
        %v1637 = vunpack.c.l.b16 %v620
        %v1638 = vunpack.c.l.b16 %v621
        %v1639 = vunpack.c.h.b16 %v621
        %v1640 = vunpack.c.l.b16 %v622
        %v1641 = vunpack.c.h.b16 %v622
        %v1642 = vunpack.c.l.b16 %v623
        %v1643 = vunpack.c.l.b16 %v624
        %v1644 = vunpack.c.h.b16 %v624
        %v1645 = vunpack.c.l.b16 %v625
        %v1646 = vunpack.c.h.b16 %v625
        %v1647 = vunpack.c.l.b16 %v626
        %v1648 = vunpack.c.l.b16 %v627
        %v1649 = vunpack.c.h.b16 %v627
        %v1650 = vunpack.c.l.b16 %v628
        %v1651 = vunpack.c.h.b16 %v628
        %v1652 = vunpack.c.l.b16 %v629
        %v1653 = vunpack.c.l.b16 %v630
        %v1654 = vunpack.c.h.b16 %v630
        %v1655 = vunpack.c.l.b16 %v631
        %v1656 = vunpack.c.h.b16 %v631
        %v1657 = vunpack.c.l.b16 %v632
        %v1658 = vunpack.c.l.b16 %v633
        %v1659 = vunpack.c.h.b16 %v633
        %v1660 = vunpack.c.l.b16 %v634
        %v1661 = vunpack.c.h.b16 %v634
        %v1662 = vunpack.c.l.b16 %v635
        %v1663 = vunpack.c.l.b16 %v636
        %v1664 = vunpack.c.h.b16 %v636
        %v1665 = vunpack.c.l.b16 %v637
        %v1666 = vunpack.c.h.b16 %v637
        %v1667 = vunpack.c.l.b16 %v638
        %v1668 = vunpack.c.l.b16 %v639
        %v1669 = vunpack.c.h.b16 %v639
        %v1670 = vunpack.c.l.b16 %v640
        %v1671 = vunpack.c.h.b16 %v640
        %v1672 = vunpack.c.l.b16 %v641
        %v1673 = vunpack.c.l.b16 %v642
        %v1674 = vunpack.c.h.b16 %v642
        %v1675 = vunpack.c.l.b16 %v643
        %v1676 = vunpack.c.h.b16 %v643
        %v1677 = vunpack.c.l.b16 %v644
        %v1678 = vunpack.c.l.b16 %v645
        %v1679 = vunpack.c.h.b16 %v645
        %v1680 = vunpack.c.l.b16 %v646
        %v1681 = vunpack.c.h.b16 %v646
        %v1682 = vunpack.c.l.b16 %v647
        %v1683 = vunpack.c.l.b16 %v648
        %v1684 = vunpack.c.h.b16 %v648
        %v1685 = vunpack.c.l.b16 %v649
        %v1686 = vunpack.c.h.b16 %v649
        %v1687 = vunpack.c.l.b16 %v650
        %v1688 = vunpack.c.l.b16 %v651
        %v1689 = vunpack.c.h.b16 %v651
        %v1690 = vunpack.c.l.b16 %v652
        %v1691 = vunpack.c.h.b16 %v652
        %v1692 = vunpack.c.l.b16 %v653
        %v1693 = vunpack.c.l.b16 %v654
        %v1694 = vunpack.c.h.b16 %v654
        %v1695 = vunpack.c.l.b16 %v655
        %v1696 = vunpack.c.h.b16 %v655
        %v1697 = vunpack.c.l.b16 %v656
        %v1698 = vunpack.c.l.b16 %v657
        %v1699 = vunpack.c.h.b16 %v657
        %v1700 = vunpack.c.l.b16 %v658
        %v1701 = vunpack.c.h.b16 %v658
        %v1702 = vunpack.c.l.b16 %v659
        %v1703 = vunpack.c.l.b16 %v660
        %v1704 = vunpack.c.h.b16 %v660
        %v1705 = vunpack.c.l.b16 %v661
        %v1706 = vunpack.c.h.b16 %v661
        %v1707 = vunpack.c.l.b16 %v662
        %v1708 = vunpack.c.l.b16 %v663
        %v1709 = vunpack.c.h.b16 %v663
        %v1710 = vunpack.c.l.b16 %v664
        %v1711 = vunpack.c.h.b16 %v664
        %v1712 = vunpack.c.l.b16 %v665
        %v1713 = vunpack.c.l.b16 %v666
        %v1714 = vunpack.c.h.b16 %v666
        %v1715 = vunpack.c.l.b16 %v667
        %v1716 = vunpack.c.h.b16 %v667
        %v1717 = vunpack.c.l.b16 %v668
        %v1718 = vunpack.c.l.b16 %v669
        %v1719 = vunpack.c.h.b16 %v669
        %v1720 = vunpack.c.l.b16 %v670
        %v1721 = vunpack.c.h.b16 %v670
        %v1722 = vunpack.c.l.b16 %v671
        %v1723 = vunpack.c.l.b16 %v672
        %v1724 = vunpack.c.h.b16 %v672
        %v1725 = vunpack.c.l.b16 %v673
        %v1726 = vunpack.c.h.b16 %v673
        %v1727 = vunpack.c.l.b16 %v674
        %v1728 = vunpack.c.l.b16 %v675
        %v1729 = vunpack.c.h.b16 %v675
        %v1730 = vunpack.c.l.b16 %v676
        %v1731 = vunpack.c.h.b16 %v676
        %v1732 = vunpack.c.l.b16 %v677
        %v1733 = vunpack.c.l.b16 %v678
        %v1734 = vunpack.c.h.b16 %v678
        %v1735 = vunpack.c.l.b16 %v679
        %v1736 = vunpack.c.h.b16 %v679
        %v1737 = vunpack.c.l.b16 %v680
        %v1738 = vunpack.c.l.b16 %v681
        %v1739 = vunpack.c.h.b16 %v681
        %v1740 = vunpack.c.l.b16 %v682
        %v1741 = vunpack.c.h.b16 %v682
        %v1742 = vunpack.c.l.b16 %v683
        %v1743 = vunpack.c.l.b16 %v684
        %v1744 = vunpack.c.h.b16 %v684
        %v1745 = vunpack.c.l.b16 %v685
        %v1746 = vunpack.c.h.b16 %v685
        %v1747 = vunpack.c.l.b16 %v686
        %v1748 = vunpack.c.l.b16 %v687
        %v1749 = vunpack.c.h.b16 %v687
        %v1750 = vunpack.c.l.b16 %v688
        %v1751 = vunpack.c.h.b16 %v688
        %v1752 = vunpack.c.l.b16 %v689
        %v1753 = vunpack.c.l.b16 %v690
        %v1754 = vunpack.c.h.b16 %v690
        %v1755 = vunpack.c.l.b16 %v691
        %v1756 = vunpack.c.h.b16 %v691
        %v1757 = vunpack.c.l.b16 %v692
        %v1758 = vunpack.c.l.b16 %v693
        %v1759 = vunpack.c.h.b16 %v693
        %v1760 = vunpack.c.l.b16 %v694
        %v1761 = vunpack.c.h.b16 %v694
        %v1762 = vunpack.c.l.b16 %v695
        %v1763 = vunpack.c.l.b16 %v696
        %v1764 = vunpack.c.h.b16 %v696
        %v1765 = vunpack.c.l.b16 %v697
        %v1766 = vunpack.c.h.b16 %v697
        %v1767 = vunpack.c.l.b16 %v698
        %v1768 = vunpack.c.l.b16 %v699
        %v1769 = vunpack.c.h.b16 %v699
        %v1770 = vunpack.c.l.b16 %v700
        %v1771 = vunpack.c.h.b16 %v700
        %v1772 = vunpack.c.l.b16 %v701
        %v1773 = vunpack.c.l.b16 %v702
        %v1774 = vunpack.c.h.b16 %v702
        %v1775 = vunpack.c.l.b16 %v703
        %v1776 = vunpack.c.h.b16 %v703
        %v1777 = vunpack.c.l.b16 %v704
        %v1778 = vunpack.c.l.b16 %v705
        %v1779 = vunpack.c.h.b16 %v705
        %v1780 = vunpack.c.l.b16 %v706
        %v1781 = vunpack.c.h.b16 %v706
        %v1782 = vunpack.c.l.b16 %v707
        %v1783 = vunpack.c.l.b16 %v708
        %v1784 = vunpack.c.h.b16 %v708
        %v1785 = vunpack.c.l.b16 %v709
        %v1786 = vunpack.c.h.b16 %v709
        %v1787 = vunpack.c.l.b16 %v710
        %v1788 = vunpack.c.l.b16 %v711
        %v1789 = vunpack.c.h.b16 %v711
        %v1790 = vunpack.c.l.b16 %v712
        %v1791 = vunpack.c.h.b16 %v712
        %v1792 = vunpack.c.l.b16 %v713
        %v1793 = vunpack.c.l.b16 %v714
        %v1794 = vunpack.c.h.b16 %v714
        %v1795 = vunpack.c.l.b16 %v715
        %v1796 = vunpack.c.h.b16 %v715
        %v1797 = vunpack.c.l.b16 %v716
        %v1798 = vunpack.c.l.b16 %v717
        %v1799 = vunpack.c.h.b16 %v717
        %v1800 = vunpack.c.l.b16 %v718
        %v1801 = vunpack.c.h.b16 %v718
        %v1802 = vunpack.c.l.b16 %v719
        %v1803 = vunpack.c.l.b16 %v720
        %v1804 = vunpack.c.h.b16 %v720
        %v1805 = vunpack.c.l.b16 %v721
        %v1806 = vunpack.c.h.b16 %v721
        %v1807 = vunpack.c.l.b16 %v722
        %v1808 = vunpack.c.l.b16 %v723
        %v1809 = vunpack.c.h.b16 %v723
        %v1810 = vunpack.c.l.b16 %v724
        %v1811 = vunpack.c.h.b16 %v724
        %v1812 = vunpack.c.l.b16 %v725
        %v1813 = vunpack.c.l.b16 %v726
        %v1814 = vunpack.c.h.b16 %v726
        %v1815 = vunpack.c.l.b16 %v727
        %v1816 = vunpack.c.h.b16 %v727
        %v1817 = vunpack.c.l.b16 %v728
        %v1818 = vunpack.c.l.b16 %v729
        %v1819 = vunpack.c.h.b16 %v729
        %v1820 = vunpack.c.l.b16 %v730
        %v1821 = vunpack.c.h.b16 %v730
        %v1822 = vunpack.c.l.b16 %v731
        %v1823 = vunpack.c.l.b16 %v732
        %v1824 = vunpack.c.h.b16 %v732
        %v1825 = vunpack.c.l.b16 %v733
        %v1826 = vunpack.c.h.b16 %v733
        %v1827 = vunpack.c.l.b16 %v734
        %v1828 = vunpack.c.l.b16 %v735
        %v1829 = vunpack.c.h.b16 %v735
        %v1830 = vunpack.c.l.b16 %v736
        %v1831 = vunpack.c.h.b16 %v736
        %v1832 = vunpack.c.l.b16 %v737
        %v1833 = vunpack.c.l.b16 %v738
        %v1834 = vunpack.c.h.b16 %v738
        %v1835 = vunpack.c.l.b16 %v739
        %v1836 = vunpack.c.h.b16 %v739
        %v1837 = vunpack.c.l.b16 %v740
        %v1838 = vunpack.c.l.b16 %v741
        %v1839 = vunpack.c.h.b16 %v741
        %v1840 = vunpack.c.l.b16 %v742
        %v1841 = vunpack.c.h.b16 %v742
        %v1842 = vunpack.c.l.b16 %v743
        %v1843 = vunpack.c.l.b16 %v744
        %v1844 = vunpack.c.h.b16 %v744
        %v1845 = vunpack.c.l.b16 %v745
        %v1846 = vunpack.c.h.b16 %v745
        %v1847 = vunpack.c.l.b16 %v746
        %v1848 = vunpack.c.l.b16 %v747
        %v1849 = vunpack.c.h.b16 %v747
        %v1850 = vunpack.c.l.b16 %v748
        %v1851 = vunpack.c.h.b16 %v748
        %v1852 = vunpack.c.l.b16 %v749
        %v1853 = vunpack.c.l.b16 %v750
        %v1854 = vunpack.c.h.b16 %v750
        %v1855 = vunpack.c.l.b16 %v751
        %v1856 = vunpack.c.h.b16 %v751
        %v1857 = vunpack.c.l.b16 %v752
        %v1858 = vunpack.c.l.b16 %v753
        %v1859 = vunpack.c.h.b16 %v753
        %v1860 = vunpack.c.l.b16 %v754
        %v1861 = vunpack.c.h.b16 %v754
        %v1862 = vunpack.c.l.b16 %v755
        %v1863 = vunpack.c.l.b16 %v756
        %v1864 = vunpack.c.h.b16 %v756
        %v1865 = vunpack.c.l.b16 %v757
        %v1866 = vunpack.c.h.b16 %v757
        %v1867 = vunpack.c.l.b16 %v758
        %v1868 = vpack.c.b16 %v1233, %v1228
        %v1869 = vpack.c.b16 %v1234, %v1229
        %v1870 = vpack.c.b16 %v1235, %v1230
        %v1871 = vpack.c.b16 %v1236, %v1231
        %v1872 = vpack.c.b16 %v1237, %v1232
        %v1873 = vpack.c.b16 %v1243, %v1238
        %v1874 = vpack.c.b16 %v1244, %v1239
        %v1875 = vpack.c.b16 %v1245, %v1240
        %v1876 = vpack.c.b16 %v1246, %v1241
        %v1877 = vpack.c.b16 %v1247, %v1242
        %v1878 = vpack.c.b16 %v1253, %v1248
        %v1879 = vpack.c.b16 %v1254, %v1249
        %v1880 = vpack.c.b16 %v1255, %v1250
        %v1881 = vpack.c.b16 %v1256, %v1251
        %v1882 = vpack.c.b16 %v1257, %v1252
        %v1883 = vpack.c.b16 %v1263, %v1258
        %v1884 = vpack.c.b16 %v1264, %v1259
        %v1885 = vpack.c.b16 %v1265, %v1260
        %v1886 = vpack.c.b16 %v1266, %v1261
        %v1887 = vpack.c.b16 %v1267, %v1262
        %v1888 = vpack.c.b16 %v1273, %v1268
        %v1889 = vpack.c.b16 %v1274, %v1269
        %v1890 = vpack.c.b16 %v1275, %v1270
        %v1891 = vpack.c.b16 %v1276, %v1271
        %v1892 = vpack.c.b16 %v1277, %v1272
        %v1893 = vpack.c.b16 %v1283, %v1278
        %v1894 = vpack.c.b16 %v1284, %v1279
        %v1895 = vpack.c.b16 %v1285, %v1280
        %v1896 = vpack.c.b16 %v1286, %v1281
        %v1897 = vpack.c.b16 %v1287, %v1282
        %v1898 = vpack.c.b16 %v1293, %v1288
        %v1899 = vpack.c.b16 %v1294, %v1289
        %v1900 = vpack.c.b16 %v1295, %v1290
        %v1901 = vpack.c.b16 %v1296, %v1291
        %v1902 = vpack.c.b16 %v1297, %v1292
        %v1903 = vpack.c.b16 %v1303, %v1298
        %v1904 = vpack.c.b16 %v1304, %v1299
        %v1905 = vpack.c.b16 %v1305, %v1300
        %v1906 = vpack.c.b16 %v1306, %v1301
        %v1907 = vpack.c.b16 %v1307, %v1302
        %v1908 = vpack.c.b16 %v1313, %v1308
        %v1909 = vpack.c.b16 %v1314, %v1309
        %v1910 = vpack.c.b16 %v1315, %v1310
        %v1911 = vpack.c.b16 %v1316, %v1311
        %v1912 = vpack.c.b16 %v1317, %v1312
        %v1913 = vpack.c.b16 %v1323, %v1318
        %v1914 = vpack.c.b16 %v1324, %v1319
        %v1915 = vpack.c.b16 %v1325, %v1320
        %v1916 = vpack.c.b16 %v1326, %v1321
        %v1917 = vpack.c.b16 %v1327, %v1322
        %v1918 = vpack.c.b16 %v1333, %v1328
        %v1919 = vpack.c.b16 %v1334, %v1329
        %v1920 = vpack.c.b16 %v1335, %v1330
        %v1921 = vpack.c.b16 %v1336, %v1331
        %v1922 = vpack.c.b16 %v1337, %v1332
        %v1923 = vpack.c.b16 %v1343, %v1338
        %v1924 = vpack.c.b16 %v1344, %v1339
        %v1925 = vpack.c.b16 %v1345, %v1340
        %v1926 = vpack.c.b16 %v1346, %v1341
        %v1927 = vpack.c.b16 %v1347, %v1342
        %v1928 = vpack.c.b16 %v1353, %v1348
        %v1929 = vpack.c.b16 %v1354, %v1349
        %v1930 = vpack.c.b16 %v1355, %v1350
        %v1931 = vpack.c.b16 %v1356, %v1351
        %v1932 = vpack.c.b16 %v1357, %v1352
        %v1933 = vpack.c.b16 %v1363, %v1358
        %v1934 = vpack.c.b16 %v1364, %v1359
        %v1935 = vpack.c.b16 %v1365, %v1360
        %v1936 = vpack.c.b16 %v1366, %v1361
        %v1937 = vpack.c.b16 %v1367, %v1362
        %v1938 = vpack.c.b16 %v1373, %v1368
        %v1939 = vpack.c.b16 %v1374, %v1369
        %v1940 = vpack.c.b16 %v1375, %v1370
        %v1941 = vpack.c.b16 %v1376, %v1371
        %v1942 = vpack.c.b16 %v1377, %v1372
        %v1943 = vpack.c.b16 %v1383, %v1378
        %v1944 = vpack.c.b16 %v1384, %v1379
        %v1945 = vpack.c.b16 %v1385, %v1380
        %v1946 = vpack.c.b16 %v1386, %v1381
        %v1947 = vpack.c.b16 %v1387, %v1382
        %v1948 = vpack.c.b16 %v1393, %v1388
        %v1949 = vpack.c.b16 %v1394, %v1389
        %v1950 = vpack.c.b16 %v1395, %v1390
        %v1951 = vpack.c.b16 %v1396, %v1391
        %v1952 = vpack.c.b16 %v1397, %v1392
        %v1953 = vpack.c.b16 %v1403, %v1398
        %v1954 = vpack.c.b16 %v1404, %v1399
        %v1955 = vpack.c.b16 %v1405, %v1400
        %v1956 = vpack.c.b16 %v1406, %v1401
        %v1957 = vpack.c.b16 %v1407, %v1402
        %v1958 = vpack.c.b16 %v1413, %v1408
        %v1959 = vpack.c.b16 %v1414, %v1409
        %v1960 = vpack.c.b16 %v1415, %v1410
        %v1961 = vpack.c.b16 %v1416, %v1411
        %v1962 = vpack.c.b16 %v1417, %v1412
        %v1963 = vpack.c.b16 %v1423, %v1418
        %v1964 = vpack.c.b16 %v1424, %v1419
        %v1965 = vpack.c.b16 %v1425, %v1420
        %v1966 = vpack.c.b16 %v1426, %v1421
        %v1967 = vpack.c.b16 %v1427, %v1422
        %v1968 = vpack.c.b16 %v1433, %v1428
        %v1969 = vpack.c.b16 %v1434, %v1429
        %v1970 = vpack.c.b16 %v1435, %v1430
        %v1971 = vpack.c.b16 %v1436, %v1431
        %v1972 = vpack.c.b16 %v1437, %v1432
        %v1973 = vpack.c.b16 %v1443, %v1438
        %v1974 = vpack.c.b16 %v1444, %v1439
        %v1975 = vpack.c.b16 %v1445, %v1440
        %v1976 = vpack.c.b16 %v1446, %v1441
        %v1977 = vpack.c.b16 %v1447, %v1442
        %v1978 = vpack.c.b16 %v1453, %v1448
        %v1979 = vpack.c.b16 %v1454, %v1449
        %v1980 = vpack.c.b16 %v1455, %v1450
        %v1981 = vpack.c.b16 %v1456, %v1451
        %v1982 = vpack.c.b16 %v1457, %v1452
        %v1983 = vpack.c.b16 %v1463, %v1458
        %v1984 = vpack.c.b16 %v1464, %v1459
        %v1985 = vpack.c.b16 %v1465, %v1460
        %v1986 = vpack.c.b16 %v1466, %v1461
        %v1987 = vpack.c.b16 %v1467, %v1462
        %v1988 = vpack.c.b16 %v1473, %v1468
        %v1989 = vpack.c.b16 %v1474, %v1469
        %v1990 = vpack.c.b16 %v1475, %v1470
        %v1991 = vpack.c.b16 %v1476, %v1471
        %v1992 = vpack.c.b16 %v1477, %v1472
        %v1993 = vpack.c.b16 %v1483, %v1478
        %v1994 = vpack.c.b16 %v1484, %v1479
        %v1995 = vpack.c.b16 %v1485, %v1480
        %v1996 = vpack.c.b16 %v1486, %v1481
        %v1997 = vpack.c.b16 %v1487, %v1482
        %v1998 = vpack.c.b16 %v1493, %v1488
        %v1999 = vpack.c.b16 %v1494, %v1489
        %v2000 = vpack.c.b16 %v1495, %v1490
        %v2001 = vpack.c.b16 %v1496, %v1491
        %v2002 = vpack.c.b16 %v1497, %v1492
        %v2003 = vpack.c.b16 %v1503, %v1498
        %v2004 = vpack.c.b16 %v1504, %v1499
        %v2005 = vpack.c.b16 %v1505, %v1500
        %v2006 = vpack.c.b16 %v1506, %v1501
        %v2007 = vpack.c.b16 %v1507, %v1502
        %v2008 = vpack.c.b16 %v1513, %v1508
        %v2009 = vpack.c.b16 %v1514, %v1509
        %v2010 = vpack.c.b16 %v1515, %v1510
        %v2011 = vpack.c.b16 %v1516, %v1511
        %v2012 = vpack.c.b16 %v1517, %v1512
        %v2013 = vpack.c.b16 %v1523, %v1518
        %v2014 = vpack.c.b16 %v1524, %v1519
        %v2015 = vpack.c.b16 %v1525, %v1520
        %v2016 = vpack.c.b16 %v1526, %v1521
        %v2017 = vpack.c.b16 %v1527, %v1522
        %v2018 = vpack.c.b16 %v1533, %v1528
        %v2019 = vpack.c.b16 %v1534, %v1529
        %v2020 = vpack.c.b16 %v1535, %v1530
        %v2021 = vpack.c.b16 %v1536, %v1531
        %v2022 = vpack.c.b16 %v1537, %v1532
        %v2023 = vpack.c.b16 %v1543, %v1538
        %v2024 = vpack.c.b16 %v1544, %v1539
        %v2025 = vpack.c.b16 %v1545, %v1540
        %v2026 = vpack.c.b16 %v1546, %v1541
        %v2027 = vpack.c.b16 %v1547, %v1542
        %v2028 = vpack.c.b16 %v1553, %v1548
        %v2029 = vpack.c.b16 %v1554, %v1549
        %v2030 = vpack.c.b16 %v1555, %v1550
        %v2031 = vpack.c.b16 %v1556, %v1551
        %v2032 = vpack.c.b16 %v1557, %v1552
        %v2033 = vpack.c.b16 %v1563, %v1558
        %v2034 = vpack.c.b16 %v1564, %v1559
        %v2035 = vpack.c.b16 %v1565, %v1560
        %v2036 = vpack.c.b16 %v1566, %v1561
        %v2037 = vpack.c.b16 %v1567, %v1562
        %v2038 = vpack.c.b16 %v1573, %v1568
        %v2039 = vpack.c.b16 %v1574, %v1569
        %v2040 = vpack.c.b16 %v1575, %v1570
        %v2041 = vpack.c.b16 %v1576, %v1571
        %v2042 = vpack.c.b16 %v1577, %v1572
        %v2043 = vpack.c.b16 %v1583, %v1578
        %v2044 = vpack.c.b16 %v1584, %v1579
        %v2045 = vpack.c.b16 %v1585, %v1580
        %v2046 = vpack.c.b16 %v1586, %v1581
        %v2047 = vpack.c.b16 %v1587, %v1582
        %v2048 = vpack.c.b16 %v1593, %v1588
        %v2049 = vpack.c.b16 %v1594, %v1589
        %v2050 = vpack.c.b16 %v1595, %v1590
        %v2051 = vpack.c.b16 %v1596, %v1591
        %v2052 = vpack.c.b16 %v1597, %v1592
        %v2053 = vpack.c.b16 %v1603, %v1598
        %v2054 = vpack.c.b16 %v1604, %v1599
        %v2055 = vpack.c.b16 %v1605, %v1600
        %v2056 = vpack.c.b16 %v1606, %v1601
        %v2057 = vpack.c.b16 %v1607, %v1602
        %v2058 = vpack.c.b16 %v1613, %v1608
        %v2059 = vpack.c.b16 %v1614, %v1609
        %v2060 = vpack.c.b16 %v1615, %v1610
        %v2061 = vpack.c.b16 %v1616, %v1611
        %v2062 = vpack.c.b16 %v1617, %v1612
        %v2063 = vpack.c.b16 %v1623, %v1618
        %v2064 = vpack.c.b16 %v1624, %v1619
        %v2065 = vpack.c.b16 %v1625, %v1620
        %v2066 = vpack.c.b16 %v1626, %v1621
        %v2067 = vpack.c.b16 %v1627, %v1622
        %v2068 = vpack.c.b16 %v1633, %v1628
        %v2069 = vpack.c.b16 %v1634, %v1629
        %v2070 = vpack.c.b16 %v1635, %v1630
        %v2071 = vpack.c.b16 %v1636, %v1631
        %v2072 = vpack.c.b16 %v1637, %v1632
        %v2073 = vpack.c.b16 %v1643, %v1638
        %v2074 = vpack.c.b16 %v1644, %v1639
        %v2075 = vpack.c.b16 %v1645, %v1640
        %v2076 = vpack.c.b16 %v1646, %v1641
        %v2077 = vpack.c.b16 %v1647, %v1642
        %v2078 = vpack.c.b16 %v1653, %v1648
        %v2079 = vpack.c.b16 %v1654, %v1649
        %v2080 = vpack.c.b16 %v1655, %v1650
        %v2081 = vpack.c.b16 %v1656, %v1651
        %v2082 = vpack.c.b16 %v1657, %v1652
        %v2083 = vpack.c.b16 %v1663, %v1658
        %v2084 = vpack.c.b16 %v1664, %v1659
        %v2085 = vpack.c.b16 %v1665, %v1660
        %v2086 = vpack.c.b16 %v1666, %v1661
        %v2087 = vpack.c.b16 %v1667, %v1662
        %v2088 = vpack.c.b16 %v1673, %v1668
        %v2089 = vpack.c.b16 %v1674, %v1669
        %v2090 = vpack.c.b16 %v1675, %v1670
        %v2091 = vpack.c.b16 %v1676, %v1671
        %v2092 = vpack.c.b16 %v1677, %v1672
        %v2093 = vpack.c.b16 %v1683, %v1678
        %v2094 = vpack.c.b16 %v1684, %v1679
        %v2095 = vpack.c.b16 %v1685, %v1680
        %v2096 = vpack.c.b16 %v1686, %v1681
        %v2097 = vpack.c.b16 %v1687, %v1682
        %v2098 = vpack.c.b16 %v1693, %v1688
        %v2099 = vpack.c.b16 %v1694, %v1689
        %v2100 = vpack.c.b16 %v1695, %v1690
        %v2101 = vpack.c.b16 %v1696, %v1691
        %v2102 = vpack.c.b16 %v1697, %v1692
        %v2103 = vpack.c.b16 %v1703, %v1698
        %v2104 = vpack.c.b16 %v1704, %v1699
        %v2105 = vpack.c.b16 %v1705, %v1700
        %v2106 = vpack.c.b16 %v1706, %v1701
        %v2107 = vpack.c.b16 %v1707, %v1702
        %v2108 = vpack.c.b16 %v1713, %v1708
        %v2109 = vpack.c.b16 %v1714, %v1709
        %v2110 = vpack.c.b16 %v1715, %v1710
        %v2111 = vpack.c.b16 %v1716, %v1711
        %v2112 = vpack.c.b16 %v1717, %v1712
        %v2113 = vpack.c.b16 %v1723, %v1718
        %v2114 = vpack.c.b16 %v1724, %v1719
        %v2115 = vpack.c.b16 %v1725, %v1720
        %v2116 = vpack.c.b16 %v1726, %v1721
        %v2117 = vpack.c.b16 %v1727, %v1722
        %v2118 = vpack.c.b16 %v1733, %v1728
        %v2119 = vpack.c.b16 %v1734, %v1729
        %v2120 = vpack.c.b16 %v1735, %v1730
        %v2121 = vpack.c.b16 %v1736, %v1731
        %v2122 = vpack.c.b16 %v1737, %v1732
        %v2123 = vpack.c.b16 %v1743, %v1738
        %v2124 = vpack.c.b16 %v1744, %v1739
        %v2125 = vpack.c.b16 %v1745, %v1740
        %v2126 = vpack.c.b16 %v1746, %v1741
        %v2127 = vpack.c.b16 %v1747, %v1742
        %v2128 = vpack.c.b16 %v1753, %v1748
        %v2129 = vpack.c.b16 %v1754, %v1749
        %v2130 = vpack.c.b16 %v1755, %v1750
        %v2131 = vpack.c.b16 %v1756, %v1751
        %v2132 = vpack.c.b16 %v1757, %v1752
        %v2133 = vpack.c.b16 %v1763, %v1758
        %v2134 = vpack.c.b16 %v1764, %v1759
        %v2135 = vpack.c.b16 %v1765, %v1760
        %v2136 = vpack.c.b16 %v1766, %v1761
        %v2137 = vpack.c.b16 %v1767, %v1762
        %v2138 = vpack.c.b16 %v1773, %v1768
        %v2139 = vpack.c.b16 %v1774, %v1769
        %v2140 = vpack.c.b16 %v1775, %v1770
        %v2141 = vpack.c.b16 %v1776, %v1771
        %v2142 = vpack.c.b16 %v1777, %v1772
        %v2143 = vpack.c.b16 %v1783, %v1778
        %v2144 = vpack.c.b16 %v1784, %v1779
        %v2145 = vpack.c.b16 %v1785, %v1780
        %v2146 = vpack.c.b16 %v1786, %v1781
        %v2147 = vpack.c.b16 %v1787, %v1782
        %v2148 = vpack.c.b16 %v1793, %v1788
        %v2149 = vpack.c.b16 %v1794, %v1789
        %v2150 = vpack.c.b16 %v1795, %v1790
        %v2151 = vpack.c.b16 %v1796, %v1791
        %v2152 = vpack.c.b16 %v1797, %v1792
        %v2153 = vpack.c.b16 %v1803, %v1798
        %v2154 = vpack.c.b16 %v1804, %v1799
        %v2155 = vpack.c.b16 %v1805, %v1800
        %v2156 = vpack.c.b16 %v1806, %v1801
        %v2157 = vpack.c.b16 %v1807, %v1802
        %v2158 = vpack.c.b16 %v1813, %v1808
        %v2159 = vpack.c.b16 %v1814, %v1809
        %v2160 = vpack.c.b16 %v1815, %v1810
        %v2161 = vpack.c.b16 %v1816, %v1811
        %v2162 = vpack.c.b16 %v1817, %v1812
        %v2163 = vpack.c.b16 %v1823, %v1818
        %v2164 = vpack.c.b16 %v1824, %v1819
        %v2165 = vpack.c.b16 %v1825, %v1820
        %v2166 = vpack.c.b16 %v1826, %v1821
        %v2167 = vpack.c.b16 %v1827, %v1822
        %v2168 = vpack.c.b16 %v1833, %v1828
        %v2169 = vpack.c.b16 %v1834, %v1829
        %v2170 = vpack.c.b16 %v1835, %v1830
        %v2171 = vpack.c.b16 %v1836, %v1831
        %v2172 = vpack.c.b16 %v1837, %v1832
        %v2173 = vpack.c.b16 %v1843, %v1838
        %v2174 = vpack.c.b16 %v1844, %v1839
        %v2175 = vpack.c.b16 %v1845, %v1840
        %v2176 = vpack.c.b16 %v1846, %v1841
        %v2177 = vpack.c.b16 %v1847, %v1842
        %v2178 = vpack.c.b16 %v1853, %v1848
        %v2179 = vpack.c.b16 %v1854, %v1849
        %v2180 = vpack.c.b16 %v1855, %v1850
        %v2181 = vpack.c.b16 %v1856, %v1851
        %v2182 = vpack.c.b16 %v1857, %v1852
        %v2183 = vpack.c.b16 %v1863, %v1858
        %v2184 = vpack.c.b16 %v1864, %v1859
        %v2185 = vpack.c.b16 %v1865, %v1860
        %v2186 = vpack.c.b16 %v1866, %v1861
        %v2187 = vpack.c.b16 %v1867, %v1862
        %2508 = vmatprep.subr.bf16.mxu0 %v1869
        %2509 = vmatpush1.bf16.msra.mxu0 %v1868
        %2510 = vmatprep.subr.bf16.mxu0 %v1874
        %2511 = vmatpush1.bf16.msra.mxu0 %v1873
        %2512 = vmatprep.subr.bf16.mxu0 %v1879
        %2513 = vmatpush1.bf16.msra.mxu0 %v1878
        %2514 = vmatprep.subr.bf16.mxu0 %v1884
        %2515 = vmatpush1.bf16.msra.mxu0 %v1883
        %2516 = vmatprep.subr.bf16.mxu0 %v1889
        %2517 = vmatpush1.bf16.msra.mxu0 %v1888
        %2518 = vmatprep.subr.bf16.mxu0 %v1894
        %2519 = vmatpush1.bf16.msra.mxu0 %v1893
        %2520 = vmatprep.subr.bf16.mxu0 %v1899
        %2521 = vmatpush1.bf16.msra.mxu0 %v1898
        %2522 = vmatprep.subr.bf16.mxu0 %v1904
        %2523 = vmatpush1.bf16.msra.mxu0 %v1903
        %2524 = vmatprep.subr.bf16.mxu0 %v1909
        %2525 = vmatpush1.bf16.msra.mxu0 %v1908
        %2526 = vmatprep.subr.bf16.mxu0 %v1914
        %2527 = vmatpush1.bf16.msra.mxu0 %v1913
        %2528 = vmatprep.subr.bf16.mxu0 %v1919
        %2529 = vmatpush1.bf16.msra.mxu0 %v1918
        %2530 = vmatprep.subr.bf16.mxu0 %v1924
        %2531 = vmatpush1.bf16.msra.mxu0 %v1923
        %2532 = vmatprep.subr.bf16.mxu0 %v1929
        %2533 = vmatpush1.bf16.msra.mxu0 %v1928
        %2534 = vmatprep.subr.bf16.mxu0 %v1934
        %2535 = vmatpush1.bf16.msra.mxu0 %v1933
        %2536 = vmatprep.subr.bf16.mxu0 %v1939
        %2537 = vmatpush1.bf16.msra.mxu0 %v1938
        %2538 = vmatprep.subr.bf16.mxu0 %v1944
        %2539 = vmatpush1.bf16.msra.mxu0 %v1943
        %2540 = vmatprep.mubr.bf16.mxu0 %v824
        %2541 = vmatmul.mubr.bf16.gmra.mrb[0].mxu0 %v810
        %v2542 = vpop.f32.mrb[0].mxu0
        %v2543 = vadd.f32 %v764, %v2542
        %v2544 = vpop.f32.mrb[0].mxu0
        %v2545 = vadd.f32 %v768, %v2544
        %v2546 = vpop.f32.mrb[0].mxu0
        %v2547 = vpop.f32.mrb[0].mxu0
        %2548 = vdwg.mxu0
        %2549 = vmatprep.subr.bf16.mxu0 %v1949
        %2550 = vmatpush1.bf16.msra.mxu0 %v1948
        %2551 = vmatprep.subr.bf16.mxu0 %v1954
        %2552 = vmatpush1.bf16.msra.mxu0 %v1953
        %2553 = vmatprep.subr.bf16.mxu0 %v1959
        %2554 = vmatpush1.bf16.msra.mxu0 %v1958
        %2555 = vmatprep.subr.bf16.mxu0 %v1964
        %2556 = vmatpush1.bf16.msra.mxu0 %v1963
        %2557 = vmatprep.subr.bf16.mxu0 %v1969
        %2558 = vmatpush1.bf16.msra.mxu0 %v1968
        %2559 = vmatprep.subr.bf16.mxu0 %v1974
        %2560 = vmatpush1.bf16.msra.mxu0 %v1973
        %2561 = vmatprep.subr.bf16.mxu0 %v1979
        %2562 = vmatpush1.bf16.msra.mxu0 %v1978
        %2563 = vmatprep.subr.bf16.mxu0 %v1984
        %2564 = vmatpush1.bf16.msra.mxu0 %v1983
        %2565 = vmatprep.subr.bf16.mxu0 %v1989
        %2566 = vmatpush1.bf16.msra.mxu0 %v1988
        %2567 = vmatprep.subr.bf16.mxu0 %v1994
        %2568 = vmatpush1.bf16.msra.mxu0 %v1993
        %2569 = vmatprep.subr.bf16.mxu0 %v1999
        %2570 = vmatpush1.bf16.msra.mxu0 %v1998
        %2571 = vmatprep.subr.bf16.mxu0 %v2004
        %2572 = vmatpush1.bf16.msra.mxu0 %v2003
        %2573 = vmatprep.subr.bf16.mxu0 %v2009
        %2574 = vmatpush1.bf16.msra.mxu0 %v2008
        %2575 = vmatprep.subr.bf16.mxu0 %v2014
        %2576 = vmatpush1.bf16.msra.mxu0 %v2013
        %2577 = vmatprep.subr.bf16.mxu0 %v2019
        %2578 = vmatpush1.bf16.msra.mxu0 %v2018
        %2579 = vmatprep.subr.bf16.mxu0 %v2024
        %2580 = vmatpush1.bf16.msra.mxu0 %v2023
        %2581 = vmatprep.mubr.bf16.mxu0 %v834
        %2582 = vmatmul.mubr.bf16.gmra.mrb[0].mxu0 %v832
        %v2583 = vpop.f32.mrb[0].mxu0
        %v2584 = vadd.f32 %v2543, %v2583
        %v2585 = vpop.f32.mrb[0].mxu0
        %v2586 = vadd.f32 %v2545, %v2585
        %v2587 = vpop.f32.mrb[0].mxu0
        %v2588 = vpop.f32.mrb[0].mxu0
        %2589 = vdwg.mxu0
        %2590 = vmatprep.subr.bf16.mxu0 %v2029
        %2591 = vmatpush1.bf16.msra.mxu0 %v2028
        %2592 = vmatprep.subr.bf16.mxu0 %v2034
        %2593 = vmatpush1.bf16.msra.mxu0 %v2033
        %2594 = vmatprep.subr.bf16.mxu0 %v2039
        %2595 = vmatpush1.bf16.msra.mxu0 %v2038
        %2596 = vmatprep.subr.bf16.mxu0 %v2044
        %2597 = vmatpush1.bf16.msra.mxu0 %v2043
        %2598 = vmatprep.subr.bf16.mxu0 %v2049
        %2599 = vmatpush1.bf16.msra.mxu0 %v2048
        %2600 = vmatprep.subr.bf16.mxu0 %v2054
        %2601 = vmatpush1.bf16.msra.mxu0 %v2053
        %2602 = vmatprep.subr.bf16.mxu0 %v2059
        %2603 = vmatpush1.bf16.msra.mxu0 %v2058
        %2604 = vmatprep.subr.bf16.mxu0 %v2064
        %2605 = vmatpush1.bf16.msra.mxu0 %v2063
        %2606 = vmatprep.subr.bf16.mxu0 %v2069
        %2607 = vmatpush1.bf16.msra.mxu0 %v2068
        %2608 = vmatprep.subr.bf16.mxu0 %v2074
        %2609 = vmatpush1.bf16.msra.mxu0 %v2073
        %2610 = vmatprep.subr.bf16.mxu0 %v2079
        %2611 = vmatpush1.bf16.msra.mxu0 %v2078
        %2612 = vmatprep.subr.bf16.mxu0 %v2084
        %2613 = vmatpush1.bf16.msra.mxu0 %v2083
        %2614 = vmatprep.subr.bf16.mxu0 %v2089
        %2615 = vmatpush1.bf16.msra.mxu0 %v2088
        %2616 = vmatprep.subr.bf16.mxu0 %v2094
        %2617 = vmatpush1.bf16.msra.mxu0 %v2093
        %2618 = vmatprep.subr.bf16.mxu0 %v2099
        %2619 = vmatpush1.bf16.msra.mxu0 %v2098
        %2620 = vmatprep.subr.bf16.mxu0 %v2104
        %2621 = vmatpush1.bf16.msra.mxu0 %v2103
        %2622 = vmatprep.mubr.bf16.mxu0 %v831
        %2623 = vmatmul.mubr.bf16.gmra.mrb[0].mxu0 %v817
        %v2624 = vpop.f32.mrb[0].mxu0
        %v2625 = vadd.f32 %v2584, %v2624
        %v2626 = vpop.f32.mrb[0].mxu0
        %v2627 = vadd.f32 %v2586, %v2626
        %v2628 = vpop.f32.mrb[0].mxu0
        %v2629 = vpop.f32.mrb[0].mxu0
        %2630 = vdwg.mxu0
        %2631 = vmatprep.subr.bf16.mxu0 %v2109
        %2632 = vmatpush1.bf16.msra.mxu0 %v2108
        %2633 = vmatprep.subr.bf16.mxu0 %v2114
        %2634 = vmatpush1.bf16.msra.mxu0 %v2113
        %2635 = vmatprep.subr.bf16.mxu0 %v2119
        %2636 = vmatpush1.bf16.msra.mxu0 %v2118
        %2637 = vmatprep.subr.bf16.mxu0 %v2124
        %2638 = vmatpush1.bf16.msra.mxu0 %v2123
        %2639 = vmatprep.subr.bf16.mxu0 %v2129
        %2640 = vmatpush1.bf16.msra.mxu0 %v2128
        %2641 = vmatprep.subr.bf16.mxu0 %v2134
        %2642 = vmatpush1.bf16.msra.mxu0 %v2133
        %2643 = vmatprep.subr.bf16.mxu0 %v2139
        %2644 = vmatpush1.bf16.msra.mxu0 %v2138
        %2645 = vmatprep.subr.bf16.mxu0 %v2144
        %2646 = vmatpush1.bf16.msra.mxu0 %v2143
        %2647 = vmatprep.subr.bf16.mxu0 %v2149
        %2648 = vmatpush1.bf16.msra.mxu0 %v2148
        %2649 = vmatprep.subr.bf16.mxu0 %v2154
        %2650 = vmatpush1.bf16.msra.mxu0 %v2153
        %2651 = vmatprep.subr.bf16.mxu0 %v2159
        %2652 = vmatpush1.bf16.msra.mxu0 %v2158
        %2653 = vmatprep.subr.bf16.mxu0 %v2164
        %2654 = vmatpush1.bf16.msra.mxu0 %v2163
        %2655 = vmatprep.subr.bf16.mxu0 %v2169
        %2656 = vmatpush1.bf16.msra.mxu0 %v2168
        %2657 = vmatprep.subr.bf16.mxu0 %v2174
        %2658 = vmatpush1.bf16.msra.mxu0 %v2173
        %2659 = vmatprep.subr.bf16.mxu0 %v2179
        %2660 = vmatpush1.bf16.msra.mxu0 %v2178
        %2661 = vmatprep.subr.bf16.mxu0 %v2184
        %2662 = vmatpush1.bf16.msra.mxu0 %v2183
        %2663 = vmatprep.mubr.bf16.mxu0 %v835
        %2664 = vmatmul.mubr.bf16.gmra.mrb[0].mxu0 %v833
        %v2665 = vpop.f32.mrb[0].mxu0
        %v2666 = vadd.f32 %v2625, %v2665
        %v2667 = vpop.f32.mrb[0].mxu0
        %v2668 = vadd.f32 %v2627, %v2667
        %v2669 = vpop.f32.mrb[0].mxu0
        %v2670 = vpop.f32.mrb[0].mxu0
        %2671 = vdwg.mxu0
        %2672 = vmatprep.subr.bf16.mxu0 %v1871
        %2673 = vmatpush1.bf16.msra.mxu0 %v1870
        %2674 = vmatprep.subr.bf16.mxu0 %v1876
        %2675 = vmatpush1.bf16.msra.mxu0 %v1875
        %2676 = vmatprep.subr.bf16.mxu0 %v1881
        %2677 = vmatpush1.bf16.msra.mxu0 %v1880
        %2678 = vmatprep.subr.bf16.mxu0 %v1886
        %2679 = vmatpush1.bf16.msra.mxu0 %v1885
        %2680 = vmatprep.subr.bf16.mxu0 %v1891
        %2681 = vmatpush1.bf16.msra.mxu0 %v1890
        %2682 = vmatprep.subr.bf16.mxu0 %v1896
        %2683 = vmatpush1.bf16.msra.mxu0 %v1895
        %2684 = vmatprep.subr.bf16.mxu0 %v1901
        %2685 = vmatpush1.bf16.msra.mxu0 %v1900
        %2686 = vmatprep.subr.bf16.mxu0 %v1906
        %2687 = vmatpush1.bf16.msra.mxu0 %v1905
        %2688 = vmatprep.subr.bf16.mxu0 %v1911
        %2689 = vmatpush1.bf16.msra.mxu0 %v1910
        %2690 = vmatprep.subr.bf16.mxu0 %v1916
        %2691 = vmatpush1.bf16.msra.mxu0 %v1915
        %2692 = vmatprep.subr.bf16.mxu0 %v1921
        %2693 = vmatpush1.bf16.msra.mxu0 %v1920
        %2694 = vmatprep.subr.bf16.mxu0 %v1926
        %2695 = vmatpush1.bf16.msra.mxu0 %v1925
        %2696 = vmatprep.subr.bf16.mxu0 %v1931
        %2697 = vmatpush1.bf16.msra.mxu0 %v1930
        %2698 = vmatprep.subr.bf16.mxu0 %v1936
        %2699 = vmatpush1.bf16.msra.mxu0 %v1935
        %2700 = vmatprep.subr.bf16.mxu0 %v1941
        %2701 = vmatpush1.bf16.msra.mxu0 %v1940
        %2702 = vmatprep.subr.bf16.mxu0 %v1946
        %2703 = vmatpush1.bf16.msra.mxu0 %v1945
        %2704 = vmatprep.mubr.bf16.mxu0 %v824
        %2705 = vmatmul.mubr.bf16.gmra.mrb[0].mxu0 %v810
        %v2706 = vpop.f32.mrb[0].mxu0
        %v2707 = vadd.f32 %v772, %v2706
        %v2708 = vpop.f32.mrb[0].mxu0
        %v2709 = vadd.f32 %v776, %v2708
        %v2710 = vpop.f32.mrb[0].mxu0
        %v2711 = vpop.f32.mrb[0].mxu0
        %2712 = vdwg.mxu0
        %2713 = vmatprep.subr.bf16.mxu0 %v1951
        %2714 = vmatpush1.bf16.msra.mxu0 %v1950
        %2715 = vmatprep.subr.bf16.mxu0 %v1956
        %2716 = vmatpush1.bf16.msra.mxu0 %v1955
        %2717 = vmatprep.subr.bf16.mxu0 %v1961
        %2718 = vmatpush1.bf16.msra.mxu0 %v1960
        %2719 = vmatprep.subr.bf16.mxu0 %v1966
        %2720 = vmatpush1.bf16.msra.mxu0 %v1965
        %2721 = vmatprep.subr.bf16.mxu0 %v1971
        %2722 = vmatpush1.bf16.msra.mxu0 %v1970
        %2723 = vmatprep.subr.bf16.mxu0 %v1976
        %2724 = vmatpush1.bf16.msra.mxu0 %v1975
        %2725 = vmatprep.subr.bf16.mxu0 %v1981
        %2726 = vmatpush1.bf16.msra.mxu0 %v1980
        %2727 = vmatprep.subr.bf16.mxu0 %v1986
        %2728 = vmatpush1.bf16.msra.mxu0 %v1985
        %2729 = vmatprep.subr.bf16.mxu0 %v1991
        %2730 = vmatpush1.bf16.msra.mxu0 %v1990
        %2731 = vmatprep.subr.bf16.mxu0 %v1996
        %2732 = vmatpush1.bf16.msra.mxu0 %v1995
        %2733 = vmatprep.subr.bf16.mxu0 %v2001
        %2734 = vmatpush1.bf16.msra.mxu0 %v2000
        %2735 = vmatprep.subr.bf16.mxu0 %v2006
        %2736 = vmatpush1.bf16.msra.mxu0 %v2005
        %2737 = vmatprep.subr.bf16.mxu0 %v2011
        %2738 = vmatpush1.bf16.msra.mxu0 %v2010
        %2739 = vmatprep.subr.bf16.mxu0 %v2016
        %2740 = vmatpush1.bf16.msra.mxu0 %v2015
        %2741 = vmatprep.subr.bf16.mxu0 %v2021
        %2742 = vmatpush1.bf16.msra.mxu0 %v2020
        %2743 = vmatprep.subr.bf16.mxu0 %v2026
        %2744 = vmatpush1.bf16.msra.mxu0 %v2025
        %2745 = vmatprep.mubr.bf16.mxu0 %v834
        %2746 = vmatmul.mubr.bf16.gmra.mrb[0].mxu0 %v832
        %v2747 = vpop.f32.mrb[0].mxu0
        %v2748 = vadd.f32 %v2707, %v2747
        %v2749 = vpop.f32.mrb[0].mxu0
        %v2750 = vadd.f32 %v2709, %v2749
        %v2751 = vpop.f32.mrb[0].mxu0
        %v2752 = vpop.f32.mrb[0].mxu0
        %2753 = vdwg.mxu0
        %2754 = vmatprep.subr.bf16.mxu0 %v2031
        %2755 = vmatpush1.bf16.msra.mxu0 %v2030
        %2756 = vmatprep.subr.bf16.mxu0 %v2036
        %2757 = vmatpush1.bf16.msra.mxu0 %v2035
        %2758 = vmatprep.subr.bf16.mxu0 %v2041
        %2759 = vmatpush1.bf16.msra.mxu0 %v2040
        %2760 = vmatprep.subr.bf16.mxu0 %v2046
        %2761 = vmatpush1.bf16.msra.mxu0 %v2045
        %2762 = vmatprep.subr.bf16.mxu0 %v2051
        %2763 = vmatpush1.bf16.msra.mxu0 %v2050
        %2764 = vmatprep.subr.bf16.mxu0 %v2056
        %2765 = vmatpush1.bf16.msra.mxu0 %v2055
        %2766 = vmatprep.subr.bf16.mxu0 %v2061
        %2767 = vmatpush1.bf16.msra.mxu0 %v2060
        %2768 = vmatprep.subr.bf16.mxu0 %v2066
        %2769 = vmatpush1.bf16.msra.mxu0 %v2065
        %2770 = vmatprep.subr.bf16.mxu0 %v2071
        %2771 = vmatpush1.bf16.msra.mxu0 %v2070
        %2772 = vmatprep.subr.bf16.mxu0 %v2076
        %2773 = vmatpush1.bf16.msra.mxu0 %v2075
        %2774 = vmatprep.subr.bf16.mxu0 %v2081
        %2775 = vmatpush1.bf16.msra.mxu0 %v2080
        %2776 = vmatprep.subr.bf16.mxu0 %v2086
        %2777 = vmatpush1.bf16.msra.mxu0 %v2085
        %2778 = vmatprep.subr.bf16.mxu0 %v2091
        %2779 = vmatpush1.bf16.msra.mxu0 %v2090
        %2780 = vmatprep.subr.bf16.mxu0 %v2096
        %2781 = vmatpush1.bf16.msra.mxu0 %v2095
        %2782 = vmatprep.subr.bf16.mxu0 %v2101
        %2783 = vmatpush1.bf16.msra.mxu0 %v2100
        %2784 = vmatprep.subr.bf16.mxu0 %v2106
        %2785 = vmatpush1.bf16.msra.mxu0 %v2105
        %2786 = vmatprep.mubr.bf16.mxu0 %v831
        %2787 = vmatmul.mubr.bf16.gmra.mrb[0].mxu0 %v817
        %v2788 = vpop.f32.mrb[0].mxu0
        %v2789 = vadd.f32 %v2748, %v2788
        %v2790 = vpop.f32.mrb[0].mxu0
        %v2791 = vadd.f32 %v2750, %v2790
        %v2792 = vpop.f32.mrb[0].mxu0
        %v2793 = vpop.f32.mrb[0].mxu0
        %2794 = vdwg.mxu0
        %2795 = vmatprep.subr.bf16.mxu0 %v2111
        %2796 = vmatpush1.bf16.msra.mxu0 %v2110
        %2797 = vmatprep.subr.bf16.mxu0 %v2116
        %2798 = vmatpush1.bf16.msra.mxu0 %v2115
        %2799 = vmatprep.subr.bf16.mxu0 %v2121
        %2800 = vmatpush1.bf16.msra.mxu0 %v2120
        %2801 = vmatprep.subr.bf16.mxu0 %v2126
        %2802 = vmatpush1.bf16.msra.mxu0 %v2125
        %2803 = vmatprep.subr.bf16.mxu0 %v2131
        %2804 = vmatpush1.bf16.msra.mxu0 %v2130
        %2805 = vmatprep.subr.bf16.mxu0 %v2136
        %2806 = vmatpush1.bf16.msra.mxu0 %v2135
        %2807 = vmatprep.subr.bf16.mxu0 %v2141
        %2808 = vmatpush1.bf16.msra.mxu0 %v2140
        %2809 = vmatprep.subr.bf16.mxu0 %v2146
        %2810 = vmatpush1.bf16.msra.mxu0 %v2145
        %2811 = vmatprep.subr.bf16.mxu0 %v2151
        %2812 = vmatpush1.bf16.msra.mxu0 %v2150
        %2813 = vmatprep.subr.bf16.mxu0 %v2156
        %2814 = vmatpush1.bf16.msra.mxu0 %v2155
        %2815 = vmatprep.subr.bf16.mxu0 %v2161
        %2816 = vmatpush1.bf16.msra.mxu0 %v2160
        %2817 = vmatprep.subr.bf16.mxu0 %v2166
        %2818 = vmatpush1.bf16.msra.mxu0 %v2165
        %2819 = vmatprep.subr.bf16.mxu0 %v2171
        %2820 = vmatpush1.bf16.msra.mxu0 %v2170
        %2821 = vmatprep.subr.bf16.mxu0 %v2176
        %2822 = vmatpush1.bf16.msra.mxu0 %v2175
        %2823 = vmatprep.subr.bf16.mxu0 %v2181
        %2824 = vmatpush1.bf16.msra.mxu0 %v2180
        %2825 = vmatprep.subr.bf16.mxu0 %v2186
        %2826 = vmatpush1.bf16.msra.mxu0 %v2185
        %2827 = vmatprep.mubr.bf16.mxu0 %v835
        %2828 = vmatmul.mubr.bf16.gmra.mrb[0].mxu0 %v833
        %v2829 = vpop.f32.mrb[0].mxu0
        %v2830 = vadd.f32 %v2789, %v2829
        %v2831 = vpop.f32.mrb[0].mxu0
        %v2832 = vadd.f32 %v2791, %v2831
        %v2833 = vpop.f32.mrb[0].mxu0
        %v2834 = vpop.f32.mrb[0].mxu0
        %2835 = vdwg.mxu0
        %2836 = vmatprep.subr.bf16.mxu0 0
        %2837 = vmatpush1.bf16.msra.mxu0 %v1872
        %2838 = vmatprep.subr.bf16.mxu0 0
        %2839 = vmatpush1.bf16.msra.mxu0 %v1877
        %2840 = vmatprep.subr.bf16.mxu0 0
        %2841 = vmatpush1.bf16.msra.mxu0 %v1882
        %2842 = vmatprep.subr.bf16.mxu0 0
        %2843 = vmatpush1.bf16.msra.mxu0 %v1887
        %2844 = vmatprep.subr.bf16.mxu0 0
        %2845 = vmatpush1.bf16.msra.mxu0 %v1892
        %2846 = vmatprep.subr.bf16.mxu0 0
        %2847 = vmatpush1.bf16.msra.mxu0 %v1897
        %2848 = vmatprep.subr.bf16.mxu0 0
        %2849 = vmatpush1.bf16.msra.mxu0 %v1902
        %2850 = vmatprep.subr.bf16.mxu0 0
        %2851 = vmatpush1.bf16.msra.mxu0 %v1907
        %2852 = vmatprep.subr.bf16.mxu0 0
        %2853 = vmatpush1.bf16.msra.mxu0 %v1912
        %2854 = vmatprep.subr.bf16.mxu0 0
        %2855 = vmatpush1.bf16.msra.mxu0 %v1917
        %2856 = vmatprep.subr.bf16.mxu0 0
        %2857 = vmatpush1.bf16.msra.mxu0 %v1922
        %2858 = vmatprep.subr.bf16.mxu0 0
        %2859 = vmatpush1.bf16.msra.mxu0 %v1927
        %2860 = vmatprep.subr.bf16.mxu0 0
        %2861 = vmatpush1.bf16.msra.mxu0 %v1932
        %2862 = vmatprep.subr.bf16.mxu0 0
        %2863 = vmatpush1.bf16.msra.mxu0 %v1937
        %2864 = vmatprep.subr.bf16.mxu0 0
        %2865 = vmatpush1.bf16.msra.mxu0 %v1942
        %2866 = vmatprep.subr.bf16.mxu0 0
        %2867 = vmatpush1.bf16.msra.mxu0 %v1947
        %2868 = vmatprep.mubr.bf16.mxu0 %v824
        %2869 = vmatmul.mubr.bf16.gmra.mrb[0].mxu0 %v810
        %v2870 = vpop.f32.mrb[0].mxu0
        %v2871 = vadd.f32 %v780, %v2870
        %v2872 = vpop.f32.mrb[0].mxu0
        %v2873 = vpop.f32.mrb[0].mxu0
        %v2874 = vpop.f32.mrb[0].mxu0
        %2875 = vdwg.mxu0
        %2876 = vmatprep.subr.bf16.mxu0 0
        %2877 = vmatpush1.bf16.msra.mxu0 %v1952
        %2878 = vmatprep.subr.bf16.mxu0 0
        %2879 = vmatpush1.bf16.msra.mxu0 %v1957
        %2880 = vmatprep.subr.bf16.mxu0 0
        %2881 = vmatpush1.bf16.msra.mxu0 %v1962
        %2882 = vmatprep.subr.bf16.mxu0 0
        %2883 = vmatpush1.bf16.msra.mxu0 %v1967
        %2884 = vmatprep.subr.bf16.mxu0 0
        %2885 = vmatpush1.bf16.msra.mxu0 %v1972
        %2886 = vmatprep.subr.bf16.mxu0 0
        %2887 = vmatpush1.bf16.msra.mxu0 %v1977
        %2888 = vmatprep.subr.bf16.mxu0 0
        %2889 = vmatpush1.bf16.msra.mxu0 %v1982
        %2890 = vmatprep.subr.bf16.mxu0 0
        %2891 = vmatpush1.bf16.msra.mxu0 %v1987
        %2892 = vmatprep.subr.bf16.mxu0 0
        %2893 = vmatpush1.bf16.msra.mxu0 %v1992
        %2894 = vmatprep.subr.bf16.mxu0 0
        %2895 = vmatpush1.bf16.msra.mxu0 %v1997
        %2896 = vmatprep.subr.bf16.mxu0 0
        %2897 = vmatpush1.bf16.msra.mxu0 %v2002
        %2898 = vmatprep.subr.bf16.mxu0 0
        %2899 = vmatpush1.bf16.msra.mxu0 %v2007
        %2900 = vmatprep.subr.bf16.mxu0 0
        %2901 = vmatpush1.bf16.msra.mxu0 %v2012
        %2902 = vmatprep.subr.bf16.mxu0 0
        %2903 = vmatpush1.bf16.msra.mxu0 %v2017
        %2904 = vmatprep.subr.bf16.mxu0 0
        %2905 = vmatpush1.bf16.msra.mxu0 %v2022
        %2906 = vmatprep.subr.bf16.mxu0 0
        %2907 = vmatpush1.bf16.msra.mxu0 %v2027
        %2908 = vmatprep.mubr.bf16.mxu0 %v834
        %2909 = vmatmul.mubr.bf16.gmra.mrb[0].mxu0 %v832
        %v2910 = vpop.f32.mrb[0].mxu0
        %v2911 = vadd.f32 %v2871, %v2910
        %v2912 = vpop.f32.mrb[0].mxu0
        %v2913 = vpop.f32.mrb[0].mxu0
        %v2914 = vpop.f32.mrb[0].mxu0
        %2915 = vdwg.mxu0
        %2916 = vmatprep.subr.bf16.mxu0 0
        %2917 = vmatpush1.bf16.msra.mxu0 %v2032
        %2918 = vmatprep.subr.bf16.mxu0 0
        %2919 = vmatpush1.bf16.msra.mxu0 %v2037
        %2920 = vmatprep.subr.bf16.mxu0 0
        %2921 = vmatpush1.bf16.msra.mxu0 %v2042
        %2922 = vmatprep.subr.bf16.mxu0 0
        %2923 = vmatpush1.bf16.msra.mxu0 %v2047
        %2924 = vmatprep.subr.bf16.mxu0 0
        %2925 = vmatpush1.bf16.msra.mxu0 %v2052
        %2926 = vmatprep.subr.bf16.mxu0 0
        %2927 = vmatpush1.bf16.msra.mxu0 %v2057
        %2928 = vmatprep.subr.bf16.mxu0 0
        %2929 = vmatpush1.bf16.msra.mxu0 %v2062
        %2930 = vmatprep.subr.bf16.mxu0 0
        %2931 = vmatpush1.bf16.msra.mxu0 %v2067
        %2932 = vmatprep.subr.bf16.mxu0 0
        %2933 = vmatpush1.bf16.msra.mxu0 %v2072
        %2934 = vmatprep.subr.bf16.mxu0 0
        %2935 = vmatpush1.bf16.msra.mxu0 %v2077
        %2936 = vmatprep.subr.bf16.mxu0 0
        %2937 = vmatpush1.bf16.msra.mxu0 %v2082
        %2938 = vmatprep.subr.bf16.mxu0 0
        %2939 = vmatpush1.bf16.msra.mxu0 %v2087
        %2940 = vmatprep.subr.bf16.mxu0 0
        %2941 = vmatpush1.bf16.msra.mxu0 %v2092
        %2942 = vmatprep.subr.bf16.mxu0 0
        %2943 = vmatpush1.bf16.msra.mxu0 %v2097
        %2944 = vmatprep.subr.bf16.mxu0 0
        %2945 = vmatpush1.bf16.msra.mxu0 %v2102
        %2946 = vmatprep.subr.bf16.mxu0 0
        %2947 = vmatpush1.bf16.msra.mxu0 %v2107
        %2948 = vmatprep.mubr.bf16.mxu0 %v831
        %2949 = vmatmul.mubr.bf16.gmra.mrb[0].mxu0 %v817
        %v2950 = vpop.f32.mrb[0].mxu0
        %v2951 = vadd.f32 %v2911, %v2950
        %v2952 = vpop.f32.mrb[0].mxu0
        %v2953 = vpop.f32.mrb[0].mxu0
        %v2954 = vpop.f32.mrb[0].mxu0
        %2955 = vdwg.mxu0
        %2956 = vmatprep.subr.bf16.mxu0 0
        %2957 = vmatpush1.bf16.msra.mxu0 %v2112
        %2958 = vmatprep.subr.bf16.mxu0 0
        %2959 = vmatpush1.bf16.msra.mxu0 %v2117
        %2960 = vmatprep.subr.bf16.mxu0 0
        %2961 = vmatpush1.bf16.msra.mxu0 %v2122
        %2962 = vmatprep.subr.bf16.mxu0 0
        %2963 = vmatpush1.bf16.msra.mxu0 %v2127
        %2964 = vmatprep.subr.bf16.mxu0 0
        %2965 = vmatpush1.bf16.msra.mxu0 %v2132
        %2966 = vmatprep.subr.bf16.mxu0 0
        %2967 = vmatpush1.bf16.msra.mxu0 %v2137
        %2968 = vmatprep.subr.bf16.mxu0 0
        %2969 = vmatpush1.bf16.msra.mxu0 %v2142
        %2970 = vmatprep.subr.bf16.mxu0 0
        %2971 = vmatpush1.bf16.msra.mxu0 %v2147
        %2972 = vmatprep.subr.bf16.mxu0 0
        %2973 = vmatpush1.bf16.msra.mxu0 %v2152
        %2974 = vmatprep.subr.bf16.mxu0 0
        %2975 = vmatpush1.bf16.msra.mxu0 %v2157
        %2976 = vmatprep.subr.bf16.mxu0 0
        %2977 = vmatpush1.bf16.msra.mxu0 %v2162
        %2978 = vmatprep.subr.bf16.mxu0 0
        %2979 = vmatpush1.bf16.msra.mxu0 %v2167
        %2980 = vmatprep.subr.bf16.mxu0 0
        %2981 = vmatpush1.bf16.msra.mxu0 %v2172
        %2982 = vmatprep.subr.bf16.mxu0 0
        %2983 = vmatpush1.bf16.msra.mxu0 %v2177
        %2984 = vmatprep.subr.bf16.mxu0 0
        %2985 = vmatpush1.bf16.msra.mxu0 %v2182
        %2986 = vmatprep.subr.bf16.mxu0 0
        %2987 = vmatpush1.bf16.msra.mxu0 %v2187
        %2988 = vmatprep.mubr.bf16.mxu0 %v835
        %2989 = vmatmul.mubr.bf16.gmra.mrb[0].mxu0 %v833
        %v2990 = vpop.f32.mrb[0].mxu0
        %v2991 = vadd.f32 %v2951, %v2990
        %v2992 = vpop.f32.mrb[0].mxu0
        %v2993 = vpop.f32.mrb[0].mxu0
        %v2994 = vpop.f32.mrb[0].mxu0
        %2995 = vdwg.mxu0
        %v2996 = vmax.f32 %v2666, 0.0
        %v2997 = vmax.f32 %v2668, 0.0
        %v2998 = vmax.f32 %v2830, 0.0
        %v2999 = vmax.f32 %v2832, 0.0
        %v3000 = vmax.f32 %v2991, 0.0
        %vm3001 = vcmask 1041408
        %v3002 = vsel %vm3001, %v2996, 0.0
        %v3003 = vrot.slane %v3002, 4
        %v3004 = vadd.f32 %v3002, %v3003
        %v3005 = vrot.slane %v3004, 2
        %v3006 = vadd.f32 %v3004, %v3005
        %v3007 = vrot.slane %v3006, 1
        %v3008 = vadd.f32 %v3006, %v3007
        %v3009 = vsel %vm3001, %v2997, 0.0
        %v3010 = vrot.slane %v3009, 4
        %v3011 = vadd.f32 %v3009, %v3010
        %v3012 = vrot.slane %v3011, 2
        %v3013 = vadd.f32 %v3011, %v3012
        %v3014 = vrot.slane %v3013, 1
        %v3015 = vadd.f32 %v3013, %v3014
        %v3016 = vsel %vm3001, %v2998, 0.0
        %v3017 = vrot.slane %v3016, 4
        %v3018 = vadd.f32 %v3016, %v3017
        %v3019 = vrot.slane %v3018, 2
        %v3020 = vadd.f32 %v3018, %v3019
        %v3021 = vrot.slane %v3020, 1
        %v3022 = vadd.f32 %v3020, %v3021
        %v3023 = vsel %vm3001, %v2999, 0.0
        %v3024 = vrot.slane %v3023, 4
        %v3025 = vadd.f32 %v3023, %v3024
        %v3026 = vrot.slane %v3025, 2
        %v3027 = vadd.f32 %v3025, %v3026
        %v3028 = vrot.slane %v3027, 1
        %v3029 = vadd.f32 %v3027, %v3028
        %v3030 = vsel %vm3001, %v3000, 0.0
        %v3031 = vrot.slane %v3030, 4
        %v3032 = vadd.f32 %v3030, %v3031
        %v3033 = vrot.slane %v3032, 2
        %v3034 = vadd.f32 %v3032, %v3033
        %v3035 = vrot.slane %v3034, 1
        %v3036 = vadd.f32 %v3034, %v3035
        %v3037 = vmul.f32 %v2996, %v2996
        %v3038 = vmul.f32 %v2997, %v2997
        %v3039 = vmul.f32 %v2998, %v2998
        %v3040 = vmul.f32 %v2999, %v2999
        %v3041 = vmul.f32 %v3000, %v3000
        %v3042 = vsel %vm3001, %v3037, 0.0
        %v3043 = vrot.slane %v3042, 4
        %v3044 = vadd.f32 %v3042, %v3043
        %v3045 = vrot.slane %v3044, 2
        %v3046 = vadd.f32 %v3044, %v3045
        %v3047 = vrot.slane %v3046, 1
        %v3048 = vadd.f32 %v3046, %v3047
        %v3049 = vsel %vm3001, %v3038, 0.0
        %v3050 = vrot.slane %v3049, 4
        %v3051 = vadd.f32 %v3049, %v3050
        %v3052 = vrot.slane %v3051, 2
        %v3053 = vadd.f32 %v3051, %v3052
        %v3054 = vrot.slane %v3053, 1
        %v3055 = vadd.f32 %v3053, %v3054
        %v3056 = vsel %vm3001, %v3039, 0.0
        %v3057 = vrot.slane %v3056, 4
        %v3058 = vadd.f32 %v3056, %v3057
        %v3059 = vrot.slane %v3058, 2
        %v3060 = vadd.f32 %v3058, %v3059
        %v3061 = vrot.slane %v3060, 1
        %v3062 = vadd.f32 %v3060, %v3061
        %v3063 = vsel %vm3001, %v3040, 0.0
        %v3064 = vrot.slane %v3063, 4
        %v3065 = vadd.f32 %v3063, %v3064
        %v3066 = vrot.slane %v3065, 2
        %v3067 = vadd.f32 %v3065, %v3066
        %v3068 = vrot.slane %v3067, 1
        %v3069 = vadd.f32 %v3067, %v3068
        %v3070 = vsel %vm3001, %v3041, 0.0
        %v3071 = vrot.slane %v3070, 4
        %v3072 = vadd.f32 %v3070, %v3071
        %v3073 = vrot.slane %v3072, 2
        %v3074 = vadd.f32 %v3072, %v3073
        %v3075 = vrot.slane %v3074, 1
        %v3076 = vadd.f32 %v3074, %v3075
        %v3077 = vrcp.pop 2.0
        %v3078 = vmul.f32 %v3008, %v3077
        %v3079 = vmul.f32 %v3015, %v3077
        %v3080 = vmul.f32 %v3022, %v3077
        %v3081 = vmul.f32 %v3029, %v3077
        %v3082 = vmul.f32 %v3036, %v3077
        %v3083 = vmul.f32 %v3048, %v3077
        %v3084 = vmul.f32 %v3055, %v3077
        %v3085 = vmul.f32 %v3062, %v3077
        %v3086 = vmul.f32 %v3069, %v3077
        %v3087 = vmul.f32 %v3076, %v3077
        %v3088 = vmul.f32 %v3078, %v3078
        %v3089 = vmul.f32 %v3079, %v3079
        %v3090 = vmul.f32 %v3080, %v3080
        %v3091 = vmul.f32 %v3081, %v3081
        %v3092 = vmul.f32 %v3082, %v3082
        %v3093 = vsub.f32 %v3083, %v3088
        %v3094 = vsub.f32 %v3084, %v3089
        %v3095 = vsub.f32 %v3085, %v3090
        %v3096 = vsub.f32 %v3086, %v3091
        %v3097 = vsub.f32 %v3087, %v3092
        %v3098 = vmax.f32 %v3093, 0.0
        %v3099 = vmax.f32 %v3094, 0.0
        %v3100 = vmax.f32 %v3095, 0.0
        %v3101 = vmax.f32 %v3096, 0.0
        %v3102 = vmax.f32 %v3097, 0.0
        %v3103 = vld [vmem:[%s349] sm:$0x1f]
        %v3104 = vsub.f32 %v2996, %v3078
        %v3105 = vsub.f32 %v2997, %v3079
        %v3106 = vsub.f32 %v2998, %v3080
        %v3107 = vsub.f32 %v2999, %v3081
        %v3108 = vsub.f32 %v3000, %v3082
        %v3110 = vlaneseq
        %v3111 = vshrl.u32 %v3110, 7
        %v3112 = vsub.s32 0, %v3111
        %v3113 = vrot.slane %v3103, %v3112
        %v3114 = vlaneseq
        %v3115 = vshrl.u32 %v3114, 7
        %v3116 = vsub.s32 1, %v3115
        %v3117 = vrot.slane %v3103, %v3116
        %v3118 = vlaneseq
        %v3119 = vshrl.u32 %v3118, 7
        %v3120 = vsub.s32 2, %v3119
        %v3121 = vrot.slane %v3103, %v3120
        %v3122 = vlaneseq
        %v3123 = vshrl.u32 %v3122, 7
        %v3124 = vsub.s32 3, %v3123
        %v3125 = vrot.slane %v3103, %v3124
        %v3126 = vlaneseq
        %v3127 = vshrl.u32 %v3126, 7
        %v3128 = vsub.s32 4, %v3127
        %v3129 = vrot.slane %v3103, %v3128
        %v3135 = vmul.f32 %v3113, %v3104
        %v3136 = vmul.f32 %v3117, %v3105
        %v3137 = vmul.f32 %v3121, %v3106
        %v3138 = vmul.f32 %v3125, %v3107
        %v3139 = vmul.f32 %v3129, %v3108
        %v3140 = vadd.f32 %v3098, 1e-05
        %v3141 = vadd.f32 %v3099, 1e-05
        %v3142 = vadd.f32 %v3100, 1e-05
        %v3143 = vadd.f32 %v3101, 1e-05
        %v3144 = vadd.f32 %v3102, 1e-05
        %v3145 = vrsqrt.pop %v3140
        %v3146 = vrsqrt.pop %v3141
        %v3147 = vrsqrt.pop %v3142
        %v3148 = vrsqrt.pop %v3143
        %v3149 = vrsqrt.pop %v3144
        %v3150 = vmul.f32 %v3135, %v3145
        %v3151 = vmul.f32 %v3136, %v3146
        %v3152 = vmul.f32 %v3137, %v3147
        %v3153 = vmul.f32 %v3138, %v3148
        %v3154 = vmul.f32 %v3139, %v3149
        %v3155 = vld [vmem:[%s362] sm:$0x1f]
        %v3157 = vlaneseq
        %v3158 = vshrl.u32 %v3157, 7
        %v3159 = vsub.s32 0, %v3158
        %v3160 = vrot.slane %v3155, %v3159
        %v3161 = vlaneseq
        %v3162 = vshrl.u32 %v3161, 7
        %v3163 = vsub.s32 1, %v3162
        %v3164 = vrot.slane %v3155, %v3163
        %v3165 = vlaneseq
        %v3166 = vshrl.u32 %v3165, 7
        %v3167 = vsub.s32 2, %v3166
        %v3168 = vrot.slane %v3155, %v3167
        %v3169 = vlaneseq
        %v3170 = vshrl.u32 %v3169, 7
        %v3171 = vsub.s32 3, %v3170
        %v3172 = vrot.slane %v3155, %v3171
        %v3173 = vlaneseq
        %v3174 = vshrl.u32 %v3173, 7
        %v3175 = vsub.s32 4, %v3174
        %v3176 = vrot.slane %v3155, %v3175
        %v3182 = vadd.f32 %v3150, %v3160
        %v3183 = vadd.f32 %v3151, %v3164
        %v3184 = vadd.f32 %v3152, %v3168
        %v3185 = vadd.f32 %v3153, %v3172
        %v3186 = vadd.f32 %v3154, %v3176
        %v3187 = vpack.c.bf16 %v3182, %v3182
        %v3188 = vpack.c.bf16 %v3183, %v3183
        %v3189 = vpack.c.bf16 %v3184, %v3184
        %v3190 = vpack.c.bf16 %v3185, %v3185
        %v3191 = vpack.c.bf16 %v3186, %v3186
        %v3197 = vcombine.low %v3187, %v3188
        %v3198 = vcombine.low %v3189, %v3190
        %v3200 = vunpack.c.l.s4 1966171168
        %v3201 = vunpack.c.0.s8 %v3200
        %v3202 = vlaneseq
        %v3203 = vshrl.u32 %v3202, 7
        %v3204 = vsub.s32 %v3201, %v3203
        %v3205 = vrot.slane %v3197, %v3204
        %v3207 = vunpack.c.l.s4 1966171168
        %v3208 = vunpack.c.0.s8 %v3207
        %v3209 = vlaneseq
        %v3210 = vshrl.u32 %v3209, 7
        %v3211 = vsub.s32 %v3208, %v3210
        %v3212 = vrot.slane %v3198, %v3211
        %v3214 = vunpack.c.l.s4 1966171168
        %v3215 = vunpack.c.0.s8 %v3214
        %v3216 = vlaneseq
        %v3217 = vshrl.u32 %v3216, 7
        %v3218 = vsub.s32 %v3215, %v3217
        %v3219 = vrot.slane %v3191, %v3218
        %v3220 = vcombine.low %v3205, %v3212
        %v3222 = vunpack.c.l.s4 1966171168
        %v3223 = vunpack.c.0.s8 %v3222
        %v3224 = vlaneseq
        %v3225 = vshrl.u32 %v3224, 7
        %v3226 = vsub.s32 %v3223, %v3225
        %v3227 = vrot.slane %v3220, %v3226
        %v3229 = vunpack.c.l.s4 1966171168
        %v3230 = vunpack.c.0.s8 %v3229
        %v3231 = vlaneseq
        %v3232 = vshrl.u32 %v3231, 7
        %v3233 = vsub.s32 %v3230, %v3232
        %v3234 = vrot.slane %v3219, %v3233
        %v3235 = vcombine.low %v3227, %v3234
        %3237 = vst [vmem:[%s323] sm:$0x1f] %v3235
        %s3238 = sand.u32 %s152, 1
        %s3239 = sand.u32 %s152, 1
        %s3240 = smul.addr %s3239, 5
        %s3241 = scalar_lea.vmem [#allocation4], %s3240
        // Predicated region
        $region45: #{generator_forward.5} parent=39 // pred_check
          %p3242 = pneg %p162
        $region46: #{generator_forward.5} parent=39 // pred_check_branch
          %3244 = sbr.rel (%p3242) target = $region48
        $region47: #{generator_forward.5} parent=39 // pred_region
          %s3245 = smul.u32 5, %s19
          %s3246 = ssub.s32 49, %s3245
          %p3247 = scmp.lt.s32.totalorder %s3246, 5
          %s3248 = scalar_select %p3247, %s3246, 5
          %s3249 = smul.u32 16, %s3248
          %p3250 = scmp.ne.s32.totalorder 0, %s3249
          %s3251 = scalar_lea.vmem %s5, %s3245
          // Predicated region
          $region49: #{generator_forward.5} parent=47 // pred_check
            %p3252 = pneg %p3250
          $region50: #{generator_forward.5} parent=47 // pred_check_branch
            %3254 = sbr.rel (%p3252) target = $region52
          $region51: #{generator_forward.5} parent=47 // pred_region
            %p3255 = scmp.lt.u32.totalorder %s3248, 8
            %p3256 = pneg %p3255
            // Predicated region
            $region53: #{generator_forward.5} parent=51 // pred_check
              _
            $region54: #{generator_forward.5} parent=51 // pred_check_branch
              %3258 = sbr.rel (%p3255) target = $region56
            $region55: #{generator_forward.5} parent=51 // pred_region
              %s3273 = sand.u32 %s3248, 7
              %p3274 = scmp.eq.s32.totalorder %s3273, 0
              // Predicated region
              $region68: #{generator_forward.5} parent=55 // pred_check
                %p3275 = pneg %p3274
              $region69: #{generator_forward.5} parent=55 // pred_check_branch
                %3277 = sbr.rel (%p3275) target = $region71
              $region70: #{generator_forward.5} parent=55 // pred_region
                %s3278 = sshrl.u32 %s3248, 3
                %s3279 = sshrl.u32 %s3278, 6
                // While loop
                $region72: #{generator_forward.5} parent=70 // loop_pre_header
                  _
                $region73: #{generator_forward.5} parent=70 // loop_header
                  %s3283 = sphi 0, %s3285
                  %p3284 = scmp.ge.s32.totalorder %s3283, %s3279
                  %s3288 = sphi 0, %s3421
                  %s3289 = sphi %s3241, %s3424
                  %s3290 = sphi %s3251, %s3425
                $region74: #{generator_forward.5} parent=70 // loop_header_branch
                  %3287 = sbr.rel (%p3284) target = $region78
                $region75: #{generator_forward.5} parent=70 // loop_body
                  %v3291 = vld [vmem:[%s3289] sm:$0xff]
                  %3292 = vst [vmem:[%s3290] sm:$0xff] %v3291
                  %v3293 = vld [vmem:[%s3289 + $0x8] sm:$0xff]
                  %3294 = vst [vmem:[%s3290 + $0x8] sm:$0xff] %v3293
                  %v3295 = vld [vmem:[%s3289 + $0x10] sm:$0xff]
                  %3296 = vst [vmem:[%s3290 + $0x10] sm:$0xff] %v3295
                  %v3297 = vld [vmem:[%s3289 + $0x18] sm:$0xff]
                  %3298 = vst [vmem:[%s3290 + $0x18] sm:$0xff] %v3297
                  %v3299 = vld [vmem:[%s3289 + $0x20] sm:$0xff]
                  %3300 = vst [vmem:[%s3290 + $0x20] sm:$0xff] %v3299
                  %v3301 = vld [vmem:[%s3289 + $0x28] sm:$0xff]
                  %3302 = vst [vmem:[%s3290 + $0x28] sm:$0xff] %v3301
                  %v3303 = vld [vmem:[%s3289 + $0x30] sm:$0xff]
                  %3304 = vst [vmem:[%s3290 + $0x30] sm:$0xff] %v3303
                  %v3305 = vld [vmem:[%s3289 + $0x38] sm:$0xff]
                  %3306 = vst [vmem:[%s3290 + $0x38] sm:$0xff] %v3305
                  %v3307 = vld [vmem:[%s3289 + $0x40] sm:$0xff]
                  %3308 = vst [vmem:[%s3290 + $0x40] sm:$0xff] %v3307
                  %v3309 = vld [vmem:[%s3289 + $0x48] sm:$0xff]
                  %3310 = vst [vmem:[%s3290 + $0x48] sm:$0xff] %v3309
                  %v3311 = vld [vmem:[%s3289 + $0x50] sm:$0xff]
                  %3312 = vst [vmem:[%s3290 + $0x50] sm:$0xff] %v3311
                  %v3313 = vld [vmem:[%s3289 + $0x58] sm:$0xff]
                  %3314 = vst [vmem:[%s3290 + $0x58] sm:$0xff] %v3313
                  %v3315 = vld [vmem:[%s3289 + $0x60] sm:$0xff]
                  %3316 = vst [vmem:[%s3290 + $0x60] sm:$0xff] %v3315
                  %v3317 = vld [vmem:[%s3289 + $0x68] sm:$0xff]
                  %3318 = vst [vmem:[%s3290 + $0x68] sm:$0xff] %v3317
                  %v3319 = vld [vmem:[%s3289 + $0x70] sm:$0xff]
                  %3320 = vst [vmem:[%s3290 + $0x70] sm:$0xff] %v3319
                  %v3321 = vld [vmem:[%s3289 + $0x78] sm:$0xff]
                  %3322 = vst [vmem:[%s3290 + $0x78] sm:$0xff] %v3321
                  %v3323 = vld [vmem:[%s3289 + $0x80] sm:$0xff]
                  %3324 = vst [vmem:[%s3290 + $0x80] sm:$0xff] %v3323
                  %v3325 = vld [vmem:[%s3289 + $0x88] sm:$0xff]
                  %3326 = vst [vmem:[%s3290 + $0x88] sm:$0xff] %v3325
                  %v3327 = vld [vmem:[%s3289 + $0x90] sm:$0xff]
                  %3328 = vst [vmem:[%s3290 + $0x90] sm:$0xff] %v3327
                  %v3329 = vld [vmem:[%s3289 + $0x98] sm:$0xff]
                  %3330 = vst [vmem:[%s3290 + $0x98] sm:$0xff] %v3329
                  %v3331 = vld [vmem:[%s3289 + $0xa0] sm:$0xff]
                  %3332 = vst [vmem:[%s3290 + $0xa0] sm:$0xff] %v3331
                  %v3333 = vld [vmem:[%s3289 + $0xa8] sm:$0xff]
                  %3334 = vst [vmem:[%s3290 + $0xa8] sm:$0xff] %v3333
                  %v3335 = vld [vmem:[%s3289 + $0xb0] sm:$0xff]
                  %3336 = vst [vmem:[%s3290 + $0xb0] sm:$0xff] %v3335
                  %v3337 = vld [vmem:[%s3289 + $0xb8] sm:$0xff]
                  %3338 = vst [vmem:[%s3290 + $0xb8] sm:$0xff] %v3337
                  %v3339 = vld [vmem:[%s3289 + $0xc0] sm:$0xff]
                  %3340 = vst [vmem:[%s3290 + $0xc0] sm:$0xff] %v3339
                  %v3341 = vld [vmem:[%s3289 + $0xc8] sm:$0xff]
                  %3342 = vst [vmem:[%s3290 + $0xc8] sm:$0xff] %v3341
                  %v3343 = vld [vmem:[%s3289 + $0xd0] sm:$0xff]
                  %3344 = vst [vmem:[%s3290 + $0xd0] sm:$0xff] %v3343
                  %v3345 = vld [vmem:[%s3289 + $0xd8] sm:$0xff]
                  %3346 = vst [vmem:[%s3290 + $0xd8] sm:$0xff] %v3345
                  %v3347 = vld [vmem:[%s3289 + $0xe0] sm:$0xff]
                  %3348 = vst [vmem:[%s3290 + $0xe0] sm:$0xff] %v3347
                  %v3349 = vld [vmem:[%s3289 + $0xe8] sm:$0xff]
                  %3350 = vst [vmem:[%s3290 + $0xe8] sm:$0xff] %v3349
                  %v3351 = vld [vmem:[%s3289 + $0xf0] sm:$0xff]
                  %3352 = vst [vmem:[%s3290 + $0xf0] sm:$0xff] %v3351
                  %v3353 = vld [vmem:[%s3289 + $0xf8] sm:$0xff]
                  %3354 = vst [vmem:[%s3290 + $0xf8] sm:$0xff] %v3353
                  %v3355 = vld [vmem:[%s3289 + $0x100] sm:$0xff]
                  %3356 = vst [vmem:[%s3290 + $0x100] sm:$0xff] %v3355
                  %v3357 = vld [vmem:[%s3289 + $0x108] sm:$0xff]
                  %3358 = vst [vmem:[%s3290 + $0x108] sm:$0xff] %v3357
                  %v3359 = vld [vmem:[%s3289 + $0x110] sm:$0xff]
                  %3360 = vst [vmem:[%s3290 + $0x110] sm:$0xff] %v3359
                  %v3361 = vld [vmem:[%s3289 + $0x118] sm:$0xff]
                  %3362 = vst [vmem:[%s3290 + $0x118] sm:$0xff] %v3361
                  %v3363 = vld [vmem:[%s3289 + $0x120] sm:$0xff]
                  %3364 = vst [vmem:[%s3290 + $0x120] sm:$0xff] %v3363
                  %v3365 = vld [vmem:[%s3289 + $0x128] sm:$0xff]
                  %3366 = vst [vmem:[%s3290 + $0x128] sm:$0xff] %v3365
                  %v3367 = vld [vmem:[%s3289 + $0x130] sm:$0xff]
                  %3368 = vst [vmem:[%s3290 + $0x130] sm:$0xff] %v3367
                  %v3369 = vld [vmem:[%s3289 + $0x138] sm:$0xff]
                  %3370 = vst [vmem:[%s3290 + $0x138] sm:$0xff] %v3369
                  %v3371 = vld [vmem:[%s3289 + $0x140] sm:$0xff]
                  %3372 = vst [vmem:[%s3290 + $0x140] sm:$0xff] %v3371
                  %v3373 = vld [vmem:[%s3289 + $0x148] sm:$0xff]
                  %3374 = vst [vmem:[%s3290 + $0x148] sm:$0xff] %v3373
                  %v3375 = vld [vmem:[%s3289 + $0x150] sm:$0xff]
                  %3376 = vst [vmem:[%s3290 + $0x150] sm:$0xff] %v3375
                  %v3377 = vld [vmem:[%s3289 + $0x158] sm:$0xff]
                  %3378 = vst [vmem:[%s3290 + $0x158] sm:$0xff] %v3377
                  %v3379 = vld [vmem:[%s3289 + $0x160] sm:$0xff]
                  %3380 = vst [vmem:[%s3290 + $0x160] sm:$0xff] %v3379
                  %v3381 = vld [vmem:[%s3289 + $0x168] sm:$0xff]
                  %3382 = vst [vmem:[%s3290 + $0x168] sm:$0xff] %v3381
                  %v3383 = vld [vmem:[%s3289 + $0x170] sm:$0xff]
                  %3384 = vst [vmem:[%s3290 + $0x170] sm:$0xff] %v3383
                  %v3385 = vld [vmem:[%s3289 + $0x178] sm:$0xff]
                  %3386 = vst [vmem:[%s3290 + $0x178] sm:$0xff] %v3385
                  %v3387 = vld [vmem:[%s3289 + $0x180] sm:$0xff]
                  %3388 = vst [vmem:[%s3290 + $0x180] sm:$0xff] %v3387
                  %v3389 = vld [vmem:[%s3289 + $0x188] sm:$0xff]
                  %3390 = vst [vmem:[%s3290 + $0x188] sm:$0xff] %v3389
                  %v3391 = vld [vmem:[%s3289 + $0x190] sm:$0xff]
                  %3392 = vst [vmem:[%s3290 + $0x190] sm:$0xff] %v3391
                  %v3393 = vld [vmem:[%s3289 + $0x198] sm:$0xff]
                  %3394 = vst [vmem:[%s3290 + $0x198] sm:$0xff] %v3393
                  %v3395 = vld [vmem:[%s3289 + $0x1a0] sm:$0xff]
                  %3396 = vst [vmem:[%s3290 + $0x1a0] sm:$0xff] %v3395
                  %v3397 = vld [vmem:[%s3289 + $0x1a8] sm:$0xff]
                  %3398 = vst [vmem:[%s3290 + $0x1a8] sm:$0xff] %v3397
                  %v3399 = vld [vmem:[%s3289 + $0x1b0] sm:$0xff]
                  %3400 = vst [vmem:[%s3290 + $0x1b0] sm:$0xff] %v3399
                  %v3401 = vld [vmem:[%s3289 + $0x1b8] sm:$0xff]
                  %3402 = vst [vmem:[%s3290 + $0x1b8] sm:$0xff] %v3401
                  %v3403 = vld [vmem:[%s3289 + $0x1c0] sm:$0xff]
                  %3404 = vst [vmem:[%s3290 + $0x1c0] sm:$0xff] %v3403
                  %v3405 = vld [vmem:[%s3289 + $0x1c8] sm:$0xff]
                  %3406 = vst [vmem:[%s3290 + $0x1c8] sm:$0xff] %v3405
                  %v3407 = vld [vmem:[%s3289 + $0x1d0] sm:$0xff]
                  %3408 = vst [vmem:[%s3290 + $0x1d0] sm:$0xff] %v3407
                  %v3409 = vld [vmem:[%s3289 + $0x1d8] sm:$0xff]
                  %3410 = vst [vmem:[%s3290 + $0x1d8] sm:$0xff] %v3409
                  %v3411 = vld [vmem:[%s3289 + $0x1e0] sm:$0xff]
                  %3412 = vst [vmem:[%s3290 + $0x1e0] sm:$0xff] %v3411
                  %v3413 = vld [vmem:[%s3289 + $0x1e8] sm:$0xff]
                  %3414 = vst [vmem:[%s3290 + $0x1e8] sm:$0xff] %v3413
                  %v3415 = vld [vmem:[%s3289 + $0x1f0] sm:$0xff]
                  %3416 = vst [vmem:[%s3290 + $0x1f0] sm:$0xff] %v3415
                  %v3417 = vld [vmem:[%s3289 + $0x1f8] sm:$0xff]
                  %3418 = vst [vmem:[%s3290 + $0x1f8] sm:$0xff] %v3417
                  %s3419 = sadd.s32 1, %s3288
                  %p3420 = scmp.ge.s32.totalorder %s3419, %s3279
                  %s3421 = scalar_select %p3420, 0, %s3419
                  %s3422 = smul.u32 %s3421, 512
                  %s3423 = smul.u32 %s3421, 512
                  %s3424 = scalar_lea.vmem %s3241, %s3422 [#allocation4]
                  %s3425 = scalar_lea.vmem %s3251, %s3423
                $region76: #{generator_forward.5} parent=70 // loop_footer
                  %s3285 = sadd.s32 %s3283, 1
                $region77: #{generator_forward.5} parent=70 // loop_footer_branch
                  %3282 = sbr.rel target = $region73
                $region78: #{generator_forward.5} parent=70 // loop_exit
                  _
                %s3426 = sshrl.u32 %s3278, 6
                %s3427 = sand.u32 %s3278, 63
                %s3428 = smul.u32 %s3426, 64
                %s3429 = smul.u32 128, %s3428
                %s3430 = sshra.s32 %s3429, 4
                %s3431 = scalar_lea.vmem %s3241, %s3430 [#allocation4]
                %s3432 = smul.u32 128, %s3428
                %s3433 = sshra.s32 %s3432, 4
                %s3434 = scalar_lea.vmem %s3251, %s3433
                // While loop
                $region79: #{generator_forward.5} parent=70 // loop_pre_header
                  _
                $region80: #{generator_forward.5} parent=70 // loop_header
                  %s3438 = sphi 0, %s3440
                  %p3439 = scmp.ge.s32.totalorder %s3438, %s3427
                  %s3443 = sphi 0, %s3450
                  %s3444 = sphi %s3431, %s3453
                  %s3445 = sphi %s3434, %s3454
                $region81: #{generator_forward.5} parent=70 // loop_header_branch
                  %3442 = sbr.rel (%p3439) target = $region85
                $region82: #{generator_forward.5} parent=70 // loop_body
                  %v3446 = vld [vmem:[%s3444] sm:$0xff]
                  %3447 = vst [vmem:[%s3445] sm:$0xff] %v3446
                  %s3448 = sadd.s32 1, %s3443
                  %p3449 = scmp.ge.s32.totalorder %s3448, %s3427
                  %s3450 = scalar_select %p3449, 0, %s3448
                  %s3451 = smul.u32 %s3450, 8
                  %s3452 = smul.u32 %s3450, 8
                  %s3453 = scalar_lea.vmem %s3431, %s3451 [#allocation4]
                  %s3454 = scalar_lea.vmem %s3434, %s3452
                $region83: #{generator_forward.5} parent=70 // loop_footer
                  %s3440 = sadd.s32 %s3438, 1
                $region84: #{generator_forward.5} parent=70 // loop_footer_branch
                  %3437 = sbr.rel target = $region80
                $region85: #{generator_forward.5} parent=70 // loop_exit
                  _
              $region71: #{generator_forward.5} parent=55 // pred_fallthru
                _
              %p3455 = pneg %p3274
              // Predicated region
              $region86: #{generator_forward.5} parent=55 // pred_check
                _
              $region87: #{generator_forward.5} parent=55 // pred_check_branch
                %3457 = sbr.rel (%p3274) target = $region89
              $region88: #{generator_forward.5} parent=55 // pred_region
                %s3458 = sand.u32 %s3248, 7
                %s3459 = ssub.s32 %s3248, %s3458
                %s3460 = scalar_lea.vmem %s3241, %s3459 [#allocation4]
                %s3461 = ssub.s32 %s3248, %s3458
                %s3462 = scalar_lea.vmem %s3251, %s3461
                %s3463 = sshrl.u32 %s3248, 3
                %s3464 = sshrl.u32 %s3463, 6
                // While loop
                $region90: #{generator_forward.5} parent=88 // loop_pre_header
                  _
                $region91: #{generator_forward.5} parent=88 // loop_header
                  %s3468 = sphi 0, %s3470
                  %p3469 = scmp.ge.s32.totalorder %s3468, %s3464
                  %s3473 = sphi 0, %s3606
                  %s3474 = sphi %s3241, %s3609
                  %s3475 = sphi %s3251, %s3610
                $region92: #{generator_forward.5} parent=88 // loop_header_branch
                  %3472 = sbr.rel (%p3469) target = $region96
                $region93: #{generator_forward.5} parent=88 // loop_body
                  %v3476 = vld [vmem:[%s3474] sm:$0xff]
                  %3477 = vst [vmem:[%s3475] sm:$0xff] %v3476
                  %v3478 = vld [vmem:[%s3474 + $0x8] sm:$0xff]
                  %3479 = vst [vmem:[%s3475 + $0x8] sm:$0xff] %v3478
                  %v3480 = vld [vmem:[%s3474 + $0x10] sm:$0xff]
                  %3481 = vst [vmem:[%s3475 + $0x10] sm:$0xff] %v3480
                  %v3482 = vld [vmem:[%s3474 + $0x18] sm:$0xff]
                  %3483 = vst [vmem:[%s3475 + $0x18] sm:$0xff] %v3482
                  %v3484 = vld [vmem:[%s3474 + $0x20] sm:$0xff]
                  %3485 = vst [vmem:[%s3475 + $0x20] sm:$0xff] %v3484
                  %v3486 = vld [vmem:[%s3474 + $0x28] sm:$0xff]
                  %3487 = vst [vmem:[%s3475 + $0x28] sm:$0xff] %v3486
                  %v3488 = vld [vmem:[%s3474 + $0x30] sm:$0xff]
                  %3489 = vst [vmem:[%s3475 + $0x30] sm:$0xff] %v3488
                  %v3490 = vld [vmem:[%s3474 + $0x38] sm:$0xff]
                  %3491 = vst [vmem:[%s3475 + $0x38] sm:$0xff] %v3490
                  %v3492 = vld [vmem:[%s3474 + $0x40] sm:$0xff]
                  %3493 = vst [vmem:[%s3475 + $0x40] sm:$0xff] %v3492
                  %v3494 = vld [vmem:[%s3474 + $0x48] sm:$0xff]
                  %3495 = vst [vmem:[%s3475 + $0x48] sm:$0xff] %v3494
                  %v3496 = vld [vmem:[%s3474 + $0x50] sm:$0xff]
                  %3497 = vst [vmem:[%s3475 + $0x50] sm:$0xff] %v3496
                  %v3498 = vld [vmem:[%s3474 + $0x58] sm:$0xff]
                  %3499 = vst [vmem:[%s3475 + $0x58] sm:$0xff] %v3498
                  %v3500 = vld [vmem:[%s3474 + $0x60] sm:$0xff]
                  %3501 = vst [vmem:[%s3475 + $0x60] sm:$0xff] %v3500
                  %v3502 = vld [vmem:[%s3474 + $0x68] sm:$0xff]
                  %3503 = vst [vmem:[%s3475 + $0x68] sm:$0xff] %v3502
                  %v3504 = vld [vmem:[%s3474 + $0x70] sm:$0xff]
                  %3505 = vst [vmem:[%s3475 + $0x70] sm:$0xff] %v3504
                  %v3506 = vld [vmem:[%s3474 + $0x78] sm:$0xff]
                  %3507 = vst [vmem:[%s3475 + $0x78] sm:$0xff] %v3506
                  %v3508 = vld [vmem:[%s3474 + $0x80] sm:$0xff]
                  %3509 = vst [vmem:[%s3475 + $0x80] sm:$0xff] %v3508
                  %v3510 = vld [vmem:[%s3474 + $0x88] sm:$0xff]
                  %3511 = vst [vmem:[%s3475 + $0x88] sm:$0xff] %v3510
                  %v3512 = vld [vmem:[%s3474 + $0x90] sm:$0xff]
                  %3513 = vst [vmem:[%s3475 + $0x90] sm:$0xff] %v3512
                  %v3514 = vld [vmem:[%s3474 + $0x98] sm:$0xff]
                  %3515 = vst [vmem:[%s3475 + $0x98] sm:$0xff] %v3514
                  %v3516 = vld [vmem:[%s3474 + $0xa0] sm:$0xff]
                  %3517 = vst [vmem:[%s3475 + $0xa0] sm:$0xff] %v3516
                  %v3518 = vld [vmem:[%s3474 + $0xa8] sm:$0xff]
                  %3519 = vst [vmem:[%s3475 + $0xa8] sm:$0xff] %v3518
                  %v3520 = vld [vmem:[%s3474 + $0xb0] sm:$0xff]
                  %3521 = vst [vmem:[%s3475 + $0xb0] sm:$0xff] %v3520
                  %v3522 = vld [vmem:[%s3474 + $0xb8] sm:$0xff]
                  %3523 = vst [vmem:[%s3475 + $0xb8] sm:$0xff] %v3522
                  %v3524 = vld [vmem:[%s3474 + $0xc0] sm:$0xff]
                  %3525 = vst [vmem:[%s3475 + $0xc0] sm:$0xff] %v3524
                  %v3526 = vld [vmem:[%s3474 + $0xc8] sm:$0xff]
                  %3527 = vst [vmem:[%s3475 + $0xc8] sm:$0xff] %v3526
                  %v3528 = vld [vmem:[%s3474 + $0xd0] sm:$0xff]
                  %3529 = vst [vmem:[%s3475 + $0xd0] sm:$0xff] %v3528
                  %v3530 = vld [vmem:[%s3474 + $0xd8] sm:$0xff]
                  %3531 = vst [vmem:[%s3475 + $0xd8] sm:$0xff] %v3530
                  %v3532 = vld [vmem:[%s3474 + $0xe0] sm:$0xff]
                  %3533 = vst [vmem:[%s3475 + $0xe0] sm:$0xff] %v3532
                  %v3534 = vld [vmem:[%s3474 + $0xe8] sm:$0xff]
                  %3535 = vst [vmem:[%s3475 + $0xe8] sm:$0xff] %v3534
                  %v3536 = vld [vmem:[%s3474 + $0xf0] sm:$0xff]
                  %3537 = vst [vmem:[%s3475 + $0xf0] sm:$0xff] %v3536
                  %v3538 = vld [vmem:[%s3474 + $0xf8] sm:$0xff]
                  %3539 = vst [vmem:[%s3475 + $0xf8] sm:$0xff] %v3538
                  %v3540 = vld [vmem:[%s3474 + $0x100] sm:$0xff]
                  %3541 = vst [vmem:[%s3475 + $0x100] sm:$0xff] %v3540
                  %v3542 = vld [vmem:[%s3474 + $0x108] sm:$0xff]
                  %3543 = vst [vmem:[%s3475 + $0x108] sm:$0xff] %v3542
                  %v3544 = vld [vmem:[%s3474 + $0x110] sm:$0xff]
                  %3545 = vst [vmem:[%s3475 + $0x110] sm:$0xff] %v3544
                  %v3546 = vld [vmem:[%s3474 + $0x118] sm:$0xff]
                  %3547 = vst [vmem:[%s3475 + $0x118] sm:$0xff] %v3546
                  %v3548 = vld [vmem:[%s3474 + $0x120] sm:$0xff]
                  %3549 = vst [vmem:[%s3475 + $0x120] sm:$0xff] %v3548
                  %v3550 = vld [vmem:[%s3474 + $0x128] sm:$0xff]
                  %3551 = vst [vmem:[%s3475 + $0x128] sm:$0xff] %v3550
                  %v3552 = vld [vmem:[%s3474 + $0x130] sm:$0xff]
                  %3553 = vst [vmem:[%s3475 + $0x130] sm:$0xff] %v3552
                  %v3554 = vld [vmem:[%s3474 + $0x138] sm:$0xff]
                  %3555 = vst [vmem:[%s3475 + $0x138] sm:$0xff] %v3554
                  %v3556 = vld [vmem:[%s3474 + $0x140] sm:$0xff]
                  %3557 = vst [vmem:[%s3475 + $0x140] sm:$0xff] %v3556
                  %v3558 = vld [vmem:[%s3474 + $0x148] sm:$0xff]
                  %3559 = vst [vmem:[%s3475 + $0x148] sm:$0xff] %v3558
                  %v3560 = vld [vmem:[%s3474 + $0x150] sm:$0xff]
                  %3561 = vst [vmem:[%s3475 + $0x150] sm:$0xff] %v3560
                  %v3562 = vld [vmem:[%s3474 + $0x158] sm:$0xff]
                  %3563 = vst [vmem:[%s3475 + $0x158] sm:$0xff] %v3562
                  %v3564 = vld [vmem:[%s3474 + $0x160] sm:$0xff]
                  %3565 = vst [vmem:[%s3475 + $0x160] sm:$0xff] %v3564
                  %v3566 = vld [vmem:[%s3474 + $0x168] sm:$0xff]
                  %3567 = vst [vmem:[%s3475 + $0x168] sm:$0xff] %v3566
                  %v3568 = vld [vmem:[%s3474 + $0x170] sm:$0xff]
                  %3569 = vst [vmem:[%s3475 + $0x170] sm:$0xff] %v3568
                  %v3570 = vld [vmem:[%s3474 + $0x178] sm:$0xff]
                  %3571 = vst [vmem:[%s3475 + $0x178] sm:$0xff] %v3570
                  %v3572 = vld [vmem:[%s3474 + $0x180] sm:$0xff]
                  %3573 = vst [vmem:[%s3475 + $0x180] sm:$0xff] %v3572
                  %v3574 = vld [vmem:[%s3474 + $0x188] sm:$0xff]
                  %3575 = vst [vmem:[%s3475 + $0x188] sm:$0xff] %v3574
                  %v3576 = vld [vmem:[%s3474 + $0x190] sm:$0xff]
                  %3577 = vst [vmem:[%s3475 + $0x190] sm:$0xff] %v3576
                  %v3578 = vld [vmem:[%s3474 + $0x198] sm:$0xff]
                  %3579 = vst [vmem:[%s3475 + $0x198] sm:$0xff] %v3578
                  %v3580 = vld [vmem:[%s3474 + $0x1a0] sm:$0xff]
                  %3581 = vst [vmem:[%s3475 + $0x1a0] sm:$0xff] %v3580
                  %v3582 = vld [vmem:[%s3474 + $0x1a8] sm:$0xff]
                  %3583 = vst [vmem:[%s3475 + $0x1a8] sm:$0xff] %v3582
                  %v3584 = vld [vmem:[%s3474 + $0x1b0] sm:$0xff]
                  %3585 = vst [vmem:[%s3475 + $0x1b0] sm:$0xff] %v3584
                  %v3586 = vld [vmem:[%s3474 + $0x1b8] sm:$0xff]
                  %3587 = vst [vmem:[%s3475 + $0x1b8] sm:$0xff] %v3586
                  %v3588 = vld [vmem:[%s3474 + $0x1c0] sm:$0xff]
                  %3589 = vst [vmem:[%s3475 + $0x1c0] sm:$0xff] %v3588
                  %v3590 = vld [vmem:[%s3474 + $0x1c8] sm:$0xff]
                  %3591 = vst [vmem:[%s3475 + $0x1c8] sm:$0xff] %v3590
                  %v3592 = vld [vmem:[%s3474 + $0x1d0] sm:$0xff]
                  %3593 = vst [vmem:[%s3475 + $0x1d0] sm:$0xff] %v3592
                  %v3594 = vld [vmem:[%s3474 + $0x1d8] sm:$0xff]
                  %3595 = vst [vmem:[%s3475 + $0x1d8] sm:$0xff] %v3594
                  %v3596 = vld [vmem:[%s3474 + $0x1e0] sm:$0xff]
                  %3597 = vst [vmem:[%s3475 + $0x1e0] sm:$0xff] %v3596
                  %v3598 = vld [vmem:[%s3474 + $0x1e8] sm:$0xff]
                  %3599 = vst [vmem:[%s3475 + $0x1e8] sm:$0xff] %v3598
                  %v3600 = vld [vmem:[%s3474 + $0x1f0] sm:$0xff]
                  %3601 = vst [vmem:[%s3475 + $0x1f0] sm:$0xff] %v3600
                  %v3602 = vld [vmem:[%s3474 + $0x1f8] sm:$0xff]
                  %3603 = vst [vmem:[%s3475 + $0x1f8] sm:$0xff] %v3602
                  %s3604 = sadd.s32 1, %s3473
                  %p3605 = scmp.ge.s32.totalorder %s3604, %s3464
                  %s3606 = scalar_select %p3605, 0, %s3604
                  %s3607 = smul.u32 %s3606, 512
                  %s3608 = smul.u32 %s3606, 512
                  %s3609 = scalar_lea.vmem %s3241, %s3607 [#allocation4]
                  %s3610 = scalar_lea.vmem %s3251, %s3608
                $region94: #{generator_forward.5} parent=88 // loop_footer
                  %s3470 = sadd.s32 %s3468, 1
                $region95: #{generator_forward.5} parent=88 // loop_footer_branch
                  %3467 = sbr.rel target = $region91
                $region96: #{generator_forward.5} parent=88 // loop_exit
                  _
                %s3611 = sshrl.u32 %s3463, 6
                %s3612 = sand.u32 %s3463, 63
                %s3613 = smul.u32 %s3611, 64
                %s3614 = smul.u32 128, %s3613
                %s3615 = sshra.s32 %s3614, 4
                %s3616 = scalar_lea.vmem %s3241, %s3615 [#allocation4]
                %s3617 = smul.u32 128, %s3613
                %s3618 = sshra.s32 %s3617, 4
                %s3619 = scalar_lea.vmem %s3251, %s3618
                // While loop
                $region97: #{generator_forward.5} parent=88 // loop_pre_header
                  _
                $region98: #{generator_forward.5} parent=88 // loop_header
                  %s3623 = sphi 0, %s3625
                  %p3624 = scmp.ge.s32.totalorder %s3623, %s3612
                  %s3628 = sphi 0, %s3635
                  %s3629 = sphi %s3616, %s3638
                  %s3630 = sphi %s3619, %s3639
                $region99: #{generator_forward.5} parent=88 // loop_header_branch
                  %3627 = sbr.rel (%p3624) target = $region103
                $region100: #{generator_forward.5} parent=88 // loop_body
                  %v3631 = vld [vmem:[%s3629] sm:$0xff]
                  %3632 = vst [vmem:[%s3630] sm:$0xff] %v3631
                  %s3633 = sadd.s32 1, %s3628
                  %p3634 = scmp.ge.s32.totalorder %s3633, %s3612
                  %s3635 = scalar_select %p3634, 0, %s3633
                  %s3636 = smul.u32 %s3635, 8
                  %s3637 = smul.u32 %s3635, 8
                  %s3638 = scalar_lea.vmem %s3616, %s3636 [#allocation4]
                  %s3639 = scalar_lea.vmem %s3619, %s3637
                $region101: #{generator_forward.5} parent=88 // loop_footer
                  %s3625 = sadd.s32 %s3623, 1
                $region102: #{generator_forward.5} parent=88 // loop_footer_branch
                  %3622 = sbr.rel target = $region98
                $region103: #{generator_forward.5} parent=88 // loop_exit
                  _
                %s3640 = sshllo.u32 0, %s3458
                loop: start=0, step=1, limit=1
                $region104: #{generator_forward.5} parent=88 // loop_pre_header
                  _
                $region105: #{generator_forward.5} parent=88 // loop_header
                  %s3642 = sphi 0, %s3646
                  %p3643 = scmp.ge.s32.totalorder %s3642, 1
                  %s3647 = sphi %s3460, %s3460
                  %s3648 = sphi %s3462, %s3462
                $region106: #{generator_forward.5} parent=88 // loop_header_branch
                  %3645 = sbr.rel (%p3643) target = $region110
                $region107: #{generator_forward.5} parent=88 // loop_body
                  %v3649 = vld [vmem:[%s3647] sm:%s3640]
                  %3650 = vst [vmem:[%s3648] sm:%s3640] %v3649
                $region108: #{generator_forward.5} parent=88 // loop_footer
                  %s3646 = sadd.s32 1, %s3642
                $region109: #{generator_forward.5} parent=88 // loop_footer_branch
                  %3641 = sbr.rel target = $region105
                $region110: #{generator_forward.5} parent=88 // loop_exit
                  _
              $region89: #{generator_forward.5} parent=55 // pred_fallthru
                _
            $region56: #{generator_forward.5} parent=51 // pred_fallthru
              _
            // Predicated region
            $region57: #{generator_forward.5} parent=51 // pred_check
              %p3259 = pneg %p3255
            $region58: #{generator_forward.5} parent=51 // pred_check_branch
              %3261 = sbr.rel (%p3259) target = $region60
            $region59: #{generator_forward.5} parent=51 // pred_region
              %s3262 = sshllo.u32 0, %s3248
              loop: start=0, step=1, limit=1
              $region61: #{generator_forward.5} parent=59 // loop_pre_header
                _
              $region62: #{generator_forward.5} parent=59 // loop_header
                %s3264 = sphi 0, %s3268
                %p3265 = scmp.ge.s32.totalorder %s3264, 1
                %s3269 = sphi %s3241, %s3241
                %s3270 = sphi %s3251, %s3251
              $region63: #{generator_forward.5} parent=59 // loop_header_branch
                %3267 = sbr.rel (%p3265) target = $region67
              $region64: #{generator_forward.5} parent=59 // loop_body
                %v3271 = vld [vmem:[%s3269] sm:%s3262]
                %3272 = vst [vmem:[%s3270] sm:%s3262] %v3271
              $region65: #{generator_forward.5} parent=59 // loop_footer
                %s3268 = sadd.s32 1, %s3264
              $region66: #{generator_forward.5} parent=59 // loop_footer_branch
                %3263 = sbr.rel target = $region62
              $region67: #{generator_forward.5} parent=59 // loop_exit
                _
            $region60: #{generator_forward.5} parent=51 // pred_fallthru
              _
          $region52: #{generator_forward.5} parent=47 // pred_fallthru
            _
          %3651 = vnop
        $region48: #{generator_forward.5} parent=39 // pred_fallthru
          _
      $region40: #{generator_forward.5} parent=5 // pred_fallthru
        _
      %p3652 = scmp.le.s32.totalorder 2, %s14
      // Predicated region
      $region111: #{generator_forward.5} parent=5 // pred_check
        %p3653 = pneg %p3652
      $region112: #{generator_forward.5} parent=5 // pred_check_branch
        %3655 = sbr.rel (%p3653) target = $region114
      $region113: #{generator_forward.5} parent=5 // pred_region
        %s3656 = ssub.s32 %s14, 2
        // Predicated region
        $region115: #{generator_forward.5} parent=113 // pred_check
          %p3657 = pneg %p168
        $region116: #{generator_forward.5} parent=113 // pred_check_branch
          %3659 = sbr.rel (%p3657) target = $region118
        $region117: #{generator_forward.5} parent=113 // pred_region
          %s3660 = sand.u32 %s153, 1
          %s3661 = sand.u32 %s153, 1
          %s3662 = smul.addr %s3661, 5
          %s3663 = scalar_lea.vmem [#allocation4], %s3662
        $region118: #{generator_forward.5} parent=113 // pred_fallthru
          _
      $region114: #{generator_forward.5} parent=5 // pred_fallthru
        _
    $region6: #{generator_forward.5} parent=1 // loop_footer
      %s18 = sadd.s32 1, %s14
    $region7: #{generator_forward.5} parent=1 // loop_footer_branch
      %13 = sbr.rel target = $region3
    $region8: #{generator_forward.5} parent=1 // loop_exit
      _
    %3664 = vsyncpa [#allocation3], 1
    %s3665 = scalar_lea.sflag [#allocation3], 1
    %3666 = vsyncpa %s3665, 1

// kernel: generator_forward.7
$region0: #{generator_forward.7}
  #allocation0 [shape = 'u32[]', space=smem, size = 0x4, offset = 0x4, fixed_abs, tag = 'smem constant byte address 0x4 - core index']
  #allocation1 [shape = 'u32[144,128]{1,0:T(1,128)}', space=vmem, size = 0x12000, scoped, tag = 'internal scratch']
  %s0 = inlined_call_operand.vmem [shape: bf16[392,64], index: 0, kind: input, shape index: {}]
  %s1 = inlined_call_operand.vmem [shape: f32[1,64], index: 1, kind: input, shape index: {}]
  %s2 = inlined_call_operand.vmem [shape: f32[1,64], index: 2, kind: input, shape index: {}]
  %s3 = inlined_call_operand.vmem [shape: bf16[64,128], index: 3, kind: input, shape index: {}]
  %s4 = inlined_call_operand.vmem [shape: bf16[392,128], index: 4, kind: output, shape index: {}]
  %s5 = sld [smem:[#allocation0]]
  $region93: #{generator_forward.7} parent=0
    _
  %s7 = ssub.s32 1, %s5
  %s8 = scalar_select 0, %s7, %s5
  $region1: #{generator_forward.7} parent=0
    #allocation2 [shape = 'u8[106496]{0}', space=vmem, size = 0x1a000, scoped, tag = 'output window, operand 0']
    loop: start=0, step=1, limit=4
    $region2: #{generator_forward.7} parent=1 // loop_pre_header
      _
    $region3: #{generator_forward.7} parent=1 // loop_header
      %s10 = sphi 0, %s14
      %p11 = scmp.ge.s32.totalorder %s10, 4
      %s20 = sphi 0, %s22
      %s23 = sphi 0, %s20
      %s24 = sphi 0, %s23
      %s40 = sphi 0, %s24
      %s44 = sphi 0, %s44
      %s46 = sphi 0, %s44
      %s47 = sphi 0, %s46
      %s61 = sphi 0, %s47
      %s65 = sphi 0, %s65
      %s67 = sphi 0, %s65
      %s68 = sphi 0, %s67
      %s82 = sphi 0, %s68
      %s86 = sphi 0, %s86
      %s88 = sphi 0, %s86
      %s89 = sphi 0, %s88
      %s103 = sphi 0, %s89
      %s109 = sphi 0, %s111
      %s112 = sphi 0, %s109
      %s113 = sphi 0, %s112
      %s129 = sphi 0, %s113
    $region4: #{generator_forward.7} parent=1 // loop_header_branch
      %13 = sbr.rel (%p11) target = $region8
    $region5: #{generator_forward.7} parent=1 // loop_body
      %s15 = ssub.s32 %s10, 1
      %s16 = ssub.s32 %s10, 2
      %s17 = sadd.s32 %s10, 1
      %s18 = ssub.s32 %s10, %s17
      %p19 = scmp.eq.s32.totalorder %s18, 0
      %s21 = sadd.s32 %s20, 1
      %s22 = scalar_select %p19, %s20, %s21
      %p25 = pneg %p19
      %p26 = scmp.eq.s32.totalorder %s10, 1
      %p27 = por %p25, %p26
      %p28 = scmp.ne.s32.totalorder %s20, %s23
      %p29 = scmp.eq.s32.totalorder %s10, 0
      %p30 = por %p28, %p29
      %p31 = scmp.ne.s32.totalorder %s20, %s23
      %p32 = scmp.eq.s32.totalorder %s15, 1
      %p33 = por %p31, %p32
      %p34 = scmp.ne.s32.totalorder %s23, %s24
      %p35 = scmp.eq.s32.totalorder %s15, 0
      %p36 = por %p34, %p35
      %p37 = scmp.ne.s32.totalorder %s23, %s24
      %p38 = scmp.eq.s32.totalorder %s16, 1
      %p39 = por %p37, %p38
      %p41 = scmp.ne.s32.totalorder %s24, %s40
      %p42 = scmp.eq.s32.totalorder %s16, 0
      %p43 = por %p41, %p42
      %s45 = sadd.s32 %s44, 1
      %p48 = scmp.eq.s32.totalorder %s10, 1
      %p49 = scmp.ne.s32.totalorder %s44, %s46
      %p50 = scmp.eq.s32.totalorder %s10, 0
      %p51 = por %p49, %p50
      %p52 = scmp.ne.s32.totalorder %s44, %s46
      %p53 = scmp.eq.s32.totalorder %s15, 1
      %p54 = por %p52, %p53
      %p55 = scmp.ne.s32.totalorder %s46, %s47
      %p56 = scmp.eq.s32.totalorder %s15, 0
      %p57 = por %p55, %p56
      %p58 = scmp.ne.s32.totalorder %s46, %s47
      %p59 = scmp.eq.s32.totalorder %s16, 1
      %p60 = por %p58, %p59
      %p62 = scmp.ne.s32.totalorder %s47, %s61
      %p63 = scmp.eq.s32.totalorder %s16, 0
      %p64 = por %p62, %p63
      %s66 = sadd.s32 %s65, 1
      %p69 = scmp.eq.s32.totalorder %s10, 1
      %p70 = scmp.ne.s32.totalorder %s65, %s67
      %p71 = scmp.eq.s32.totalorder %s10, 0
      %p72 = por %p70, %p71
      %p73 = scmp.ne.s32.totalorder %s65, %s67
      %p74 = scmp.eq.s32.totalorder %s15, 1
      %p75 = por %p73, %p74
      %p76 = scmp.ne.s32.totalorder %s67, %s68
      %p77 = scmp.eq.s32.totalorder %s15, 0
      %p78 = por %p76, %p77
      %p79 = scmp.ne.s32.totalorder %s67, %s68
      %p80 = scmp.eq.s32.totalorder %s16, 1
      %p81 = por %p79, %p80
      %p83 = scmp.ne.s32.totalorder %s68, %s82
      %p84 = scmp.eq.s32.totalorder %s16, 0
      %p85 = por %p83, %p84
      %s87 = sadd.s32 %s86, 1
      %p90 = scmp.eq.s32.totalorder %s10, 1
      %p91 = scmp.ne.s32.totalorder %s86, %s88
      %p92 = scmp.eq.s32.totalorder %s10, 0
      %p93 = por %p91, %p92
      %p94 = scmp.ne.s32.totalorder %s86, %s88
      %p95 = scmp.eq.s32.totalorder %s15, 1
      %p96 = por %p94, %p95
      %p97 = scmp.ne.s32.totalorder %s88, %s89
      %p98 = scmp.eq.s32.totalorder %s15, 0
      %p99 = por %p97, %p98
      %p100 = scmp.ne.s32.totalorder %s88, %s89
      %p101 = scmp.eq.s32.totalorder %s16, 1
      %p102 = por %p100, %p101
      %p104 = scmp.ne.s32.totalorder %s89, %s103
      %p105 = scmp.eq.s32.totalorder %s16, 0
      %p106 = por %p104, %p105
      %s107 = ssub.s32 %s10, %s17
      %p108 = scmp.eq.s32.totalorder %s107, 0
      %s110 = sadd.s32 %s109, 1
      %s111 = scalar_select %p108, %s109, %s110
      %p114 = pneg %p108
      %p115 = scmp.eq.s32.totalorder %s10, 1
      %p116 = por %p114, %p115
      %p117 = scmp.ne.s32.totalorder %s109, %s112
      %p118 = scmp.eq.s32.totalorder %s10, 0
      %p119 = por %p117, %p118
      %p120 = scmp.ne.s32.totalorder %s109, %s112
      %p121 = scmp.eq.s32.totalorder %s15, 1
      %p122 = por %p120, %p121
      %p123 = scmp.ne.s32.totalorder %s112, %s113
      %p124 = scmp.eq.s32.totalorder %s15, 0
      %p125 = por %p123, %p124
      %p126 = scmp.ne.s32.totalorder %s112, %s113
      %p127 = scmp.eq.s32.totalorder %s16, 1
      %p128 = por %p126, %p127
      %p130 = scmp.ne.s32.totalorder %s113, %s129
      %p131 = scmp.eq.s32.totalorder %s16, 0
      %p132 = por %p130, %p131
      %p133 = scmp.le.s32.totalorder 1, %s10
      %p134 = scmp.lt.s32.totalorder %s10, 3
      %p135 = pnand %p133, %p134
      %p136 = pneg %p135
      // Predicated region
      $region9: #{generator_forward.7} parent=5 // pred_check
        _
      $region10: #{generator_forward.7} parent=5 // pred_check_branch
        %138 = sbr.rel (%p135) target = $region12
      $region11: #{generator_forward.7} parent=5 // pred_region
        %s139 = ssub.s32 %s10, 1
        // Predicated region
        $region13: #{generator_forward.7} parent=11 // pred_check
          %p140 = pneg %p57
        $region14: #{generator_forward.7} parent=11 // pred_check_branch
          %142 = sbr.rel (%p140) target = $region16
        $region15: #{generator_forward.7} parent=11 // pred_region
          _
        $region16: #{generator_forward.7} parent=11 // pred_fallthru
          _
        // Predicated region
        $region17: #{generator_forward.7} parent=11 // pred_check
          %p143 = pneg %p78
        $region18: #{generator_forward.7} parent=11 // pred_check_branch
          %145 = sbr.rel (%p143) target = $region20
        $region19: #{generator_forward.7} parent=11 // pred_region
          _
        $region20: #{generator_forward.7} parent=11 // pred_fallthru
          _
        // Predicated region
        $region21: #{generator_forward.7} parent=11 // pred_check
          %p146 = pneg %p99
        $region22: #{generator_forward.7} parent=11 // pred_check_branch
          %148 = sbr.rel (%p146) target = $region24
        $region23: #{generator_forward.7} parent=11 // pred_region
          _
        $region24: #{generator_forward.7} parent=11 // pred_fallthru
          _
      $region12: #{generator_forward.7} parent=5 // pred_fallthru
        _
      %p149 = scmp.lt.s32.totalorder %s10, 2
      // Predicated region
      $region25: #{generator_forward.7} parent=5 // pred_check
        %p150 = pneg %p149
      $region26: #{generator_forward.7} parent=5 // pred_check_branch
        %152 = sbr.rel (%p150) target = $region28
      $region27: #{generator_forward.7} parent=5 // pred_region
        // Predicated region
        $region29: #{generator_forward.7} parent=27 // pred_check
          %p153 = pneg %p30
        $region30: #{generator_forward.7} parent=27 // pred_check_branch
          %155 = sbr.rel (%p153) target = $region32
        $region31: #{generator_forward.7} parent=27 // pred_region
          %s156 = smul.u32 26, %s10
          %s157 = ssub.s32 49, %s156
          %p158 = scmp.lt.s32.totalorder %s157, 26
          %s159 = scalar_select %p158, %s157, 26
          %s160 = smul.u32 64, %s159
          %p161 = scmp.lt.s32.totalorder %s156, 48
          %s162 = scalar_select %p161, %s156, 48
          %s163 = smul.addr %s162, 4
          %s164 = scalar_lea.vmem %s0, %s163
          %s165 = smul.u32 26, %s10
          %s166 = ssub.s32 49, %s165
          %p167 = scmp.lt.s32.totalorder %s166, 26
          %s168 = scalar_select %p167, %s166, 26
          %s169 = smul.u32 64, %s168
        $region32: #{generator_forward.7} parent=27 // pred_fallthru
          _
      $region28: #{generator_forward.7} parent=5 // pred_fallthru
        _
      %p170 = scmp.le.s32.totalorder 1, %s10
      %p171 = scmp.lt.s32.totalorder %s10, 3
      %p172 = pnand %p170, %p171
      %p173 = pneg %p172
      // Predicated region
      $region33: #{generator_forward.7} parent=5 // pred_check
        _
      $region34: #{generator_forward.7} parent=5 // pred_check_branch
        %175 = sbr.rel (%p172) target = $region36
      $region35: #{generator_forward.7} parent=5 // pred_region
        %s176 = ssub.s32 %s10, 1
        %s177 = smul.u32 26, %s15
        %s178 = ssub.s32 49, %s177
        %p179 = scmp.lt.s32.totalorder %s178, 26
        %s180 = scalar_select %p179, %s178, 26
        %s181 = smul.u32 64, %s180
        %p182 = scmp.lt.s32.totalorder %s177, 48
        %s183 = scalar_select %p182, %s177, 48
        %s184 = smul.addr %s183, 4
        %s185 = scalar_lea.vmem %s0, %s184
        %p186 = pneg %p36
        %p187 = pneg %p33
        %p188 = pneg %p57
        %p189 = pneg %p54
        %p190 = pneg %p78
        %p191 = pneg %p75
        %p192 = pneg %p99
        %p193 = pneg %p96
        %p194 = pneg %p125
        %p195 = pneg %p122
        %s196 = sand.u32 %s112, 1
        %s197 = sand.u32 %s112, 1
        %s198 = smul.addr %s197, 104
        %s199 = scalar_lea.vmem [#allocation2], %s198
        %s200 = smul.u32 26, %s15
        %s201 = ssub.s32 49, %s200
        %p202 = scmp.lt.s32.totalorder %s201, 26
        %s203 = scalar_select %p202, %s201, 26
        %s204 = smul.u32 64, %s203
        %p205 = scmp.lt.s32.totalorder %s200, 48
        %s206 = scalar_select %p205, %s200, 48
        %s207 = smul.addr %s206, 4
        %s208 = scalar_lea.vmem %s0, %s207
        %s209 = smul.u32 26, %s15
        %s210 = ssub.s32 49, %s209
        %p211 = scmp.lt.s32.totalorder %s210, 26
        %s212 = scalar_select %p211, %s210, 26
        %s213 = smul.u32 64, %s212
        %s214 = smul.u32 26, %s15
        %s215 = ssub.s32 49, %s214
        %p216 = scmp.lt.s32.totalorder %s215, 26
        %s217 = scalar_select %p216, %s215, 26
        %s218 = smul.u32 64, %s217
        %v220 = vld [vmem:[%s208] sm:$0xf]
        %v221 = vld [vmem:[%s208 + $0x4] sm:$0xf]
        %v222 = vld [vmem:[%s208 + $0x8] sm:$0xf]
        %v223 = vld [vmem:[%s208 + $0xc] sm:$0xf]
        %v224 = vld [vmem:[%s208 + $0x10] sm:$0xf]
        %v225 = vld [vmem:[%s208 + $0x14] sm:$0xf]
        %v226 = vld [vmem:[%s208 + $0x18] sm:$0xf]
        %v227 = vld [vmem:[%s208 + $0x1c] sm:$0xf]
        %v228 = vld [vmem:[%s208 + $0x20] sm:$0xf]
        %v229 = vld [vmem:[%s208 + $0x24] sm:$0xf]
        %v230 = vld [vmem:[%s208 + $0x28] sm:$0xf]
        %v231 = vld [vmem:[%s208 + $0x2c] sm:$0xf]
        %v232 = vld [vmem:[%s208 + $0x30] sm:$0xf]
        %v233 = vld [vmem:[%s208 + $0x34] sm:$0xf]
        %v234 = vld [vmem:[%s208 + $0x38] sm:$0xf]
        %v235 = vld [vmem:[%s208 + $0x3c] sm:$0xf]
        %v236 = vld [vmem:[%s208 + $0x40] sm:$0xf]
        %v237 = vld [vmem:[%s208 + $0x44] sm:$0xf]
        %v238 = vld [vmem:[%s208 + $0x48] sm:$0xf]
        %v239 = vld [vmem:[%s208 + $0x4c] sm:$0xf]
        %v240 = vld [vmem:[%s208 + $0x50] sm:$0xf]
        %v241 = vld [vmem:[%s208 + $0x54] sm:$0xf]
        %v242 = vld [vmem:[%s208 + $0x58] sm:$0xf]
        %v243 = vld [vmem:[%s208 + $0x5c] sm:$0xf]
        %v244 = vld [vmem:[%s208 + $0x60] sm:$0xf]
        %v245 = vld [vmem:[%s208 + $0x64] sm:$0xf]
        %v246 = vunpack.c.l.bf16 %v220
        %v247 = vunpack.c.l.bf16 %v221
        %v248 = vunpack.c.l.bf16 %v222
        %v249 = vunpack.c.l.bf16 %v223
        %v250 = vunpack.c.l.bf16 %v224
        %v251 = vunpack.c.l.bf16 %v225
        %v252 = vunpack.c.l.bf16 %v226
        %v253 = vunpack.c.l.bf16 %v227
        %v254 = vunpack.c.l.bf16 %v228
        %v255 = vunpack.c.l.bf16 %v229
        %v256 = vunpack.c.l.bf16 %v230
        %v257 = vunpack.c.l.bf16 %v231
        %v258 = vunpack.c.l.bf16 %v232
        %v259 = vunpack.c.l.bf16 %v233
        %v260 = vunpack.c.l.bf16 %v234
        %v261 = vunpack.c.l.bf16 %v235
        %v262 = vunpack.c.l.bf16 %v236
        %v263 = vunpack.c.l.bf16 %v237
        %v264 = vunpack.c.l.bf16 %v238
        %v265 = vunpack.c.l.bf16 %v239
        %v266 = vunpack.c.l.bf16 %v240
        %v267 = vunpack.c.l.bf16 %v241
        %v268 = vunpack.c.l.bf16 %v242
        %v269 = vunpack.c.l.bf16 %v243
        %v270 = vunpack.c.l.bf16 %v244
        %v271 = vunpack.c.l.bf16 %v245
        %v272 = vmax.f32 %v246, 0.0
        %v273 = vmax.f32 %v247, 0.0
        %v274 = vmax.f32 %v248, 0.0
        %v275 = vmax.f32 %v249, 0.0
        %v276 = vmax.f32 %v250, 0.0
        %v277 = vmax.f32 %v251, 0.0
        %v278 = vmax.f32 %v252, 0.0
        %v279 = vmax.f32 %v253, 0.0
        %v280 = vmax.f32 %v254, 0.0
        %v281 = vmax.f32 %v255, 0.0
        %v282 = vmax.f32 %v256, 0.0
        %v283 = vmax.f32 %v257, 0.0
        %v284 = vmax.f32 %v258, 0.0
        %v285 = vmax.f32 %v259, 0.0
        %v286 = vmax.f32 %v260, 0.0
        %v287 = vmax.f32 %v261, 0.0
        %v288 = vmax.f32 %v262, 0.0
        %v289 = vmax.f32 %v263, 0.0
        %v290 = vmax.f32 %v264, 0.0
        %v291 = vmax.f32 %v265, 0.0
        %v292 = vmax.f32 %v266, 0.0
        %v293 = vmax.f32 %v267, 0.0
        %v294 = vmax.f32 %v268, 0.0
        %v295 = vmax.f32 %v269, 0.0
        %v296 = vmax.f32 %v270, 0.0
        %v297 = vmax.f32 %v271, 0.0
        %v298 = vld [vmem:[%s1] sm:$0x1]
        %v300 = vlaneseq
        %v301 = vshrl.u32 %v300, 7
        %v302 = vsub.s32 0, %v301
        %v303 = vrot.slane %v298, %v302
        %v305 = vmul.f32 %v272, %v303
        %v306 = vmul.f32 %v273, %v303
        %v307 = vmul.f32 %v274, %v303
        %v308 = vmul.f32 %v275, %v303
        %v309 = vmul.f32 %v276, %v303
        %v310 = vmul.f32 %v277, %v303
        %v311 = vmul.f32 %v278, %v303
        %v312 = vmul.f32 %v279, %v303
        %v313 = vmul.f32 %v280, %v303
        %v314 = vmul.f32 %v281, %v303
        %v315 = vmul.f32 %v282, %v303
        %v316 = vmul.f32 %v283, %v303
        %v317 = vmul.f32 %v284, %v303
        %v318 = vmul.f32 %v285, %v303
        %v319 = vmul.f32 %v286, %v303
        %v320 = vmul.f32 %v287, %v303
        %v321 = vmul.f32 %v288, %v303
        %v322 = vmul.f32 %v289, %v303
        %v323 = vmul.f32 %v290, %v303
        %v324 = vmul.f32 %v291, %v303
        %v325 = vmul.f32 %v292, %v303
        %v326 = vmul.f32 %v293, %v303
        %v327 = vmul.f32 %v294, %v303
        %v328 = vmul.f32 %v295, %v303
        %v329 = vmul.f32 %v296, %v303
        %v330 = vmul.f32 %v297, %v303
        %v331 = vld [vmem:[%s2] sm:$0x1]
        %v333 = vlaneseq
        %v334 = vshrl.u32 %v333, 7
        %v335 = vsub.s32 0, %v334
        %v336 = vrot.slane %v331, %v335
        %v338 = vadd.f32 %v305, %v336
        %v339 = vadd.f32 %v306, %v336
        %v340 = vadd.f32 %v307, %v336
        %v341 = vadd.f32 %v308, %v336
        %v342 = vadd.f32 %v309, %v336
        %v343 = vadd.f32 %v310, %v336
        %v344 = vadd.f32 %v311, %v336
        %v345 = vadd.f32 %v312, %v336
        %v346 = vadd.f32 %v313, %v336
        %v347 = vadd.f32 %v314, %v336
        %v348 = vadd.f32 %v315, %v336
        %v349 = vadd.f32 %v316, %v336
        %v350 = vadd.f32 %v317, %v336
        %v351 = vadd.f32 %v318, %v336
        %v352 = vadd.f32 %v319, %v336
        %v353 = vadd.f32 %v320, %v336
        %v354 = vadd.f32 %v321, %v336
        %v355 = vadd.f32 %v322, %v336
        %v356 = vadd.f32 %v323, %v336
        %v357 = vadd.f32 %v324, %v336
        %v358 = vadd.f32 %v325, %v336
        %v359 = vadd.f32 %v326, %v336
        %v360 = vadd.f32 %v327, %v336
        %v361 = vadd.f32 %v328, %v336
        %v362 = vadd.f32 %v329, %v336
        %v363 = vadd.f32 %v330, %v336
        %v364 = vpack.c.bf16 %v339, %v338
        %v365 = vpack.c.bf16 %v341, %v340
        %v366 = vpack.c.bf16 %v343, %v342
        %v367 = vpack.c.bf16 %v345, %v344
        %v368 = vpack.c.bf16 %v347, %v346
        %v369 = vpack.c.bf16 %v349, %v348
        %v370 = vpack.c.bf16 %v351, %v350
        %v371 = vpack.c.bf16 %v353, %v352
        %v372 = vpack.c.bf16 %v355, %v354
        %v373 = vpack.c.bf16 %v357, %v356
        %v374 = vpack.c.bf16 %v359, %v358
        %v375 = vpack.c.bf16 %v361, %v360
        %v376 = vpack.c.bf16 %v363, %v362
        %v377 = vld [vmem:[%s3] sm:$0xf]
        %v378 = vld [vmem:[%s3 + $0x4] sm:$0xf]
        %v379 = vld [vmem:[%s3 + $0x8] sm:$0xf]
        %v380 = vld [vmem:[%s3 + $0xc] sm:$0xf]
        %v381 = vld [vmem:[%s3 + $0x10] sm:$0xf]
        %v382 = vld [vmem:[%s3 + $0x14] sm:$0xf]
        %v383 = vld [vmem:[%s3 + $0x18] sm:$0xf]
        %v384 = vld [vmem:[%s3 + $0x1c] sm:$0xf]
        %v393 = vunpack.c.l.b16 %v377
        %v394 = vunpack.c.l.b16 %v378
        %v395 = vunpack.c.l.b16 %v379
        %v396 = vunpack.c.l.b16 %v380
        %v397 = vunpack.c.l.b16 %v381
        %v398 = vunpack.c.l.b16 %v382
        %v399 = vunpack.c.l.b16 %v383
        %v400 = vunpack.c.l.b16 %v384
        %v401 = vpack.c.b16 %v394, %v393
        %v402 = vpack.c.b16 %v396, %v395
        %v403 = vpack.c.b16 %v398, %v397
        %v404 = vpack.c.b16 %v400, %v399
        %vm409 = vcmask 523264
        %v411 = vsel %vm409, %v364, 0
        %v414 = vsel %vm409, %v365, 0
        %v417 = vsel %vm409, %v366, 0
        %v420 = vsel %vm409, %v367, 0
        %v423 = vsel %vm409, %v368, 0
        %v426 = vsel %vm409, %v369, 0
        %v429 = vsel %vm409, %v370, 0
        %v432 = vsel %vm409, %v371, 0
        %v435 = vsel %vm409, %v372, 0
        %v438 = vsel %vm409, %v373, 0
        %v441 = vsel %vm409, %v374, 0
        %v444 = vsel %vm409, %v375, 0
        %v447 = vsel %vm409, %v376, 0
        %449 = vmatprep.subr.bf16.mxu0 0
        %450 = vmatpush1.bf16.msra.mxu0 %v401
        %451 = vmatprep.subr.bf16.mxu0 0
        %452 = vmatpush1.bf16.msra.mxu0 %v402
        %453 = vmatprep.subr.bf16.mxu0 0
        %454 = vmatpush1.bf16.msra.mxu0 %v403
        %455 = vmatprep.subr.bf16.mxu0 0
        %456 = vmatpush1.bf16.msra.mxu0 %v404
        %457 = vmatprep.subr.bf16.mxu0 0
        %458 = vmatpush1.bf16.msra.mxu0 0
        %459 = vmatprep.subr.bf16.mxu0 0
        %460 = vmatpush1.bf16.msra.mxu0 0
        %461 = vmatprep.subr.bf16.mxu0 0
        %462 = vmatpush1.bf16.msra.mxu0 0
        %463 = vmatprep.subr.bf16.mxu0 0
        %464 = vmatpush1.bf16.msra.mxu0 0
        %465 = vmatprep.subr.bf16.mxu0 0
        %466 = vmatpush1.bf16.msra.mxu0 0
        %467 = vmatprep.subr.bf16.mxu0 0
        %468 = vmatpush1.bf16.msra.mxu0 0
        %469 = vmatprep.subr.bf16.mxu0 0
        %470 = vmatpush1.bf16.msra.mxu0 0
        %471 = vmatprep.subr.bf16.mxu0 0
        %472 = vmatpush1.bf16.msra.mxu0 0
        %473 = vmatprep.subr.bf16.mxu0 0
        %474 = vmatpush1.bf16.msra.mxu0 0
        %475 = vmatprep.subr.bf16.mxu0 0
        %476 = vmatpush1.bf16.msra.mxu0 0
        %477 = vmatprep.subr.bf16.mxu0 0
        %478 = vmatpush1.bf16.msra.mxu0 0
        %479 = vmatprep.subr.bf16.mxu0 0
        %480 = vmatpush1.bf16.msra.mxu0 0
        %481 = vmatprep.mubr.bf16.mxu0 0
        %482 = vmatmul.mubr.bf16.gmra.mrb[0].mxu0 %v411
        %v483 = vpop.f32.mrb[0].mxu0
        %v484 = vadd.f32 0.0, %v483
        %v485 = vpop.f32.mrb[0].mxu0
        %v486 = vpop.f32.mrb[0].mxu0
        %v487 = vadd.f32 0.0, %v486
        %v488 = vpop.f32.mrb[0].mxu0
        %489 = vmatprep.mubr.bf16.mxu0 0
        %490 = vmatmul.mubr.bf16.gmra.mrb[0].mxu0 %v414
        %v491 = vpop.f32.mrb[0].mxu0
        %v492 = vadd.f32 0.0, %v491
        %v493 = vpop.f32.mrb[0].mxu0
        %v494 = vpop.f32.mrb[0].mxu0
        %v495 = vadd.f32 0.0, %v494
        %v496 = vpop.f32.mrb[0].mxu0
        %497 = vmatprep.mubr.bf16.mxu0 0
        %498 = vmatmul.mubr.bf16.gmra.mrb[0].mxu0 %v417
        %v499 = vpop.f32.mrb[0].mxu0
        %v500 = vadd.f32 0.0, %v499
        %v501 = vpop.f32.mrb[0].mxu0
        %v502 = vpop.f32.mrb[0].mxu0
        %v503 = vadd.f32 0.0, %v502
        %v504 = vpop.f32.mrb[0].mxu0
        %505 = vmatprep.mubr.bf16.mxu0 0
        %506 = vmatmul.mubr.bf16.gmra.mrb[0].mxu0 %v420
        %v507 = vpop.f32.mrb[0].mxu0
        %v508 = vadd.f32 0.0, %v507
        %v509 = vpop.f32.mrb[0].mxu0
        %v510 = vpop.f32.mrb[0].mxu0
        %v511 = vadd.f32 0.0, %v510
        %v512 = vpop.f32.mrb[0].mxu0
        %513 = vmatprep.mubr.bf16.mxu0 0
        %514 = vmatmul.mubr.bf16.gmra.mrb[0].mxu0 %v423
        %v515 = vpop.f32.mrb[0].mxu0
        %v516 = vadd.f32 0.0, %v515
        %v517 = vpop.f32.mrb[0].mxu0
        %v518 = vpop.f32.mrb[0].mxu0
        %v519 = vadd.f32 0.0, %v518
        %v520 = vpop.f32.mrb[0].mxu0
        %521 = vmatprep.mubr.bf16.mxu0 0
        %522 = vmatmul.mubr.bf16.gmra.mrb[0].mxu0 %v426
        %v523 = vpop.f32.mrb[0].mxu0
        %v524 = vadd.f32 0.0, %v523
        %v525 = vpop.f32.mrb[0].mxu0
        %v526 = vpop.f32.mrb[0].mxu0
        %v527 = vadd.f32 0.0, %v526
        %v528 = vpop.f32.mrb[0].mxu0
        %529 = vmatprep.mubr.bf16.mxu0 0
        %530 = vmatmul.mubr.bf16.gmra.mrb[0].mxu0 %v429
        %v531 = vpop.f32.mrb[0].mxu0
        %v532 = vadd.f32 0.0, %v531
        %v533 = vpop.f32.mrb[0].mxu0
        %v534 = vpop.f32.mrb[0].mxu0
        %v535 = vadd.f32 0.0, %v534
        %v536 = vpop.f32.mrb[0].mxu0
        %537 = vmatprep.mubr.bf16.mxu0 0
        %538 = vmatmul.mubr.bf16.gmra.mrb[0].mxu0 %v432
        %v539 = vpop.f32.mrb[0].mxu0
        %v540 = vadd.f32 0.0, %v539
        %v541 = vpop.f32.mrb[0].mxu0
        %v542 = vpop.f32.mrb[0].mxu0
        %v543 = vadd.f32 0.0, %v542
        %v544 = vpop.f32.mrb[0].mxu0
        %545 = vmatprep.mubr.bf16.mxu0 0
        %546 = vmatmul.mubr.bf16.gmra.mrb[0].mxu0 %v435
        %v547 = vpop.f32.mrb[0].mxu0
        %v548 = vadd.f32 0.0, %v547
        %v549 = vpop.f32.mrb[0].mxu0
        %v550 = vpop.f32.mrb[0].mxu0
        %v551 = vadd.f32 0.0, %v550
        %v552 = vpop.f32.mrb[0].mxu0
        %553 = vmatprep.mubr.bf16.mxu0 0
        %554 = vmatmul.mubr.bf16.gmra.mrb[0].mxu0 %v438
        %v555 = vpop.f32.mrb[0].mxu0
        %v556 = vadd.f32 0.0, %v555
        %v557 = vpop.f32.mrb[0].mxu0
        %v558 = vpop.f32.mrb[0].mxu0
        %v559 = vadd.f32 0.0, %v558
        %v560 = vpop.f32.mrb[0].mxu0
        %561 = vmatprep.mubr.bf16.mxu0 0
        %562 = vmatmul.mubr.bf16.gmra.mrb[0].mxu0 %v441
        %v563 = vpop.f32.mrb[0].mxu0
        %v564 = vadd.f32 0.0, %v563
        %v565 = vpop.f32.mrb[0].mxu0
        %v566 = vpop.f32.mrb[0].mxu0
        %v567 = vadd.f32 0.0, %v566
        %v568 = vpop.f32.mrb[0].mxu0
        %569 = vmatprep.mubr.bf16.mxu0 0
        %570 = vmatmul.mubr.bf16.gmra.mrb[0].mxu0 %v444
        %v571 = vpop.f32.mrb[0].mxu0
        %v572 = vadd.f32 0.0, %v571
        %v573 = vpop.f32.mrb[0].mxu0
        %v574 = vpop.f32.mrb[0].mxu0
        %v575 = vadd.f32 0.0, %v574
        %v576 = vpop.f32.mrb[0].mxu0
        %577 = vmatprep.mubr.bf16.mxu0 0
        %578 = vmatmul.mubr.bf16.gmra.mrb[0].mxu0 %v447
        %v579 = vpop.f32.mrb[0].mxu0
        %v580 = vadd.f32 0.0, %v579
        %v581 = vpop.f32.mrb[0].mxu0
        %v582 = vpop.f32.mrb[0].mxu0
        %v583 = vadd.f32 0.0, %v582
        %v584 = vpop.f32.mrb[0].mxu0
        %585 = vdwg.mxu0
        %v586 = vpack.c.bf16 %v487, %v484
        %v587 = vpack.c.bf16 %v495, %v492
        %v588 = vpack.c.bf16 %v503, %v500
        %v589 = vpack.c.bf16 %v511, %v508
        %v590 = vpack.c.bf16 %v519, %v516
        %v591 = vpack.c.bf16 %v527, %v524
        %v592 = vpack.c.bf16 %v535, %v532
        %v593 = vpack.c.bf16 %v543, %v540
        %v594 = vpack.c.bf16 %v551, %v548
        %v595 = vpack.c.bf16 %v559, %v556
        %v596 = vpack.c.bf16 %v567, %v564
        %v597 = vpack.c.bf16 %v575, %v572
        %v598 = vpack.c.bf16 %v583, %v580
        %v612 = vunpack.c.l.b16 %v586
        %v613 = vunpack.c.h.b16 %v586
        %v614 = vunpack.c.l.b16 %v587
        %v615 = vunpack.c.h.b16 %v587
        %v616 = vunpack.c.l.b16 %v588
        %v617 = vunpack.c.h.b16 %v588
        %v618 = vunpack.c.l.b16 %v589
        %v619 = vunpack.c.h.b16 %v589
        %v620 = vunpack.c.l.b16 %v590
        %v621 = vunpack.c.h.b16 %v590
        %v622 = vunpack.c.l.b16 %v591
        %v623 = vunpack.c.h.b16 %v591
        %v624 = vunpack.c.l.b16 %v592
        %v625 = vunpack.c.h.b16 %v592
        %v626 = vunpack.c.l.b16 %v593
        %v627 = vunpack.c.h.b16 %v593
        %v628 = vunpack.c.l.b16 %v594
        %v629 = vunpack.c.h.b16 %v594
        %v630 = vunpack.c.l.b16 %v595
        %v631 = vunpack.c.h.b16 %v595
        %v632 = vunpack.c.l.b16 %v596
        %v633 = vunpack.c.h.b16 %v596
        %v634 = vunpack.c.l.b16 %v597
        %v635 = vunpack.c.h.b16 %v597
        %v636 = vunpack.c.l.b16 %v598
        %v637 = vunpack.c.h.b16 %v598
        %v638 = vpack.c.b16 %v612, %v612
        %v639 = vpack.c.b16 %v613, %v613
        %v640 = vpack.c.b16 %v614, %v614
        %v641 = vpack.c.b16 %v615, %v615
        %v642 = vpack.c.b16 %v616, %v616
        %v643 = vpack.c.b16 %v617, %v617
        %v644 = vpack.c.b16 %v618, %v618
        %v645 = vpack.c.b16 %v619, %v619
        %v646 = vpack.c.b16 %v620, %v620
        %v647 = vpack.c.b16 %v621, %v621
        %v648 = vpack.c.b16 %v622, %v622
        %v649 = vpack.c.b16 %v623, %v623
        %v650 = vpack.c.b16 %v624, %v624
        %v651 = vpack.c.b16 %v625, %v625
        %v652 = vpack.c.b16 %v626, %v626
        %v653 = vpack.c.b16 %v627, %v627
        %v654 = vpack.c.b16 %v628, %v628
        %v655 = vpack.c.b16 %v629, %v629
        %v656 = vpack.c.b16 %v630, %v630
        %v657 = vpack.c.b16 %v631, %v631
        %v658 = vpack.c.b16 %v632, %v632
        %v659 = vpack.c.b16 %v633, %v633
        %v660 = vpack.c.b16 %v634, %v634
        %v661 = vpack.c.b16 %v635, %v635
        %v662 = vpack.c.b16 %v636, %v636
        %v663 = vpack.c.b16 %v637, %v637
        %690 = vst [vmem:[%s199] sm:$0xf] %v638
        %691 = vst [vmem:[%s199 + $0x4] sm:$0xf] %v639
        %692 = vst [vmem:[%s199 + $0x8] sm:$0xf] %v640
        %693 = vst [vmem:[%s199 + $0xc] sm:$0xf] %v641
        %694 = vst [vmem:[%s199 + $0x10] sm:$0xf] %v642
        %695 = vst [vmem:[%s199 + $0x14] sm:$0xf] %v643
        %696 = vst [vmem:[%s199 + $0x18] sm:$0xf] %v644
        %697 = vst [vmem:[%s199 + $0x1c] sm:$0xf] %v645
        %698 = vst [vmem:[%s199 + $0x20] sm:$0xf] %v646
        %699 = vst [vmem:[%s199 + $0x24] sm:$0xf] %v647
        %700 = vst [vmem:[%s199 + $0x28] sm:$0xf] %v648
        %701 = vst [vmem:[%s199 + $0x2c] sm:$0xf] %v649
        %702 = vst [vmem:[%s199 + $0x30] sm:$0xf] %v650
        %703 = vst [vmem:[%s199 + $0x34] sm:$0xf] %v651
        %704 = vst [vmem:[%s199 + $0x38] sm:$0xf] %v652
        %705 = vst [vmem:[%s199 + $0x3c] sm:$0xf] %v653
        %706 = vst [vmem:[%s199 + $0x40] sm:$0xf] %v654
        %707 = vst [vmem:[%s199 + $0x44] sm:$0xf] %v655
        %708 = vst [vmem:[%s199 + $0x48] sm:$0xf] %v656
        %709 = vst [vmem:[%s199 + $0x4c] sm:$0xf] %v657
        %710 = vst [vmem:[%s199 + $0x50] sm:$0xf] %v658
        %711 = vst [vmem:[%s199 + $0x54] sm:$0xf] %v659
        %712 = vst [vmem:[%s199 + $0x58] sm:$0xf] %v660
        %713 = vst [vmem:[%s199 + $0x5c] sm:$0xf] %v661
        %714 = vst [vmem:[%s199 + $0x60] sm:$0xf] %v662
        %715 = vst [vmem:[%s199 + $0x64] sm:$0xf] %v663
        %s716 = sand.u32 %s112, 1
        %s717 = sand.u32 %s112, 1
        %s718 = smul.addr %s717, 104
        %s719 = scalar_lea.vmem [#allocation2], %s718
        // Predicated region
        $region37: #{generator_forward.7} parent=35 // pred_check
          %p720 = pneg %p122
        $region38: #{generator_forward.7} parent=35 // pred_check_branch
          %722 = sbr.rel (%p720) target = $region40
        $region39: #{generator_forward.7} parent=35 // pred_region
          %s723 = smul.u32 26, %s15
          %s724 = ssub.s32 49, %s723
          %p725 = scmp.lt.s32.totalorder %s724, 26
          %s726 = scalar_select %p725, %s724, 26
          %s727 = smul.u32 64, %s726
          %p728 = scmp.ne.s32.totalorder 0, %s727
          %s729 = smul.addr %s723, 4
          %s730 = scalar_lea.vmem %s4, %s729
          // Predicated region
          $region41: #{generator_forward.7} parent=39 // pred_check
            %p731 = pneg %p728
          $region42: #{generator_forward.7} parent=39 // pred_check_branch
            %733 = sbr.rel (%p731) target = $region44
          $region43: #{generator_forward.7} parent=39 // pred_region
            // Predicated region
            $region45: #{generator_forward.7} parent=43 // pred_check
              _
            $region46: #{generator_forward.7} parent=43 // pred_check_branch
              %735 = sbr.rel target = $region48
            $region47: #{generator_forward.7} parent=43 // pred_region
              // Predicated region
              $region67: #{generator_forward.7} parent=47 // pred_check
                _
              $region68: #{generator_forward.7} parent=47 // pred_check_branch
                %835 = sbr.rel (0) target = $region70
              $region69: #{generator_forward.7} parent=47 // pred_region
                %s837 = sdiv.u32.pop %s726, 26
                %s838 = srem.u32.pop %s726, 26
                // While loop
                $region71: #{generator_forward.7} parent=69 // loop_pre_header
                  _
                $region72: #{generator_forward.7} parent=69 // loop_header
                  %s840 = sphi 0, %s842
                  %p841 = scmp.ge.s32.totalorder %s840, %s837
                  %s845 = sphi 0, %s902
                  %s846 = sphi %s719, %s905
                  %s847 = sphi %s730, %s906
                $region73: #{generator_forward.7} parent=69 // loop_header_branch
                  %844 = sbr.rel (%p841) target = $region77
                $region74: #{generator_forward.7} parent=69 // loop_body
                  %v848 = vld [vmem:[%s846] sm:$0xf]
                  %849 = vst [vmem:[%s847] sm:$0xf] %v848
                  %v850 = vld [vmem:[%s846 + $0x4] sm:$0xf]
                  %851 = vst [vmem:[%s847 + $0x4] sm:$0xf] %v850
                  %v852 = vld [vmem:[%s846 + $0x8] sm:$0xf]
                  %853 = vst [vmem:[%s847 + $0x8] sm:$0xf] %v852
                  %v854 = vld [vmem:[%s846 + $0xc] sm:$0xf]
                  %855 = vst [vmem:[%s847 + $0xc] sm:$0xf] %v854
                  %v856 = vld [vmem:[%s846 + $0x10] sm:$0xf]
                  %857 = vst [vmem:[%s847 + $0x10] sm:$0xf] %v856
                  %v858 = vld [vmem:[%s846 + $0x14] sm:$0xf]
                  %859 = vst [vmem:[%s847 + $0x14] sm:$0xf] %v858
                  %v860 = vld [vmem:[%s846 + $0x18] sm:$0xf]
                  %861 = vst [vmem:[%s847 + $0x18] sm:$0xf] %v860
                  %v862 = vld [vmem:[%s846 + $0x1c] sm:$0xf]
                  %863 = vst [vmem:[%s847 + $0x1c] sm:$0xf] %v862
                  %v864 = vld [vmem:[%s846 + $0x20] sm:$0xf]
                  %865 = vst [vmem:[%s847 + $0x20] sm:$0xf] %v864
                  %v866 = vld [vmem:[%s846 + $0x24] sm:$0xf]
                  %867 = vst [vmem:[%s847 + $0x24] sm:$0xf] %v866
                  %v868 = vld [vmem:[%s846 + $0x28] sm:$0xf]
                  %869 = vst [vmem:[%s847 + $0x28] sm:$0xf] %v868
                  %v870 = vld [vmem:[%s846 + $0x2c] sm:$0xf]
                  %871 = vst [vmem:[%s847 + $0x2c] sm:$0xf] %v870
                  %v872 = vld [vmem:[%s846 + $0x30] sm:$0xf]
                  %873 = vst [vmem:[%s847 + $0x30] sm:$0xf] %v872
                  %v874 = vld [vmem:[%s846 + $0x34] sm:$0xf]
                  %875 = vst [vmem:[%s847 + $0x34] sm:$0xf] %v874
                  %v876 = vld [vmem:[%s846 + $0x38] sm:$0xf]
                  %877 = vst [vmem:[%s847 + $0x38] sm:$0xf] %v876
                  %v878 = vld [vmem:[%s846 + $0x3c] sm:$0xf]
                  %879 = vst [vmem:[%s847 + $0x3c] sm:$0xf] %v878
                  %v880 = vld [vmem:[%s846 + $0x40] sm:$0xf]
                  %881 = vst [vmem:[%s847 + $0x40] sm:$0xf] %v880
                  %v882 = vld [vmem:[%s846 + $0x44] sm:$0xf]
                  %883 = vst [vmem:[%s847 + $0x44] sm:$0xf] %v882
                  %v884 = vld [vmem:[%s846 + $0x48] sm:$0xf]
                  %885 = vst [vmem:[%s847 + $0x48] sm:$0xf] %v884
                  %v886 = vld [vmem:[%s846 + $0x4c] sm:$0xf]
                  %887 = vst [vmem:[%s847 + $0x4c] sm:$0xf] %v886
                  %v888 = vld [vmem:[%s846 + $0x50] sm:$0xf]
                  %889 = vst [vmem:[%s847 + $0x50] sm:$0xf] %v888
                  %v890 = vld [vmem:[%s846 + $0x54] sm:$0xf]
                  %891 = vst [vmem:[%s847 + $0x54] sm:$0xf] %v890
                  %v892 = vld [vmem:[%s846 + $0x58] sm:$0xf]
                  %893 = vst [vmem:[%s847 + $0x58] sm:$0xf] %v892
                  %v894 = vld [vmem:[%s846 + $0x5c] sm:$0xf]
                  %895 = vst [vmem:[%s847 + $0x5c] sm:$0xf] %v894
                  %v896 = vld [vmem:[%s846 + $0x60] sm:$0xf]
                  %897 = vst [vmem:[%s847 + $0x60] sm:$0xf] %v896
                  %v898 = vld [vmem:[%s846 + $0x64] sm:$0xf]
                  %899 = vst [vmem:[%s847 + $0x64] sm:$0xf] %v898
                  %s900 = sadd.s32 1, %s845
                  %p901 = scmp.ge.s32.totalorder %s900, %s837
                  %s902 = scalar_select %p901, 0, %s900
                  %s903 = smul.u32 %s902, 104
                  %s904 = smul.u32 %s902, 104
                  %s905 = scalar_lea.vmem %s719, %s903 [#allocation2]
                  %s906 = scalar_lea.vmem %s730, %s904
                $region75: #{generator_forward.7} parent=69 // loop_footer
                  %s842 = sadd.s32 %s840, 1
                $region76: #{generator_forward.7} parent=69 // loop_footer_branch
                  %839 = sbr.rel target = $region72
                $region77: #{generator_forward.7} parent=69 // loop_exit
                  _
                %s907 = sdiv.u32.pop %s726, 26
                %s908 = srem.u32.pop %s726, 26
                %s909 = smul.u32 %s907, 26
                %s910 = smul.u32 4, %s909
                %s911 = scalar_lea.vmem %s719, %s910 [#allocation2]
                %s912 = smul.u32 4, %s909
                %s913 = scalar_lea.vmem %s730, %s912
                // While loop
                $region78: #{generator_forward.7} parent=69 // loop_pre_header
                  _
                $region79: #{generator_forward.7} parent=69 // loop_header
                  %s915 = sphi 0, %s917
                  %p916 = scmp.ge.s32.totalorder %s915, %s908
                  %s920 = sphi 0, %s927
                  %s921 = sphi %s911, %s930
                  %s922 = sphi %s913, %s931
                $region80: #{generator_forward.7} parent=69 // loop_header_branch
                  %919 = sbr.rel (%p916) target = $region84
                $region81: #{generator_forward.7} parent=69 // loop_body
                  %v923 = vld [vmem:[%s921] sm:$0xf]
                  %924 = vst [vmem:[%s922] sm:$0xf] %v923
                  %s925 = sadd.s32 1, %s920
                  %p926 = scmp.ge.s32.totalorder %s925, %s908
                  %s927 = scalar_select %p926, 0, %s925
                  %s928 = smul.u32 %s927, 4
                  %s929 = smul.u32 %s927, 4
                  %s930 = scalar_lea.vmem %s911, %s928 [#allocation2]
                  %s931 = scalar_lea.vmem %s913, %s929
                $region82: #{generator_forward.7} parent=69 // loop_footer
                  %s917 = sadd.s32 %s915, 1
                $region83: #{generator_forward.7} parent=69 // loop_footer_branch
                  %914 = sbr.rel target = $region79
                $region84: #{generator_forward.7} parent=69 // loop_exit
                  _
              $region70: #{generator_forward.7} parent=47 // pred_fallthru
                _
            $region48: #{generator_forward.7} parent=43 // pred_fallthru
              _
            // Predicated region
            $region49: #{generator_forward.7} parent=43 // pred_check
              _
            $region50: #{generator_forward.7} parent=43 // pred_check_branch
              %737 = sbr.rel (0) target = $region52
            $region51: #{generator_forward.7} parent=43 // pred_region
              %s739 = sdiv.u32.pop %s726, 26
              %s740 = srem.u32.pop %s726, 26
              // While loop
              $region53: #{generator_forward.7} parent=51 // loop_pre_header
                _
              $region54: #{generator_forward.7} parent=51 // loop_header
                %s742 = sphi 0, %s744
                %p743 = scmp.ge.s32.totalorder %s742, %s739
                %s747 = sphi 0, %s804
                %s748 = sphi %s719, %s807
                %s749 = sphi %s730, %s808
              $region55: #{generator_forward.7} parent=51 // loop_header_branch
                %746 = sbr.rel (%p743) target = $region59
              $region56: #{generator_forward.7} parent=51 // loop_body
                %v750 = vld [vmem:[%s748] sm:$0xf]
                %751 = vst [vmem:[%s749] sm:$0xf] %v750
                %v752 = vld [vmem:[%s748 + $0x4] sm:$0xf]
                %753 = vst [vmem:[%s749 + $0x4] sm:$0xf] %v752
                %v754 = vld [vmem:[%s748 + $0x8] sm:$0xf]
                %755 = vst [vmem:[%s749 + $0x8] sm:$0xf] %v754
                %v756 = vld [vmem:[%s748 + $0xc] sm:$0xf]
                %757 = vst [vmem:[%s749 + $0xc] sm:$0xf] %v756
                %v758 = vld [vmem:[%s748 + $0x10] sm:$0xf]
                %759 = vst [vmem:[%s749 + $0x10] sm:$0xf] %v758
                %v760 = vld [vmem:[%s748 + $0x14] sm:$0xf]
                %761 = vst [vmem:[%s749 + $0x14] sm:$0xf] %v760
                %v762 = vld [vmem:[%s748 + $0x18] sm:$0xf]
                %763 = vst [vmem:[%s749 + $0x18] sm:$0xf] %v762
                %v764 = vld [vmem:[%s748 + $0x1c] sm:$0xf]
                %765 = vst [vmem:[%s749 + $0x1c] sm:$0xf] %v764
                %v766 = vld [vmem:[%s748 + $0x20] sm:$0xf]
                %767 = vst [vmem:[%s749 + $0x20] sm:$0xf] %v766
                %v768 = vld [vmem:[%s748 + $0x24] sm:$0xf]
                %769 = vst [vmem:[%s749 + $0x24] sm:$0xf] %v768
                %v770 = vld [vmem:[%s748 + $0x28] sm:$0xf]
                %771 = vst [vmem:[%s749 + $0x28] sm:$0xf] %v770
                %v772 = vld [vmem:[%s748 + $0x2c] sm:$0xf]
                %773 = vst [vmem:[%s749 + $0x2c] sm:$0xf] %v772
                %v774 = vld [vmem:[%s748 + $0x30] sm:$0xf]
                %775 = vst [vmem:[%s749 + $0x30] sm:$0xf] %v774
                %v776 = vld [vmem:[%s748 + $0x34] sm:$0xf]
                %777 = vst [vmem:[%s749 + $0x34] sm:$0xf] %v776
                %v778 = vld [vmem:[%s748 + $0x38] sm:$0xf]
                %779 = vst [vmem:[%s749 + $0x38] sm:$0xf] %v778
                %v780 = vld [vmem:[%s748 + $0x3c] sm:$0xf]
                %781 = vst [vmem:[%s749 + $0x3c] sm:$0xf] %v780
                %v782 = vld [vmem:[%s748 + $0x40] sm:$0xf]
                %783 = vst [vmem:[%s749 + $0x40] sm:$0xf] %v782
                %v784 = vld [vmem:[%s748 + $0x44] sm:$0xf]
                %785 = vst [vmem:[%s749 + $0x44] sm:$0xf] %v784
                %v786 = vld [vmem:[%s748 + $0x48] sm:$0xf]
                %787 = vst [vmem:[%s749 + $0x48] sm:$0xf] %v786
                %v788 = vld [vmem:[%s748 + $0x4c] sm:$0xf]
                %789 = vst [vmem:[%s749 + $0x4c] sm:$0xf] %v788
                %v790 = vld [vmem:[%s748 + $0x50] sm:$0xf]
                %791 = vst [vmem:[%s749 + $0x50] sm:$0xf] %v790
                %v792 = vld [vmem:[%s748 + $0x54] sm:$0xf]
                %793 = vst [vmem:[%s749 + $0x54] sm:$0xf] %v792
                %v794 = vld [vmem:[%s748 + $0x58] sm:$0xf]
                %795 = vst [vmem:[%s749 + $0x58] sm:$0xf] %v794
                %v796 = vld [vmem:[%s748 + $0x5c] sm:$0xf]
                %797 = vst [vmem:[%s749 + $0x5c] sm:$0xf] %v796
                %v798 = vld [vmem:[%s748 + $0x60] sm:$0xf]
                %799 = vst [vmem:[%s749 + $0x60] sm:$0xf] %v798
                %v800 = vld [vmem:[%s748 + $0x64] sm:$0xf]
                %801 = vst [vmem:[%s749 + $0x64] sm:$0xf] %v800
                %s802 = sadd.s32 1, %s747
                %p803 = scmp.ge.s32.totalorder %s802, %s739
                %s804 = scalar_select %p803, 0, %s802
                %s805 = smul.u32 %s804, 104
                %s806 = smul.u32 %s804, 104
                %s807 = scalar_lea.vmem %s719, %s805 [#allocation2]
                %s808 = scalar_lea.vmem %s730, %s806
              $region57: #{generator_forward.7} parent=51 // loop_footer
                %s744 = sadd.s32 %s742, 1
              $region58: #{generator_forward.7} parent=51 // loop_footer_branch
                %741 = sbr.rel target = $region54
              $region59: #{generator_forward.7} parent=51 // loop_exit
                _
              %s809 = sdiv.u32.pop %s726, 26
              %s810 = srem.u32.pop %s726, 26
              %s811 = smul.u32 %s809, 26
              %s812 = smul.u32 4, %s811
              %s813 = scalar_lea.vmem %s719, %s812 [#allocation2]
              %s814 = smul.u32 4, %s811
              %s815 = scalar_lea.vmem %s730, %s814
              // While loop
              $region60: #{generator_forward.7} parent=51 // loop_pre_header
                _
              $region61: #{generator_forward.7} parent=51 // loop_header
                %s817 = sphi 0, %s819
                %p818 = scmp.ge.s32.totalorder %s817, %s810
                %s822 = sphi 0, %s829
                %s823 = sphi %s813, %s832
                %s824 = sphi %s815, %s833
              $region62: #{generator_forward.7} parent=51 // loop_header_branch
                %821 = sbr.rel (%p818) target = $region66
              $region63: #{generator_forward.7} parent=51 // loop_body
                %v825 = vld [vmem:[%s823] sm:$0xf]
                %826 = vst [vmem:[%s824] sm:$0xf] %v825
                %s827 = sadd.s32 1, %s822
                %p828 = scmp.ge.s32.totalorder %s827, %s810
                %s829 = scalar_select %p828, 0, %s827
                %s830 = smul.u32 %s829, 4
                %s831 = smul.u32 %s829, 4
                %s832 = scalar_lea.vmem %s813, %s830 [#allocation2]
                %s833 = scalar_lea.vmem %s815, %s831
              $region64: #{generator_forward.7} parent=51 // loop_footer
                %s819 = sadd.s32 %s817, 1
              $region65: #{generator_forward.7} parent=51 // loop_footer_branch
                %816 = sbr.rel target = $region61
              $region66: #{generator_forward.7} parent=51 // loop_exit
                _
            $region52: #{generator_forward.7} parent=43 // pred_fallthru
              _
          $region44: #{generator_forward.7} parent=39 // pred_fallthru
            _
          %932 = vnop
        $region40: #{generator_forward.7} parent=35 // pred_fallthru
          _
      $region36: #{generator_forward.7} parent=5 // pred_fallthru
        _
      %p933 = scmp.le.s32.totalorder 2, %s10
      // Predicated region
      $region85: #{generator_forward.7} parent=5 // pred_check
        %p934 = pneg %p933
      $region86: #{generator_forward.7} parent=5 // pred_check_branch
        %936 = sbr.rel (%p934) target = $region88
      $region87: #{generator_forward.7} parent=5 // pred_region
        %s937 = ssub.s32 %s10, 2
        // Predicated region
        $region89: #{generator_forward.7} parent=87 // pred_check
          %p938 = pneg %p128
        $region90: #{generator_forward.7} parent=87 // pred_check_branch
          %940 = sbr.rel (%p938) target = $region92
        $region91: #{generator_forward.7} parent=87 // pred_region
          %s941 = sand.u32 %s113, 1
          %s942 = sand.u32 %s113, 1
          %s943 = smul.addr %s942, 104
          %s944 = scalar_lea.vmem [#allocation2], %s943
        $region92: #{generator_forward.7} parent=87 // pred_fallthru
          _
      $region88: #{generator_forward.7} parent=5 // pred_fallthru
        _
    $region6: #{generator_forward.7} parent=1 // loop_footer
      %s14 = sadd.s32 1, %s10
    $region7: #{generator_forward.7} parent=1 // loop_footer_branch
      %9 = sbr.rel target = $region3
    $region8: #{generator_forward.7} parent=1 // loop_exit
      _

</llo_original>
